<compile_context>
chip_gen: v6e
topology: v6e:2x2x1
jax: 0.10.0
libtpu: 0.0.40
codegen_flags: <defaults>
</compile_context>

<pallas_src>
import numpy as np

import jax
import jax.numpy as jnp
from jax import lax
from jax.experimental import pallas as pl
from jax.experimental.pallas import tpu as pltpu


CONF = {
    "type": "resnet_synthetic",
    "skip_pool": True,
    "layers_for_sampling": ["layer1", "layer2", "layer3"],
    "upsampling_mode": "bilinear",
    "align_corners": False,
    "interpolation_mode": "bilinear",
    "padding_mode": "zeros",
    "scale_size": [16, 16],
}

# module name -> (cin, cout, stride, residual)
BACKBONE = {
    "conv1":  (4, 8, 1, False),   # conv1 + bn1 + relu (fused)
    "layer1": (8, 8, 1, True),
    "layer2": (8, 16, 2, False),
    "layer3": (16, 32, 2, False),
}

H0, W0 = 16, 16          # input spatial size (== conf['scale_size'])
OFF = 8                  # sublane-aligned halo offset inside activation buffers
C_TOTAL = 8 + 16 + 32    # concatenated channels of the three taps


# ---------------------------------------------------------------------------
# Deterministic parameter init (synthetic backbone, eval-mode BN)
# ---------------------------------------------------------------------------
def init_params(key):
    params = {}
    eps = 1e-5
    for name, (cin, cout, _, _) in BACKBONE.items():
        key, kw, kg, kb, km = jax.random.split(key, 5)
        w = jax.random.normal(kw, (3, 3, cin, cout), jnp.float32) / jnp.sqrt(9.0 * cin)
        gamma = 1.0 + 0.1 * jax.random.normal(kg, (cout,), jnp.float32)
        beta = 0.1 * jax.random.normal(kb, (cout,), jnp.float32)
        run_mean = 0.1 * jax.random.normal(km, (cout,), jnp.float32)
        run_var = jnp.ones((cout,), jnp.float32)
        scale = gamma / jnp.sqrt(run_var + eps)       # folded eval-mode BN
        bias = beta - run_mean * scale
        params[name] = dict(w=w, scale=scale, bias=bias)
    return params


# ---------------------------------------------------------------------------
# Host-side (build-time) matrix constructors
# ---------------------------------------------------------------------------
def _interp_matrix(out_size, in_size):
    """1-D PyTorch F.interpolate(mode='bilinear', align_corners=False) weights."""
    if out_size == in_size:
        return np.eye(out_size, dtype=np.float32)
    scale = in_size / out_size
    dst = np.arange(out_size, dtype=np.float32)
    src = np.maximum((dst + 0.5) * scale - 0.5, 0.0)
    x0 = np.clip(np.floor(src).astype(np.int32), 0, in_size - 1)
    x1 = np.minimum(x0 + 1, in_size - 1)
    frac = (src - x0).astype(np.float32)
    A = np.zeros((out_size, in_size), np.float32)
    A[np.arange(out_size), x0] += 1.0 - frac
    A[np.arange(out_size), x1] += frac
    return A


def _subsample_matrix(n_in):
    """0/1 selector picking even positions == exact stride-2 subsample."""
    n_out = n_in // 2
    S = np.zeros((n_out, n_in), np.float32)
    S[np.arange(n_out), 2 * np.arange(n_out)] = 1.0
    return S


def _banded_conv_weights(w, width):
    """Fold the 3 W-taps of a 3x3 conv (incl. W zero-padding) into block-banded
    matrices (3, width*Cin, width*Cout): the conv over an (H, W*Cin) activation
    becomes 3 lane-dense matmuls (one per kh)."""
    _, _, cin, cout = w.shape
    out = np.zeros((3, width * cin, width * cout), np.float32)
    for kh in range(3):
        for kw in range(3):
            for wo in range(width):
                wi = wo + kw - 1
                if 0 <= wi < width:
                    out[kh, wi * cin:(wi + 1) * cin,
                        wo * cout:(wo + 1) * cout] = w[kh, kw]
    return out


def _scatter_matrix(ci, off):
    """(W0*ci, W0*C_TOTAL) 0/1 map: lane (w*ci + c) -> lane (w*56 + off + c)."""
    S = np.zeros((W0 * ci, W0 * C_TOTAL), np.float32)
    for w in range(W0):
        for c in range(ci):
            S[w * ci + c, w * C_TOTAL + off + c] = 1.0
    return S


def build_operands(params, batch_block):
    """Banded conv weights (BN-scale folded, bf16), bias rows (f32), and the
    batch-block-diagonal row matrices + lane selection/resize/scatter matrices
    (bf16) for a batch block of `batch_block` elements."""
    B = batch_block
    widths = {"conv1": W0, "layer1": W0, "layer2": W0, "layer3": W0 // 2}
    ops = []
    for name, (cin, cout, stride, residual) in BACKBONE.items():
        if residual:
            assert cin == cout and stride == 1, \
                "identity shortcut requires cin == cout and stride == 1"
        p = params[name]
        scale = np.asarray(p["scale"], np.float32)
        w_np = np.asarray(p["w"], np.float32) * scale[None, None, None, :]  # BN fold
        ops.append(jnp.asarray(_banded_conv_weights(w_np, widths[name]),
                               jnp.bfloat16))
        bias = np.tile(np.asarray(p["bias"], np.float32), widths[name])[None, :]
        ops.append(jnp.asarray(bias, jnp.float32))                # (1, W*Cout)

    c1 = BACKBONE["layer1"][1]            # 8
    c2 = BACKBONE["layer2"][1]            # 16
    c3 = BACKBONE["layer3"][1]            # 32
    sel16 = _subsample_matrix(W0)         # (8, 16)
    sel8 = _subsample_matrix(W0 // 2)     # (4, 8)
    a16_8 = _interp_matrix(H0, H0 // 2)   # (16, 8) bilinear 8 -> 16
    a16_4 = _interp_matrix(H0, H0 // 4)   # (16, 4) bilinear 4 -> 16
    lh3 = (a16_4 @ sel8).astype(np.float32)                       # (16, 8)
    eye_b = np.eye(B, dtype=np.float32)

    sh2b = np.kron(eye_b, sel16)                                  # (8B, 16B)
    swc2 = np.kron(sel16.T, np.eye(c2, dtype=np.float32))         # (256, 128)
    ah2b = np.kron(eye_b, a16_8)                                  # (16B, 8B)
    lh3b = np.kron(eye_b, lh3)                                    # (16B, 8B)
    s1 = _scatter_matrix(c1, 0)                                   # (128, 896)
    rwc2p = np.kron(a16_8.T, np.eye(c2, dtype=np.float32)) @ _scatter_matrix(c2, c1)
    rwc3p = np.kron(lh3.T, np.eye(c3, dtype=np.float32)) @ _scatter_matrix(c3, c1 + c2)

    for m in (sh2b, swc2, ah2b, rwc2p, lh3b, rwc3p, s1):
        ops.append(jnp.asarray(m, jnp.bfloat16))
    return ops


# ---------------------------------------------------------------------------
# Fused encoder kernel (one grid step == one block of B batch elements)
# ---------------------------------------------------------------------------
def _encoder_kernel(x_ref,
                    w1, b1, wl1, bl1, wl2, bl2, wl3, bl3,
                    sh2b, swc2, ah2b, rwc2p, lh3b, rwc3p, s1,
                    o_ref, bufx, bufa, bufb):
    R16 = o_ref.shape[0]       # 16 * B batch-stacked rows
    R8 = R16 // 2
    f32 = jnp.float32
    bf16 = jnp.bfloat16

    # Element-boundary masks: compact batch stacking has no interleaved zero
    # rows, so the kh=0 / kh=2 row-shift terms are select-masked instead.
    # jnp.where is a select -> garbage in the never-initialised halo rows of
    # the scratch buffers cannot leak through (no memsets needed at all).
    i16 = lax.broadcasted_iota(jnp.int32, (R16, 1), 0)
    up16 = (i16 % 16) != 0
    dn16 = (i16 % 16) != 15
    i8 = lax.broadcasted_iota(jnp.int32, (R8, 1), 0)
    up8 = (i8 % 8) != 0
    dn8 = (i8 % 8) != 7

    def conv3x3(buf, rows, w_ref, b_ref, up_m, dn_m, res=None):
        # 3 lane-dense bf16 matmuls against the block-banded weights.
        # (kh K-stacking skipped: would need in-kernel lane-concat copies.)
        x_up = jnp.where(up_m, buf[OFF - 1:OFF - 1 + rows, :], 0.0).astype(bf16)
        x_md = buf[OFF:OFF + rows, :].astype(bf16)
        x_dn = jnp.where(dn_m, buf[OFF + 1:OFF + 1 + rows, :], 0.0).astype(bf16)
        acc = jnp.dot(x_up, w_ref[0], preferred_element_type=f32)
        acc = acc + jnp.dot(x_md, w_ref[1], preferred_element_type=f32)
        acc = acc + jnp.dot(x_dn, w_ref[2], preferred_element_type=f32)
        y = acc + b_ref[...]                   # BN scale folded into w at build
        if res is not None:
            y = y + res                        # identity shortcut
        return jnp.maximum(y, 0.0)             # ReLU

    # conv1 + bn1 + relu   (maxpool popped: conf['skip_pool'] == True)
    bufx[OFF:OFF + R16, :] = x_ref[...]
    y1 = conv3x3(bufx, R16, w1, b1, up16, dn16)                    # (R16, 128)

    # layer1 (stride 1, identity residual) -> tap #1 (already 16x16)
    bufa[OFF:OFF + R16, :] = y1
    f1 = conv3x3(bufa, R16, wl1, bl1, up16, dn16, res=y1)          # (R16, 128)

    # layer2 (stride 2): stride-1 conv + exact even row/col selection
    bufa[OFF:OFF + R16, :] = f1
    y2f = conv3x3(bufa, R16, wl2, bl2, up16, dn16)                 # (R16, 256)
    y2 = jnp.dot(sh2b[...], y2f.astype(bf16), preferred_element_type=f32)
    y2 = jnp.dot(y2.astype(bf16), swc2[...], preferred_element_type=f32)   # (R8, 128)

    # layer3 (stride 2)
    bufb[OFF:OFF + R8, :] = y2
    y3f = conv3x3(bufb, R8, wl3, bl3, up8, dn8)                    # (R8, 256)

    # taps -> stride-2 selection + bilinear 16x16 + NHWC channel interleave,
    # all folded into precomputed matrices; ONE lane-dense (896 = 7*128) store.
    o = jnp.dot(f1.astype(bf16), s1[...], preferred_element_type=f32)
    t2 = jnp.dot(ah2b[...], y2.astype(bf16), preferred_element_type=f32)
    o = o + jnp.dot(t2.astype(bf16), rwc2p[...], preferred_element_type=f32)
    t3 = jnp.dot(lh3b[...], y3f.astype(bf16), preferred_element_type=f32)
    o = o + jnp.dot(t3.astype(bf16), rwc3p[...], preferred_element_type=f32)
    o_ref[...] = o


# ---------------------------------------------------------------------------
# Encoder.forward
# ---------------------------------------------------------------------------
def encoder_forward(x_nchw, params, batch_block=None, channels_last=False,
                    conf=CONF):
    assert conf["skip_pool"]                 # maxpool popped from model_modules
    N, Cin, H, W = x_nchw.shape
    assert (H, W) == (H0, W0) and Cin == BACKBONE["conv1"][0]

    # Batch-block size per perf review: 8 fills the 128-row v5e MXU exactly;
    # pass batch_block=16 on v6e/v7x (256-row MXU); on v7x keep it <= N // 2 so
    # the "parallel" grid axis can still shard across both TensorCores.
    B = batch_block if batch_block is not None else max(1, min(8, N))
    n_blk = pl.cdiv(N, B)
    Npad = n_blk * B
    R16 = 16 * B

    operands = build_operands(params, B)

    # NCHW -> lane-dense (N*H, W*Cin) rows; pad batch to a multiple of B.
    x2d = jnp.transpose(x_nchw, (0, 2, 3, 1)).astype(jnp.float32)
    x2d = x2d.reshape(N * H, W * Cin)
    if Npad != N:
        x2d = jnp.pad(x2d, ((0, (Npad - N) * H), (0, 0)))

    def const_spec(a):
        # Invariant operands: block == full array, fixed block index.
        # (pl.Buffered(1) would drop their useless double-buffering; skipped --
        #  total operand footprint is ~2 MiB, far below any VMEM limit.)
        return pl.BlockSpec(a.shape, lambda n, _nd=a.ndim: (0,) * _nd)

    in_specs = [pl.BlockSpec((R16, W * Cin), lambda n: (n, 0))]
    in_specs += [const_spec(a) for a in operands]

    out = pl.pallas_call(
        _encoder_kernel,
        out_shape=jax.ShapeDtypeStruct((Npad * H, W * C_TOTAL), jnp.float32),
        grid_spec=pltpu.PrefetchScalarGridSpec(
            num_scalar_prefetch=0,
            grid=(n_blk,),
            in_specs=in_specs,
            out_specs=pl.BlockSpec((R16, W * C_TOTAL), lambda n: (n, 0)),
            scratch_shapes=[
                pltpu.VMEM((R16 + 2 * OFF, W * Cin), jnp.float32),             # conv1 in
                pltpu.VMEM((R16 + 2 * OFF, W * BACKBONE["conv1"][1]), jnp.float32),   # layer1/2 in
                pltpu.VMEM((R16 // 2 + 2 * OFF, (W // 2) * BACKBONE["layer2"][1]), jnp.float32),  # layer3 in
            ],
        ),
        compiler_params=pltpu.CompilerParams(dimension_semantics=("parallel",)),
    )(x2d, *operands)

    # Lane layout is NHWC-interleaved -> NHWC is a FREE reshape (no HBM pass).
    fv = out[:N * H].reshape(N, H, W, C_TOTAL)
    if channels_last:
        feature_volume = fv                                  # (N, H, W, 56)
    else:
        feature_volume = jnp.transpose(fv, (0, 3, 1, 2))     # NCHW (module semantics)
    f_vol_window = jnp.array([H, W], jnp.int32)
    return feature_volume, f_vol_window


# ---------------------------------------------------------------------------
# Pure-JAX reference (same synthetic backbone) for a sanity check
# ---------------------------------------------------------------------------
def encoder_reference(x_nchw, params):
    x = jnp.transpose(x_nchw, (0, 2, 3, 1)).astype(jnp.float32)   # NHWC

    def block(x, p, stride, res=None):
        y = lax.conv_general_dilated(
            x, p["w"], window_strides=(stride, stride),
            padding=((1, 1), (1, 1)),
            dimension_numbers=("NHWC", "HWIO", "NHWC"))
        y = y * p["scale"] + p["bias"]
        if res is not None:
            y = y + res
        return jnp.maximum(y, 0.0)

    y1 = block(x, params["conv1"], 1)
    f1 = block(y1, params["layer1"], 1, res=y1)
    y2 = block(f1, params["layer2"], 2)
    y3 = block(y2, params["layer3"], 2)
    a8 = jnp.asarray(_interp_matrix(H0, H0 // 2))
    a4 = jnp.asarray(_interp_matrix(H0, H0 // 4))
    f2 = jnp.einsum("Hh,Ww,nhwc->nHWc", a8, a8, y2)
    f3 = jnp.einsum("Hh,Ww,nhwc->nHWc", a4, a4, y3)
    fv = jnp.concatenate([f1, f2, f3], axis=-1)
    return jnp.transpose(fv, (0, 3, 1, 2))                        # NCHW


if __name__ == "__main__":
    key = jax.random.PRNGKey(0)
    kx, kp = jax.random.split(key)
    x = jax.random.normal(kx, (2, 4, 16, 16), jnp.float32)   # NCHW, like PyTorch
    params = init_params(kp)

    feature_volume, f_vol_window = encoder_forward(x, params)
    jax.block_until_ready(feature_volume)
    jax.block_until_ready(f_vol_window)

    assert feature_volume.shape == (2, 8 + 16 + 32, 16, 16), feature_volume.shape
    assert tuple(int(v) for v in f_vol_window) == (16, 16)

    ref = encoder_reference(x, params)
    err = float(jnp.max(jnp.abs(feature_volume - ref)))
    ref_max = float(jnp.max(jnp.abs(ref)))
    # bf16 MXU inputs with f32 accumulation -> small drift vs the f32 reference.
    assert err < 0.1 * (1.0 + ref_max), ("mismatch vs reference", err, ref_max)
    print("KERNEL_OK")
</pallas_src>

<mosaic_0001>
module attributes {stable_mosaic.version = 11 : i64} {
  func.func @_encoder_kernel(%arg0: i32, %arg1: memref<32x64xf32, #tpu.memory_space<vmem>>, %arg2: memref<3x64x128xbf16, #tpu.memory_space<vmem>>, %arg3: memref<1x128xf32, #tpu.memory_space<vmem>>, %arg4: memref<3x128x128xbf16, #tpu.memory_space<vmem>>, %arg5: memref<1x128xf32, #tpu.memory_space<vmem>>, %arg6: memref<3x128x256xbf16, #tpu.memory_space<vmem>>, %arg7: memref<1x256xf32, #tpu.memory_space<vmem>>, %arg8: memref<3x128x256xbf16, #tpu.memory_space<vmem>>, %arg9: memref<1x256xf32, #tpu.memory_space<vmem>>, %arg10: memref<16x32xbf16, #tpu.memory_space<vmem>>, %arg11: memref<256x128xbf16, #tpu.memory_space<vmem>>, %arg12: memref<32x16xbf16, #tpu.memory_space<vmem>>, %arg13: memref<128x896xbf16, #tpu.memory_space<vmem>>, %arg14: memref<32x16xbf16, #tpu.memory_space<vmem>>, %arg15: memref<256x896xbf16, #tpu.memory_space<vmem>>, %arg16: memref<128x896xbf16, #tpu.memory_space<vmem>>, %arg17: memref<32x896xf32, #tpu.memory_space<vmem>>, %arg18: memref<48x64xf32, #tpu.memory_space<vmem>>, %arg19: memref<48x128xf32, #tpu.memory_space<vmem>>, %arg20: memref<32x128xf32, #tpu.memory_space<vmem>>) attributes {dimension_semantics = [#tpu.dimension_semantics<parallel>], iteration_bounds = array<i64: 1>, scalar_prefetch = 0 : i64, scratch_operands = 3 : i64, tpu.core_type = #tpu.core_type<tc>, window_params = [{transform_indices = @transform_0, window_bounds = array<i64: 32, 64>}, {pipeline_mode = #tpu.pipeline_mode<synchronous>, transform_indices = @transform_1, window_bounds = array<i64: 3, 64, 128>}, {pipeline_mode = #tpu.pipeline_mode<synchronous>, transform_indices = @transform_2, window_bounds = array<i64: 1, 128>}, {pipeline_mode = #tpu.pipeline_mode<synchronous>, transform_indices = @transform_3, window_bounds = array<i64: 3, 128, 128>}, {pipeline_mode = #tpu.pipeline_mode<synchronous>, transform_indices = @transform_4, window_bounds = array<i64: 1, 128>}, {pipeline_mode = #tpu.pipeline_mode<synchronous>, transform_indices = @transform_5, window_bounds = array<i64: 3, 128, 256>}, {pipeline_mode = #tpu.pipeline_mode<synchronous>, transform_indices = @transform_6, window_bounds = array<i64: 1, 256>}, {pipeline_mode = #tpu.pipeline_mode<synchronous>, transform_indices = @transform_7, window_bounds = array<i64: 3, 128, 256>}, {pipeline_mode = #tpu.pipeline_mode<synchronous>, transform_indices = @transform_8, window_bounds = array<i64: 1, 256>}, {pipeline_mode = #tpu.pipeline_mode<synchronous>, transform_indices = @transform_9, window_bounds = array<i64: 16, 32>}, {pipeline_mode = #tpu.pipeline_mode<synchronous>, transform_indices = @transform_10, window_bounds = array<i64: 256, 128>}, {pipeline_mode = #tpu.pipeline_mode<synchronous>, transform_indices = @transform_11, window_bounds = array<i64: 32, 16>}, {pipeline_mode = #tpu.pipeline_mode<synchronous>, transform_indices = @transform_12, window_bounds = array<i64: 128, 896>}, {pipeline_mode = #tpu.pipeline_mode<synchronous>, transform_indices = @transform_13, window_bounds = array<i64: 32, 16>}, {pipeline_mode = #tpu.pipeline_mode<synchronous>, transform_indices = @transform_14, window_bounds = array<i64: 256, 896>}, {pipeline_mode = #tpu.pipeline_mode<synchronous>, transform_indices = @transform_15, window_bounds = array<i64: 128, 896>}, {transform_indices = @transform_16, window_bounds = array<i64: 32, 896>}]} {
    %0 = tpu.iota {dimensions = array<i32: 0>} : vector<32x1xi32>
    %c16_i32 = arith.constant 16 : i32
    %c0_i32 = arith.constant 0 : i32
    %1 = arith.cmpi eq, %c16_i32, %c0_i32 : i32
    %c1_i32 = arith.constant 1 : i32
    %2 = arith.select %1, %c1_i32, %c16_i32 : i32
    %3 = vector.broadcast %2 : i32 to vector<32x1xi32>
    %4 = arith.remsi %0, %3 : vector<32x1xi32>
    %c0_i32_0 = arith.constant 0 : i32
    %5 = vector.broadcast %c0_i32_0 : i32 to vector<32x1xi32>
    %6 = arith.cmpi ne, %4, %5 : vector<32x1xi32>
    %c0_i32_1 = arith.constant 0 : i32
    %7 = vector.broadcast %c0_i32_1 : i32 to vector<32x1xi32>
    %8 = arith.cmpi slt, %4, %7 : vector<32x1xi32>
    %c0_i32_2 = arith.constant 0 : i32
    %9 = arith.cmpi slt, %2, %c0_i32_2 : i32
    %10 = vector.broadcast %9 : i1 to vector<32x1xi1>
    %11 = vector.broadcast %10 : vector<32x1xi1> to vector<32x1xi1>
    %12 = arith.xori %8, %11 : vector<32x1xi1>
    %13 = arith.andi %12, %6 : vector<32x1xi1>
    %14 = vector.broadcast %2 : i32 to vector<32x1xi32>
    %15 = arith.addi %4, %14 : vector<32x1xi32>
    %16 = arith.select %13, %15, %4 : vector<32x1xi1>, vector<32x1xi32>
    %c0_i32_3 = arith.constant 0 : i32
    %17 = vector.broadcast %c0_i32_3 : i32 to vector<32x1xi32>
    %18 = arith.cmpi ne, %16, %17 : vector<32x1xi32>
    %c16_i32_4 = arith.constant 16 : i32
    %c0_i32_5 = arith.constant 0 : i32
    %19 = arith.cmpi eq, %c16_i32_4, %c0_i32_5 : i32
    %c1_i32_6 = arith.constant 1 : i32
    %20 = arith.select %19, %c1_i32_6, %c16_i32_4 : i32
    %21 = vector.broadcast %20 : i32 to vector<32x1xi32>
    %22 = arith.remsi %0, %21 : vector<32x1xi32>
    %c0_i32_7 = arith.constant 0 : i32
    %23 = vector.broadcast %c0_i32_7 : i32 to vector<32x1xi32>
    %24 = arith.cmpi ne, %22, %23 : vector<32x1xi32>
    %c0_i32_8 = arith.constant 0 : i32
    %25 = vector.broadcast %c0_i32_8 : i32 to vector<32x1xi32>
    %26 = arith.cmpi slt, %22, %25 : vector<32x1xi32>
    %c0_i32_9 = arith.constant 0 : i32
    %27 = arith.cmpi slt, %20, %c0_i32_9 : i32
    %28 = vector.broadcast %27 : i1 to vector<32x1xi1>
    %29 = vector.broadcast %28 : vector<32x1xi1> to vector<32x1xi1>
    %30 = arith.xori %26, %29 : vector<32x1xi1>
    %31 = arith.andi %30, %24 : vector<32x1xi1>
    %32 = vector.broadcast %20 : i32 to vector<32x1xi32>
    %33 = arith.addi %22, %32 : vector<32x1xi32>
    %34 = arith.select %31, %33, %22 : vector<32x1xi1>, vector<32x1xi32>
    %c15_i32 = arith.constant 15 : i32
    %35 = vector.broadcast %c15_i32 : i32 to vector<32x1xi32>
    %36 = arith.cmpi ne, %34, %35 : vector<32x1xi32>
    %37 = tpu.iota {dimensions = array<i32: 0>} : vector<16x1xi32>
    %c8_i32 = arith.constant 8 : i32
    %c0_i32_10 = arith.constant 0 : i32
    %38 = arith.cmpi eq, %c8_i32, %c0_i32_10 : i32
    %c1_i32_11 = arith.constant 1 : i32
    %39 = arith.select %38, %c1_i32_11, %c8_i32 : i32
    %40 = vector.broadcast %39 : i32 to vector<16x1xi32>
    %41 = arith.remsi %37, %40 : vector<16x1xi32>
    %c0_i32_12 = arith.constant 0 : i32
    %42 = vector.broadcast %c0_i32_12 : i32 to vector<16x1xi32>
    %43 = arith.cmpi ne, %41, %42 : vector<16x1xi32>
    %c0_i32_13 = arith.constant 0 : i32
    %44 = vector.broadcast %c0_i32_13 : i32 to vector<16x1xi32>
    %45 = arith.cmpi slt, %41, %44 : vector<16x1xi32>
    %c0_i32_14 = arith.constant 0 : i32
    %46 = arith.cmpi slt, %39, %c0_i32_14 : i32
    %47 = vector.broadcast %46 : i1 to vector<16x1xi1>
    %48 = vector.broadcast %47 : vector<16x1xi1> to vector<16x1xi1>
    %49 = arith.xori %45, %48 : vector<16x1xi1>
    %50 = arith.andi %49, %43 : vector<16x1xi1>
    %51 = vector.broadcast %39 : i32 to vector<16x1xi32>
    %52 = arith.addi %41, %51 : vector<16x1xi32>
    %53 = arith.select %50, %52, %41 : vector<16x1xi1>, vector<16x1xi32>
    %c0_i32_15 = arith.constant 0 : i32
    %54 = vector.broadcast %c0_i32_15 : i32 to vector<16x1xi32>
    %55 = arith.cmpi ne, %53, %54 : vector<16x1xi32>
    %c8_i32_16 = arith.constant 8 : i32
    %c0_i32_17 = arith.constant 0 : i32
    %56 = arith.cmpi eq, %c8_i32_16, %c0_i32_17 : i32
    %c1_i32_18 = arith.constant 1 : i32
    %57 = arith.select %56, %c1_i32_18, %c8_i32_16 : i32
    %58 = vector.broadcast %57 : i32 to vector<16x1xi32>
    %59 = arith.remsi %37, %58 : vector<16x1xi32>
    %c0_i32_19 = arith.constant 0 : i32
    %60 = vector.broadcast %c0_i32_19 : i32 to vector<16x1xi32>
    %61 = arith.cmpi ne, %59, %60 : vector<16x1xi32>
    %c0_i32_20 = arith.constant 0 : i32
    %62 = vector.broadcast %c0_i32_20 : i32 to vector<16x1xi32>
    %63 = arith.cmpi slt, %59, %62 : vector<16x1xi32>
    %c0_i32_21 = arith.constant 0 : i32
    %64 = arith.cmpi slt, %57, %c0_i32_21 : i32
    %65 = vector.broadcast %64 : i1 to vector<16x1xi1>
    %66 = vector.broadcast %65 : vector<16x1xi1> to vector<16x1xi1>
    %67 = arith.xori %63, %66 : vector<16x1xi1>
    %68 = arith.andi %67, %61 : vector<16x1xi1>
    %69 = vector.broadcast %57 : i32 to vector<16x1xi32>
    %70 = arith.addi %59, %69 : vector<16x1xi32>
    %71 = arith.select %68, %70, %59 : vector<16x1xi1>, vector<16x1xi32>
    %c7_i32 = arith.constant 7 : i32
    %72 = vector.broadcast %c7_i32 : i32 to vector<16x1xi32>
    %73 = arith.cmpi ne, %71, %72 : vector<16x1xi32>
    %c0 = arith.constant 0 : index
    %c0_22 = arith.constant 0 : index
    %74 = vector.load %arg1[%c0, %c0_22] : memref<32x64xf32, #tpu.memory_space<vmem>>, vector<32x64xf32>
    %c8 = arith.constant 8 : index
    %c0_23 = arith.constant 0 : index
    %75 = vector.load %arg18[%c8, %c0_23] : memref<48x64xf32, #tpu.memory_space<vmem>>, vector<32x64xf32>
    tpu.vector_store %arg18[%c8, %c0_23], %74 {strides = array<i32>} : memref<48x64xf32, #tpu.memory_space<vmem>>, vector<32x64xf32>,
    %c7 = arith.constant 7 : index
    %c0_24 = arith.constant 0 : index
    %76 = vector.load %arg18[%c7, %c0_24] : memref<48x64xf32, #tpu.memory_space<vmem>>, vector<32x64xf32>
    %cst = arith.constant 0.000000e+00 : f32
    %77 = vector.shape_cast %18 : vector<32x1xi1> to vector<32x1xi1>
    %78 = vector.broadcast %77 : vector<32x1xi1> to vector<32x64xi1>
    %79 = vector.broadcast %cst : f32 to vector<32x64xf32>
    %80 = arith.select %78, %76, %79 : vector<32x64xi1>, vector<32x64xf32>
    %81 = arith.truncf %80 : vector<32x64xf32> to vector<32x64xbf16>
    %c8_25 = arith.constant 8 : index
    %c0_26 = arith.constant 0 : index
    %82 = vector.load %arg18[%c8_25, %c0_26] : memref<48x64xf32, #tpu.memory_space<vmem>>, vector<32x64xf32>
    %83 = arith.truncf %82 : vector<32x64xf32> to vector<32x64xbf16>
    %c9 = arith.constant 9 : index
    %c0_27 = arith.constant 0 : index
    %84 = vector.load %arg18[%c9, %c0_27] : memref<48x64xf32, #tpu.memory_space<vmem>>, vector<32x64xf32>
    %cst_28 = arith.constant 0.000000e+00 : f32
    %85 = vector.shape_cast %36 : vector<32x1xi1> to vector<32x1xi1>
    %86 = vector.broadcast %85 : vector<32x1xi1> to vector<32x64xi1>
    %87 = vector.broadcast %cst_28 : f32 to vector<32x64xf32>
    %88 = arith.select %86, %84, %87 : vector<32x64xi1>, vector<32x64xf32>
    %89 = arith.truncf %88 : vector<32x64xf32> to vector<32x64xbf16>
    %c0_29 = arith.constant 0 : index
    %c0_30 = arith.constant 0 : index
    %c0_31 = arith.constant 0 : index
    %90 = vector.load %arg2[%c0_29, %c0_30, %c0_31] : memref<3x64x128xbf16, #tpu.memory_space<vmem>>, vector<1x64x128xbf16>
    %91 = vector.shape_cast %90 : vector<1x64x128xbf16> to vector<64x128xbf16>
    %cst_32 = arith.constant dense<0.000000e+00> : vector<32x128xf32>
    %92 = tpu.matmul %81, %91, %cst_32 {dimension_numbers = #tpu.dot_dimension_numbers<[1], [0], [0], [1], [0, 0, 1, 1], [], []>} : vector<32x64xbf16>, vector<64x128xbf16>, vector<32x128xf32> -> vector<32x128xf32>
    %c1 = arith.constant 1 : index
    %c0_33 = arith.constant 0 : index
    %c0_34 = arith.constant 0 : index
    %93 = vector.load %arg2[%c1, %c0_33, %c0_34] : memref<3x64x128xbf16, #tpu.memory_space<vmem>>, vector<1x64x128xbf16>
    %94 = vector.shape_cast %93 : vector<1x64x128xbf16> to vector<64x128xbf16>
    %cst_35 = arith.constant dense<0.000000e+00> : vector<32x128xf32>
    %95 = tpu.matmul %83, %94, %cst_35 {dimension_numbers = #tpu.dot_dimension_numbers<[1], [0], [0], [1], [0, 0, 1, 1], [], []>} : vector<32x64xbf16>, vector<64x128xbf16>, vector<32x128xf32> -> vector<32x128xf32>
    %96 = arith.addf %92, %95 : vector<32x128xf32>
    %c2 = arith.constant 2 : index
    %c0_36 = arith.constant 0 : index
    %c0_37 = arith.constant 0 : index
    %97 = vector.load %arg2[%c2, %c0_36, %c0_37] : memref<3x64x128xbf16, #tpu.memory_space<vmem>>, vector<1x64x128xbf16>
    %98 = vector.shape_cast %97 : vector<1x64x128xbf16> to vector<64x128xbf16>
    %cst_38 = arith.constant dense<0.000000e+00> : vector<32x128xf32>
    %99 = tpu.matmul %89, %98, %cst_38 {dimension_numbers = #tpu.dot_dimension_numbers<[1], [0], [0], [1], [0, 0, 1, 1], [], []>} : vector<32x64xbf16>, vector<64x128xbf16>, vector<32x128xf32> -> vector<32x128xf32>
    %100 = arith.addf %96, %99 : vector<32x128xf32>
    %c0_39 = arith.constant 0 : index
    %c0_40 = arith.constant 0 : index
    %101 = vector.load %arg3[%c0_39, %c0_40] : memref<1x128xf32, #tpu.memory_space<vmem>>, vector<1x128xf32>
    %102 = vector.broadcast %101 : vector<1x128xf32> to vector<32x128xf32>
    %103 = arith.addf %100, %102 : vector<32x128xf32>
    %cst_41 = arith.constant 0.000000e+00 : f32
    %104 = vector.broadcast %cst_41 : f32 to vector<32x128xf32>
    %105 = arith.maximumf %103, %104 : vector<32x128xf32>
    %c8_42 = arith.constant 8 : index
    %c0_43 = arith.constant 0 : index
    %106 = vector.load %arg19[%c8_42, %c0_43] : memref<48x128xf32, #tpu.memory_space<vmem>>, vector<32x128xf32>
    tpu.vector_store %arg19[%c8_42, %c0_43], %105 {strides = array<i32>} : memref<48x128xf32, #tpu.memory_space<vmem>>, vector<32x128xf32>,
    %c7_44 = arith.constant 7 : index
    %c0_45 = arith.constant 0 : index
    %107 = vector.load %arg19[%c7_44, %c0_45] : memref<48x128xf32, #tpu.memory_space<vmem>>, vector<32x128xf32>
    %cst_46 = arith.constant 0.000000e+00 : f32
    %108 = vector.shape_cast %18 : vector<32x1xi1> to vector<32x1xi1>
    %109 = vector.broadcast %108 : vector<32x1xi1> to vector<32x128xi1>
    %110 = vector.broadcast %cst_46 : f32 to vector<32x128xf32>
    %111 = arith.select %109, %107, %110 : vector<32x128xi1>, vector<32x128xf32>
    %112 = arith.truncf %111 : vector<32x128xf32> to vector<32x128xbf16>
    %c8_47 = arith.constant 8 : index
    %c0_48 = arith.constant 0 : index
    %113 = vector.load %arg19[%c8_47, %c0_48] : memref<48x128xf32, #tpu.memory_space<vmem>>, vector<32x128xf32>
    %114 = arith.truncf %113 : vector<32x128xf32> to vector<32x128xbf16>
    %c9_49 = arith.constant 9 : index
    %c0_50 = arith.constant 0 : index
    %115 = vector.load %arg19[%c9_49, %c0_50] : memref<48x128xf32, #tpu.memory_space<vmem>>, vector<32x128xf32>
    %cst_51 = arith.constant 0.000000e+00 : f32
    %116 = vector.shape_cast %36 : vector<32x1xi1> to vector<32x1xi1>
    %117 = vector.broadcast %116 : vector<32x1xi1> to vector<32x128xi1>
    %118 = vector.broadcast %cst_51 : f32 to vector<32x128xf32>
    %119 = arith.select %117, %115, %118 : vector<32x128xi1>, vector<32x128xf32>
    %120 = arith.truncf %119 : vector<32x128xf32> to vector<32x128xbf16>
    %c0_52 = arith.constant 0 : index
    %c0_53 = arith.constant 0 : index
    %c0_54 = arith.constant 0 : index
    %121 = vector.load %arg4[%c0_52, %c0_53, %c0_54] : memref<3x128x128xbf16, #tpu.memory_space<vmem>>, vector<1x128x128xbf16>
    %122 = vector.shape_cast %121 : vector<1x128x128xbf16> to vector<128x128xbf16>
    %cst_55 = arith.constant dense<0.000000e+00> : vector<32x128xf32>
    %123 = tpu.matmul %112, %122, %cst_55 {dimension_numbers = #tpu.dot_dimension_numbers<[1], [0], [0], [1], [0, 0, 1, 1], [], []>} : vector<32x128xbf16>, vector<128x128xbf16>, vector<32x128xf32> -> vector<32x128xf32>
    %c1_56 = arith.constant 1 : index
    %c0_57 = arith.constant 0 : index
    %c0_58 = arith.constant 0 : index
    %124 = vector.load %arg4[%c1_56, %c0_57, %c0_58] : memref<3x128x128xbf16, #tpu.memory_space<vmem>>, vector<1x128x128xbf16>
    %125 = vector.shape_cast %124 : vector<1x128x128xbf16> to vector<128x128xbf16>
    %cst_59 = arith.constant dense<0.000000e+00> : vector<32x128xf32>
    %126 = tpu.matmul %114, %125, %cst_59 {dimension_numbers = #tpu.dot_dimension_numbers<[1], [0], [0], [1], [0, 0, 1, 1], [], []>} : vector<32x128xbf16>, vector<128x128xbf16>, vector<32x128xf32> -> vector<32x128xf32>
    %127 = arith.addf %123, %126 : vector<32x128xf32>
    %c2_60 = arith.constant 2 : index
    %c0_61 = arith.constant 0 : index
    %c0_62 = arith.constant 0 : index
    %128 = vector.load %arg4[%c2_60, %c0_61, %c0_62] : memref<3x128x128xbf16, #tpu.memory_space<vmem>>, vector<1x128x128xbf16>
    %129 = vector.shape_cast %128 : vector<1x128x128xbf16> to vector<128x128xbf16>
    %cst_63 = arith.constant dense<0.000000e+00> : vector<32x128xf32>
    %130 = tpu.matmul %120, %129, %cst_63 {dimension_numbers = #tpu.dot_dimension_numbers<[1], [0], [0], [1], [0, 0, 1, 1], [], []>} : vector<32x128xbf16>, vector<128x128xbf16>, vector<32x128xf32> -> vector<32x128xf32>
    %131 = arith.addf %127, %130 : vector<32x128xf32>
    %c0_64 = arith.constant 0 : index
    %c0_65 = arith.constant 0 : index
    %132 = vector.load %arg5[%c0_64, %c0_65] : memref<1x128xf32, #tpu.memory_space<vmem>>, vector<1x128xf32>
    %133 = vector.broadcast %132 : vector<1x128xf32> to vector<32x128xf32>
    %134 = arith.addf %131, %133 : vector<32x128xf32>
    %135 = arith.addf %134, %105 : vector<32x128xf32>
    %cst_66 = arith.constant 0.000000e+00 : f32
    %136 = vector.broadcast %cst_66 : f32 to vector<32x128xf32>
    %137 = arith.maximumf %135, %136 : vector<32x128xf32>
    %c8_67 = arith.constant 8 : index
    %c0_68 = arith.constant 0 : index
    %138 = vector.load %arg19[%c8_67, %c0_68] : memref<48x128xf32, #tpu.memory_space<vmem>>, vector<32x128xf32>
    tpu.vector_store %arg19[%c8_67, %c0_68], %137 {strides = array<i32>} : memref<48x128xf32, #tpu.memory_space<vmem>>, vector<32x128xf32>,
    %c7_69 = arith.constant 7 : index
    %c0_70 = arith.constant 0 : index
    %139 = vector.load %arg19[%c7_69, %c0_70] : memref<48x128xf32, #tpu.memory_space<vmem>>, vector<32x128xf32>
    %cst_71 = arith.constant 0.000000e+00 : f32
    %140 = vector.shape_cast %18 : vector<32x1xi1> to vector<32x1xi1>
    %141 = vector.broadcast %140 : vector<32x1xi1> to vector<32x128xi1>
    %142 = vector.broadcast %cst_71 : f32 to vector<32x128xf32>
    %143 = arith.select %141, %139, %142 : vector<32x128xi1>, vector<32x128xf32>
    %144 = arith.truncf %143 : vector<32x128xf32> to vector<32x128xbf16>
    %c8_72 = arith.constant 8 : index
    %c0_73 = arith.constant 0 : index
    %145 = vector.load %arg19[%c8_72, %c0_73] : memref<48x128xf32, #tpu.memory_space<vmem>>, vector<32x128xf32>
    %146 = arith.truncf %145 : vector<32x128xf32> to vector<32x128xbf16>
    %c9_74 = arith.constant 9 : index
    %c0_75 = arith.constant 0 : index
    %147 = vector.load %arg19[%c9_74, %c0_75] : memref<48x128xf32, #tpu.memory_space<vmem>>, vector<32x128xf32>
    %cst_76 = arith.constant 0.000000e+00 : f32
    %148 = vector.shape_cast %36 : vector<32x1xi1> to vector<32x1xi1>
    %149 = vector.broadcast %148 : vector<32x1xi1> to vector<32x128xi1>
    %150 = vector.broadcast %cst_76 : f32 to vector<32x128xf32>
    %151 = arith.select %149, %147, %150 : vector<32x128xi1>, vector<32x128xf32>
    %152 = arith.truncf %151 : vector<32x128xf32> to vector<32x128xbf16>
    %c0_77 = arith.constant 0 : index
    %c0_78 = arith.constant 0 : index
    %c0_79 = arith.constant 0 : index
    %153 = vector.load %arg6[%c0_77, %c0_78, %c0_79] : memref<3x128x256xbf16, #tpu.memory_space<vmem>>, vector<1x128x256xbf16>
    %154 = vector.shape_cast %153 : vector<1x128x256xbf16> to vector<128x256xbf16>
    %cst_80 = arith.constant dense<0.000000e+00> : vector<32x256xf32>
    %155 = tpu.matmul %144, %154, %cst_80 {dimension_numbers = #tpu.dot_dimension_numbers<[1], [0], [0], [1], [0, 0, 1, 1], [], []>} : vector<32x128xbf16>, vector<128x256xbf16>, vector<32x256xf32> -> vector<32x256xf32>
    %c1_81 = arith.constant 1 : index
    %c0_82 = arith.constant 0 : index
    %c0_83 = arith.constant 0 : index
    %156 = vector.load %arg6[%c1_81, %c0_82, %c0_83] : memref<3x128x256xbf16, #tpu.memory_space<vmem>>, vector<1x128x256xbf16>
    %157 = vector.shape_cast %156 : vector<1x128x256xbf16> to vector<128x256xbf16>
    %cst_84 = arith.constant dense<0.000000e+00> : vector<32x256xf32>
    %158 = tpu.matmul %146, %157, %cst_84 {dimension_numbers = #tpu.dot_dimension_numbers<[1], [0], [0], [1], [0, 0, 1, 1], [], []>} : vector<32x128xbf16>, vector<128x256xbf16>, vector<32x256xf32> -> vector<32x256xf32>
    %159 = arith.addf %155, %158 : vector<32x256xf32>
    %c2_85 = arith.constant 2 : index
    %c0_86 = arith.constant 0 : index
    %c0_87 = arith.constant 0 : index
    %160 = vector.load %arg6[%c2_85, %c0_86, %c0_87] : memref<3x128x256xbf16, #tpu.memory_space<vmem>>, vector<1x128x256xbf16>
    %161 = vector.shape_cast %160 : vector<1x128x256xbf16> to vector<128x256xbf16>
    %cst_88 = arith.constant dense<0.000000e+00> : vector<32x256xf32>
    %162 = tpu.matmul %152, %161, %cst_88 {dimension_numbers = #tpu.dot_dimension_numbers<[1], [0], [0], [1], [0, 0, 1, 1], [], []>} : vector<32x128xbf16>, vector<128x256xbf16>, vector<32x256xf32> -> vector<32x256xf32>
    %163 = arith.addf %159, %162 : vector<32x256xf32>
    %c0_89 = arith.constant 0 : index
    %c0_90 = arith.constant 0 : index
    %164 = vector.load %arg7[%c0_89, %c0_90] : memref<1x256xf32, #tpu.memory_space<vmem>>, vector<1x256xf32>
    %165 = vector.broadcast %164 : vector<1x256xf32> to vector<32x256xf32>
    %166 = arith.addf %163, %165 : vector<32x256xf32>
    %cst_91 = arith.constant 0.000000e+00 : f32
    %167 = vector.broadcast %cst_91 : f32 to vector<32x256xf32>
    %168 = arith.maximumf %166, %167 : vector<32x256xf32>
    %c0_92 = arith.constant 0 : index
    %c0_93 = arith.constant 0 : index
    %169 = vector.load %arg10[%c0_92, %c0_93] : memref<16x32xbf16, #tpu.memory_space<vmem>>, vector<16x32xbf16>
    %170 = arith.truncf %168 : vector<32x256xf32> to vector<32x256xbf16>
    %cst_94 = arith.constant dense<0.000000e+00> : vector<16x256xf32>
    %171 = tpu.matmul %169, %170, %cst_94 {dimension_numbers = #tpu.dot_dimension_numbers<[1], [0], [0], [1], [0, 0, 1, 1], [], []>} : vector<16x32xbf16>, vector<32x256xbf16>, vector<16x256xf32> -> vector<16x256xf32>
    %172 = arith.truncf %171 : vector<16x256xf32> to vector<16x256xbf16>
    %c0_95 = arith.constant 0 : index
    %c0_96 = arith.constant 0 : index
    %173 = vector.load %arg11[%c0_95, %c0_96] : memref<256x128xbf16, #tpu.memory_space<vmem>>, vector<256x128xbf16>
    %cst_97 = arith.constant dense<0.000000e+00> : vector<16x128xf32>
    %174 = tpu.matmul %172, %173, %cst_97 {dimension_numbers = #tpu.dot_dimension_numbers<[1], [0], [0], [1], [0, 0, 1, 1], [], []>} : vector<16x256xbf16>, vector<256x128xbf16>, vector<16x128xf32> -> vector<16x128xf32>
    %c8_98 = arith.constant 8 : index
    %c0_99 = arith.constant 0 : index
    %175 = vector.load %arg20[%c8_98, %c0_99] : memref<32x128xf32, #tpu.memory_space<vmem>>, vector<16x128xf32>
    tpu.vector_store %arg20[%c8_98, %c0_99], %174 {strides = array<i32>} : memref<32x128xf32, #tpu.memory_space<vmem>>, vector<16x128xf32>,
    %c7_100 = arith.constant 7 : index
    %c0_101 = arith.constant 0 : index
    %176 = vector.load %arg20[%c7_100, %c0_101] : memref<32x128xf32, #tpu.memory_space<vmem>>, vector<16x128xf32>
    %cst_102 = arith.constant 0.000000e+00 : f32
    %177 = vector.shape_cast %55 : vector<16x1xi1> to vector<16x1xi1>
    %178 = vector.broadcast %177 : vector<16x1xi1> to vector<16x128xi1>
    %179 = vector.broadcast %cst_102 : f32 to vector<16x128xf32>
    %180 = arith.select %178, %176, %179 : vector<16x128xi1>, vector<16x128xf32>
    %181 = arith.truncf %180 : vector<16x128xf32> to vector<16x128xbf16>
    %c8_103 = arith.constant 8 : index
    %c0_104 = arith.constant 0 : index
    %182 = vector.load %arg20[%c8_103, %c0_104] : memref<32x128xf32, #tpu.memory_space<vmem>>, vector<16x128xf32>
    %183 = arith.truncf %182 : vector<16x128xf32> to vector<16x128xbf16>
    %c9_105 = arith.constant 9 : index
    %c0_106 = arith.constant 0 : index
    %184 = vector.load %arg20[%c9_105, %c0_106] : memref<32x128xf32, #tpu.memory_space<vmem>>, vector<16x128xf32>
    %cst_107 = arith.constant 0.000000e+00 : f32
    %185 = vector.shape_cast %73 : vector<16x1xi1> to vector<16x1xi1>
    %186 = vector.broadcast %185 : vector<16x1xi1> to vector<16x128xi1>
    %187 = vector.broadcast %cst_107 : f32 to vector<16x128xf32>
    %188 = arith.select %186, %184, %187 : vector<16x128xi1>, vector<16x128xf32>
    %189 = arith.truncf %188 : vector<16x128xf32> to vector<16x128xbf16>
    %c0_108 = arith.constant 0 : index
    %c0_109 = arith.constant 0 : index
    %c0_110 = arith.constant 0 : index
    %190 = vector.load %arg8[%c0_108, %c0_109, %c0_110] : memref<3x128x256xbf16, #tpu.memory_space<vmem>>, vector<1x128x256xbf16>
    %191 = vector.shape_cast %190 : vector<1x128x256xbf16> to vector<128x256xbf16>
    %cst_111 = arith.constant dense<0.000000e+00> : vector<16x256xf32>
    %192 = tpu.matmul %181, %191, %cst_111 {dimension_numbers = #tpu.dot_dimension_numbers<[1], [0], [0], [1], [0, 0, 1, 1], [], []>} : vector<16x128xbf16>, vector<128x256xbf16>, vector<16x256xf32> -> vector<16x256xf32>
    %c1_112 = arith.constant 1 : index
    %c0_113 = arith.constant 0 : index
    %c0_114 = arith.constant 0 : index
    %193 = vector.load %arg8[%c1_112, %c0_113, %c0_114] : memref<3x128x256xbf16, #tpu.memory_space<vmem>>, vector<1x128x256xbf16>
    %194 = vector.shape_cast %193 : vector<1x128x256xbf16> to vector<128x256xbf16>
    %cst_115 = arith.constant dense<0.000000e+00> : vector<16x256xf32>
    %195 = tpu.matmul %183, %194, %cst_115 {dimension_numbers = #tpu.dot_dimension_numbers<[1], [0], [0], [1], [0, 0, 1, 1], [], []>} : vector<16x128xbf16>, vector<128x256xbf16>, vector<16x256xf32> -> vector<16x256xf32>
    %196 = arith.addf %192, %195 : vector<16x256xf32>
    %c2_116 = arith.constant 2 : index
    %c0_117 = arith.constant 0 : index
    %c0_118 = arith.constant 0 : index
    %197 = vector.load %arg8[%c2_116, %c0_117, %c0_118] : memref<3x128x256xbf16, #tpu.memory_space<vmem>>, vector<1x128x256xbf16>
    %198 = vector.shape_cast %197 : vector<1x128x256xbf16> to vector<128x256xbf16>
    %cst_119 = arith.constant dense<0.000000e+00> : vector<16x256xf32>
    %199 = tpu.matmul %189, %198, %cst_119 {dimension_numbers = #tpu.dot_dimension_numbers<[1], [0], [0], [1], [0, 0, 1, 1], [], []>} : vector<16x128xbf16>, vector<128x256xbf16>, vector<16x256xf32> -> vector<16x256xf32>
    %200 = arith.addf %196, %199 : vector<16x256xf32>
    %c0_120 = arith.constant 0 : index
    %c0_121 = arith.constant 0 : index
    %201 = vector.load %arg9[%c0_120, %c0_121] : memref<1x256xf32, #tpu.memory_space<vmem>>, vector<1x256xf32>
    %202 = vector.broadcast %201 : vector<1x256xf32> to vector<16x256xf32>
    %203 = arith.addf %200, %202 : vector<16x256xf32>
    %cst_122 = arith.constant 0.000000e+00 : f32
    %204 = vector.broadcast %cst_122 : f32 to vector<16x256xf32>
    %205 = arith.maximumf %203, %204 : vector<16x256xf32>
    %206 = arith.truncf %137 : vector<32x128xf32> to vector<32x128xbf16>
    %c0_123 = arith.constant 0 : index
    %c0_124 = arith.constant 0 : index
    %207 = vector.load %arg16[%c0_123, %c0_124] : memref<128x896xbf16, #tpu.memory_space<vmem>>, vector<128x896xbf16>
    %cst_125 = arith.constant dense<0.000000e+00> : vector<32x896xf32>
    %208 = tpu.matmul %206, %207, %cst_125 {dimension_numbers = #tpu.dot_dimension_numbers<[1], [0], [0], [1], [0, 0, 1, 1], [], []>} : vector<32x128xbf16>, vector<128x896xbf16>, vector<32x896xf32> -> vector<32x896xf32>
    %c0_126 = arith.constant 0 : index
    %c0_127 = arith.constant 0 : index
    %209 = vector.load %arg12[%c0_126, %c0_127] : memref<32x16xbf16, #tpu.memory_space<vmem>>, vector<32x16xbf16>
    %210 = arith.truncf %174 : vector<16x128xf32> to vector<16x128xbf16>
    %cst_128 = arith.constant dense<0.000000e+00> : vector<32x128xf32>
    %211 = tpu.matmul %209, %210, %cst_128 {dimension_numbers = #tpu.dot_dimension_numbers<[1], [0], [0], [1], [0, 0, 1, 1], [], []>} : vector<32x16xbf16>, vector<16x128xbf16>, vector<32x128xf32> -> vector<32x128xf32>
    %212 = arith.truncf %211 : vector<32x128xf32> to vector<32x128xbf16>
    %c0_129 = arith.constant 0 : index
    %c0_130 = arith.constant 0 : index
    %213 = vector.load %arg13[%c0_129, %c0_130] : memref<128x896xbf16, #tpu.memory_space<vmem>>, vector<128x896xbf16>
    %cst_131 = arith.constant dense<0.000000e+00> : vector<32x896xf32>
    %214 = tpu.matmul %212, %213, %cst_131 {dimension_numbers = #tpu.dot_dimension_numbers<[1], [0], [0], [1], [0, 0, 1, 1], [], []>} : vector<32x128xbf16>, vector<128x896xbf16>, vector<32x896xf32> -> vector<32x896xf32>
    %215 = arith.addf %208, %214 : vector<32x896xf32>
    %c0_132 = arith.constant 0 : index
    %c0_133 = arith.constant 0 : index
    %216 = vector.load %arg14[%c0_132, %c0_133] : memref<32x16xbf16, #tpu.memory_space<vmem>>, vector<32x16xbf16>
    %217 = arith.truncf %205 : vector<16x256xf32> to vector<16x256xbf16>
    %cst_134 = arith.constant dense<0.000000e+00> : vector<32x256xf32>
    %218 = tpu.matmul %216, %217, %cst_134 {dimension_numbers = #tpu.dot_dimension_numbers<[1], [0], [0], [1], [0, 0, 1, 1], [], []>} : vector<32x16xbf16>, vector<16x256xbf16>, vector<32x256xf32> -> vector<32x256xf32>
    %219 = arith.truncf %218 : vector<32x256xf32> to vector<32x256xbf16>
    %c0_135 = arith.constant 0 : index
    %c0_136 = arith.constant 0 : index
    %220 = vector.load %arg15[%c0_135, %c0_136] : memref<256x896xbf16, #tpu.memory_space<vmem>>, vector<256x896xbf16>
    %cst_137 = arith.constant dense<0.000000e+00> : vector<32x896xf32>
    %221 = tpu.matmul %219, %220, %cst_137 {dimension_numbers = #tpu.dot_dimension_numbers<[1], [0], [0], [1], [0, 0, 1, 1], [], []>} : vector<32x256xbf16>, vector<256x896xbf16>, vector<32x896xf32> -> vector<32x896xf32>
    %222 = arith.addf %215, %221 : vector<32x896xf32>
    %c0_138 = arith.constant 0 : index
    %c0_139 = arith.constant 0 : index
    %223 = vector.load %arg17[%c0_138, %c0_139] : memref<32x896xf32, #tpu.memory_space<vmem>>, vector<32x896xf32>
    tpu.vector_store %arg17[%c0_138, %c0_139], %222 {strides = array<i32>} : memref<32x896xf32, #tpu.memory_space<vmem>>, vector<32x896xf32>,
    return
  }
  func.func @transform_0(%arg0: i32) -> (i32, i32) {
    %c0_i32 = arith.constant 0 : i32
    %c0_i32_0 = arith.constant 0 : i32
    return %arg0, %c0_i32 : i32, i32
  }
  func.func @transform_1(%arg0: i32) -> (i32, i32, i32) {
    %c0_i32 = arith.constant 0 : i32
    %c0_i32_0 = arith.constant 0 : i32
    %c0_i32_1 = arith.constant 0 : i32
    %c0_i32_2 = arith.constant 0 : i32
    return %c0_i32, %c0_i32_0, %c0_i32_1 : i32, i32, i32
  }
  func.func @transform_2(%arg0: i32) -> (i32, i32) {
    %c0_i32 = arith.constant 0 : i32
    %c0_i32_0 = arith.constant 0 : i32
    %c0_i32_1 = arith.constant 0 : i32
    return %c0_i32, %c0_i32_0 : i32, i32
  }
  func.func @transform_3(%arg0: i32) -> (i32, i32, i32) {
    %c0_i32 = arith.constant 0 : i32
    %c0_i32_0 = arith.constant 0 : i32
    %c0_i32_1 = arith.constant 0 : i32
    %c0_i32_2 = arith.constant 0 : i32
    return %c0_i32, %c0_i32_0, %c0_i32_1 : i32, i32, i32
  }
  func.func @transform_4(%arg0: i32) -> (i32, i32) {
    %c0_i32 = arith.constant 0 : i32
    %c0_i32_0 = arith.constant 0 : i32
    %c0_i32_1 = arith.constant 0 : i32
    return %c0_i32, %c0_i32_0 : i32, i32
  }
  func.func @transform_5(%arg0: i32) -> (i32, i32, i32) {
    %c0_i32 = arith.constant 0 : i32
    %c0_i32_0 = arith.constant 0 : i32
    %c0_i32_1 = arith.constant 0 : i32
    %c0_i32_2 = arith.constant 0 : i32
    return %c0_i32, %c0_i32_0, %c0_i32_1 : i32, i32, i32
  }
  func.func @transform_6(%arg0: i32) -> (i32, i32) {
    %c0_i32 = arith.constant 0 : i32
    %c0_i32_0 = arith.constant 0 : i32
    %c0_i32_1 = arith.constant 0 : i32
    return %c0_i32, %c0_i32_0 : i32, i32
  }
  func.func @transform_7(%arg0: i32) -> (i32, i32, i32) {
    %c0_i32 = arith.constant 0 : i32
    %c0_i32_0 = arith.constant 0 : i32
    %c0_i32_1 = arith.constant 0 : i32
    %c0_i32_2 = arith.constant 0 : i32
    return %c0_i32, %c0_i32_0, %c0_i32_1 : i32, i32, i32
  }
  func.func @transform_8(%arg0: i32) -> (i32, i32) {
    %c0_i32 = arith.constant 0 : i32
    %c0_i32_0 = arith.constant 0 : i32
    %c0_i32_1 = arith.constant 0 : i32
    return %c0_i32, %c0_i32_0 : i32, i32
  }
  func.func @transform_9(%arg0: i32) -> (i32, i32) {
    %c0_i32 = arith.constant 0 : i32
    %c0_i32_0 = arith.constant 0 : i32
    %c0_i32_1 = arith.constant 0 : i32
    return %c0_i32, %c0_i32_0 : i32, i32
  }
  func.func @transform_10(%arg0: i32) -> (i32, i32) {
    %c0_i32 = arith.constant 0 : i32
    %c0_i32_0 = arith.constant 0 : i32
    %c0_i32_1 = arith.constant 0 : i32
    return %c0_i32, %c0_i32_0 : i32, i32
  }
  func.func @transform_11(%arg0: i32) -> (i32, i32) {
    %c0_i32 = arith.constant 0 : i32
    %c0_i32_0 = arith.constant 0 : i32
    %c0_i32_1 = arith.constant 0 : i32
    return %c0_i32, %c0_i32_0 : i32, i32
  }
  func.func @transform_12(%arg0: i32) -> (i32, i32) {
    %c0_i32 = arith.constant 0 : i32
    %c0_i32_0 = arith.constant 0 : i32
    %c0_i32_1 = arith.constant 0 : i32
    return %c0_i32, %c0_i32_0 : i32, i32
  }
  func.func @transform_13(%arg0: i32) -> (i32, i32) {
    %c0_i32 = arith.constant 0 : i32
    %c0_i32_0 = arith.constant 0 : i32
    %c0_i32_1 = arith.constant 0 : i32
    return %c0_i32, %c0_i32_0 : i32, i32
  }
  func.func @transform_14(%arg0: i32) -> (i32, i32) {
    %c0_i32 = arith.constant 0 : i32
    %c0_i32_0 = arith.constant 0 : i32
    %c0_i32_1 = arith.constant 0 : i32
    return %c0_i32, %c0_i32_0 : i32, i32
  }
  func.func @transform_15(%arg0: i32) -> (i32, i32) {
    %c0_i32 = arith.constant 0 : i32
    %c0_i32_0 = arith.constant 0 : i32
    %c0_i32_1 = arith.constant 0 : i32
    return %c0_i32, %c0_i32_0 : i32, i32
  }
  func.func @transform_16(%arg0: i32) -> (i32, i32) {
    %c0_i32 = arith.constant 0 : i32
    %c0_i32_0 = arith.constant 0 : i32
    return %arg0, %c0_i32 : i32, i32
  }
}

</mosaic_0001>

<llo_original>
// kernel: tpu_custom_call.1
$region0: #{tpu_custom_call.1}
  #allocation0 [shape = 'u32[]', space=smem, size = 0x4, offset = 0x4, fixed_abs, tag = 'smem constant byte address 0x4 - core index']
  #allocation1 [shape = 'u32[144,128]{1,0:T(1,128)}', space=vmem, size = 0x12000, scoped, tag = 'internal scratch']
  #allocation2 [shape = 'f32[48,64]{1,0:T(8,128)}', space=vmem, size = 0x6000, scoped, tag = 'scratch operand']
  #allocation3 [shape = 'f32[48,128]{1,0:T(8,128)}', space=vmem, size = 0x6000, scoped, tag = 'scratch operand']
  #allocation4 [shape = 'f32[32,128]{1,0:T(8,128)}', space=vmem, size = 0x4000, scoped, tag = 'scratch operand']
  %s0 = inlined_call_operand.vmem [shape: f32[32,64], index: 0, kind: input, shape index: {}]
  %s1 = inlined_call_operand.hbm [shape: bf16[3,64,128], index: 1, kind: input, shape index: {}]
  %s2 = inlined_call_operand.vmem [shape: f32[1,128], index: 2, kind: input, shape index: {}]
  %s3 = inlined_call_operand.hbm [shape: bf16[3,128,128], index: 3, kind: input, shape index: {}]
  %s4 = inlined_call_operand.vmem [shape: f32[1,128], index: 4, kind: input, shape index: {}]
  %s5 = inlined_call_operand.hbm [shape: bf16[3,128,256], index: 5, kind: input, shape index: {}]
  %s6 = inlined_call_operand.vmem [shape: f32[1,256], index: 6, kind: input, shape index: {}]
  %s7 = inlined_call_operand.hbm [shape: bf16[3,128,256], index: 7, kind: input, shape index: {}]
  %s8 = inlined_call_operand.vmem [shape: f32[1,256], index: 8, kind: input, shape index: {}]
  %s9 = inlined_call_operand.vmem [shape: bf16[16,32], index: 9, kind: input, shape index: {}]
  %s10 = inlined_call_operand.hbm [shape: bf16[256,128], index: 10, kind: input, shape index: {}]
  %s11 = inlined_call_operand.vmem [shape: bf16[32,16], index: 11, kind: input, shape index: {}]
  %s12 = inlined_call_operand.hbm [shape: bf16[128,896], index: 12, kind: input, shape index: {}]
  %s13 = inlined_call_operand.vmem [shape: bf16[32,16], index: 13, kind: input, shape index: {}]
  %s14 = inlined_call_operand.hbm [shape: bf16[256,896], index: 14, kind: input, shape index: {}]
  %s15 = inlined_call_operand.hbm [shape: bf16[128,896], index: 15, kind: input, shape index: {}]
  %s16 = inlined_call_operand.hbm [shape: f32[32,896], index: 16, kind: output, shape index: {}]
  %s17 = sld [smem:[#allocation0]]
  $region106: #{tpu_custom_call.1} parent=0
    _
  %s19 = ssub.s32 1, %s17
  %s20 = scalar_select 0, %s19, %s17
  $region1: #{tpu_custom_call.1} parent=0
    #allocation5 [shape = 'u8[49152]{0}', space=vmem, size = 0xc000, scoped, tag = 'input window, operand 1, single buffered']
    #allocation6 [shape = 's32[1]{0}', space=sflag, size = 0x4, scoped, tag = 'scoped memory for tpu_custom_call.1']
    #allocation7 [shape = 's32[1]{0}', space=sflag, size = 0x4, scoped, tag = 'scoped memory for tpu_custom_call.1']
    #allocation8 [shape = 'u8[98304]{0}', space=vmem, size = 0x18000, scoped, tag = 'input window, operand 3, single buffered']
    #allocation9 [shape = 's32[1]{0}', space=sflag, size = 0x4, scoped, tag = 'scoped memory for tpu_custom_call.1']
    #allocation10 [shape = 'u8[196608]{0}', space=vmem, size = 0x30000, scoped, tag = 'input window, operand 5, single buffered']
    #allocation11 [shape = 'u8[196608]{0}', space=vmem, size = 0x30000, scoped, tag = 'input window, operand 7, single buffered']
    #allocation12 [shape = 's32[1]{0}', space=sflag, size = 0x4, scoped, tag = 'scoped memory for tpu_custom_call.1']
    #allocation13 [shape = 'u8[65536]{0}', space=vmem, size = 0x10000, scoped, tag = 'input window, operand 10, single buffered']
    #allocation14 [shape = 'u8[229376]{0}', space=vmem, size = 0x38000, scoped, tag = 'input window, operand 12, single buffered']
    #allocation15 [shape = 's32[1]{0}', space=sflag, size = 0x4, scoped, tag = 'scoped memory for tpu_custom_call.1']
    #allocation16 [shape = 'u8[458752]{0}', space=vmem, size = 0x70000, scoped, tag = 'input window, operand 14, single buffered']
    #allocation17 [shape = 'u8[229376]{0}', space=vmem, size = 0x38000, scoped, tag = 'input window, operand 15, single buffered']
    #allocation18 [shape = 's32[1]{0}', space=sflag, size = 0x4, scoped, tag = 'scoped memory for tpu_custom_call.1']
    #allocation19 [shape = 'u8[114688]{0}', space=vmem, size = 0x1c000, scoped, tag = 'output window, operand 0, single buffered']
    %21 = vsyncpa [#allocation6], 0
    %22 = vsyncpa [#allocation9], 0
    %23 = vsyncpa [#allocation12], 0
    %24 = vsyncpa [#allocation15], 0
    %25 = vsyncpa [#allocation18], 0
    %26 = vsyncpa [#allocation7], 0
    // Predicated region
    $region2: #{tpu_custom_call.1} parent=1 // pred_check
      _
    $region3: #{tpu_custom_call.1} parent=1 // pred_check_branch
      %28 = sbr.rel (0) target = $region5
    $region4: #{tpu_custom_call.1} parent=1 // pred_region
      _
    $region5: #{tpu_custom_call.1} parent=1 // pred_fallthru
      _
    // Predicated region
    $region6: #{tpu_custom_call.1} parent=1 // pred_check
      _
    $region7: #{tpu_custom_call.1} parent=1 // pred_check_branch
      %30 = sbr.rel (0) target = $region9
    $region8: #{tpu_custom_call.1} parent=1 // pred_region
      %s32 = ssub.s32 1536, 1536
      %33 = vsyncadd [#allocation6], %s32
      %s34 = sshll.u32 [#allocation5], 4
      %s35 = int_to_ptr.vmem [resolvable:$true] %s34
      %40 = dma.hbm_to_vmem [thread:$0]  %s1, 1536, %s35, [#allocation6], 64, 64, 4
    $region9: #{tpu_custom_call.1} parent=1 // pred_fallthru
      _
    // Predicated region
    $region10: #{tpu_custom_call.1} parent=1 // pred_check
      _
    $region11: #{tpu_custom_call.1} parent=1 // pred_check_branch
      %42 = sbr.rel (0) target = $region13
    $region12: #{tpu_custom_call.1} parent=1 // pred_region
      _
    $region13: #{tpu_custom_call.1} parent=1 // pred_fallthru
      _
    // Predicated region
    $region14: #{tpu_custom_call.1} parent=1 // pred_check
      _
    $region15: #{tpu_custom_call.1} parent=1 // pred_check_branch
      %44 = sbr.rel (0) target = $region17
    $region16: #{tpu_custom_call.1} parent=1 // pred_region
      %s46 = ssub.s32 3072, 3072
      %47 = vsyncadd [#allocation9], %s46
      %s48 = sshll.u32 [#allocation8], 4
      %s49 = int_to_ptr.vmem [resolvable:$true] %s48
      %54 = dma.hbm_to_vmem [thread:$0]  %s3, 3072, %s49, [#allocation9], 64, 64, 4
    $region17: #{tpu_custom_call.1} parent=1 // pred_fallthru
      _
    // Predicated region
    $region18: #{tpu_custom_call.1} parent=1 // pred_check
      _
    $region19: #{tpu_custom_call.1} parent=1 // pred_check_branch
      %56 = sbr.rel (0) target = $region21
    $region20: #{tpu_custom_call.1} parent=1 // pred_region
      _
    $region21: #{tpu_custom_call.1} parent=1 // pred_fallthru
      _
    // Predicated region
    $region22: #{tpu_custom_call.1} parent=1 // pred_check
      _
    $region23: #{tpu_custom_call.1} parent=1 // pred_check_branch
      %58 = sbr.rel (0) target = $region25
    $region24: #{tpu_custom_call.1} parent=1 // pred_region
      %s60 = ssub.s32 6144, 6144
      %61 = vsyncadd [#allocation9], %s60
      %s62 = sshll.u32 [#allocation10], 4
      %s63 = int_to_ptr.vmem [resolvable:$true] %s62
      %68 = dma.hbm_to_vmem [thread:$0]  %s5, 6144, %s63, [#allocation9], 128, 128, 8
    $region25: #{tpu_custom_call.1} parent=1 // pred_fallthru
      _
    // Predicated region
    $region26: #{tpu_custom_call.1} parent=1 // pred_check
      _
    $region27: #{tpu_custom_call.1} parent=1 // pred_check_branch
      %70 = sbr.rel (0) target = $region29
    $region28: #{tpu_custom_call.1} parent=1 // pred_region
      _
    $region29: #{tpu_custom_call.1} parent=1 // pred_fallthru
      _
    // Predicated region
    $region30: #{tpu_custom_call.1} parent=1 // pred_check
      _
    $region31: #{tpu_custom_call.1} parent=1 // pred_check_branch
      %72 = sbr.rel (0) target = $region33
    $region32: #{tpu_custom_call.1} parent=1 // pred_region
      %s74 = ssub.s32 6144, 6144
      %75 = vsyncadd [#allocation12], %s74
      %s76 = sshll.u32 [#allocation11], 4
      %s77 = int_to_ptr.vmem [resolvable:$true] %s76
      %82 = dma.hbm_to_vmem [thread:$0]  %s7, 6144, %s77, [#allocation12], 128, 128, 8
    $region33: #{tpu_custom_call.1} parent=1 // pred_fallthru
      _
    // Predicated region
    $region34: #{tpu_custom_call.1} parent=1 // pred_check
      _
    $region35: #{tpu_custom_call.1} parent=1 // pred_check_branch
      %84 = sbr.rel (0) target = $region37
    $region36: #{tpu_custom_call.1} parent=1 // pred_region
      _
    $region37: #{tpu_custom_call.1} parent=1 // pred_fallthru
      _
    // Predicated region
    $region38: #{tpu_custom_call.1} parent=1 // pred_check
      _
    $region39: #{tpu_custom_call.1} parent=1 // pred_check_branch
      %86 = sbr.rel (0) target = $region41
    $region40: #{tpu_custom_call.1} parent=1 // pred_region
      _
    $region41: #{tpu_custom_call.1} parent=1 // pred_fallthru
      _
    // Predicated region
    $region42: #{tpu_custom_call.1} parent=1 // pred_check
      _
    $region43: #{tpu_custom_call.1} parent=1 // pred_check_branch
      %88 = sbr.rel (0) target = $region45
    $region44: #{tpu_custom_call.1} parent=1 // pred_region
      %s90 = ssub.s32 2048, 2048
      %91 = vsyncadd [#allocation12], %s90
      %s92 = sshll.u32 [#allocation13], 4
      %s93 = int_to_ptr.vmem [resolvable:$true] %s92
      %98 = dma.hbm_to_vmem [thread:$0]  %s10, 2048, %s93, [#allocation12], 64, 64, 4
    $region45: #{tpu_custom_call.1} parent=1 // pred_fallthru
      _
    // Predicated region
    $region46: #{tpu_custom_call.1} parent=1 // pred_check
      _
    $region47: #{tpu_custom_call.1} parent=1 // pred_check_branch
      %100 = sbr.rel (0) target = $region49
    $region48: #{tpu_custom_call.1} parent=1 // pred_region
      _
    $region49: #{tpu_custom_call.1} parent=1 // pred_fallthru
      _
    // Predicated region
    $region50: #{tpu_custom_call.1} parent=1 // pred_check
      _
    $region51: #{tpu_custom_call.1} parent=1 // pred_check_branch
      %102 = sbr.rel (0) target = $region53
    $region52: #{tpu_custom_call.1} parent=1 // pred_region
      %s104 = ssub.s32 7168, 7168
      %105 = vsyncadd [#allocation15], %s104
      %s106 = sshll.u32 [#allocation14], 4
      %s107 = int_to_ptr.vmem [resolvable:$true] %s106
      %112 = dma.hbm_to_vmem [thread:$0]  %s12, 7168, %s107, [#allocation15], 448, 448, 28
    $region53: #{tpu_custom_call.1} parent=1 // pred_fallthru
      _
    // Predicated region
    $region54: #{tpu_custom_call.1} parent=1 // pred_check
      _
    $region55: #{tpu_custom_call.1} parent=1 // pred_check_branch
      %114 = sbr.rel (0) target = $region57
    $region56: #{tpu_custom_call.1} parent=1 // pred_region
      _
    $region57: #{tpu_custom_call.1} parent=1 // pred_fallthru
      _
    // Predicated region
    $region58: #{tpu_custom_call.1} parent=1 // pred_check
      _
    $region59: #{tpu_custom_call.1} parent=1 // pred_check_branch
      %116 = sbr.rel (0) target = $region61
    $region60: #{tpu_custom_call.1} parent=1 // pred_region
      %s118 = ssub.s32 14336, 14336
      %119 = vsyncadd [#allocation15], %s118
      %s120 = sshll.u32 [#allocation16], 4
      %s121 = int_to_ptr.vmem [resolvable:$true] %s120
      %126 = dma.hbm_to_vmem [thread:$0]  %s14, 14336, %s121, [#allocation15], 448, 448, 28
    $region61: #{tpu_custom_call.1} parent=1 // pred_fallthru
      _
    // Predicated region
    $region62: #{tpu_custom_call.1} parent=1 // pred_check
      _
    $region63: #{tpu_custom_call.1} parent=1 // pred_check_branch
      %128 = sbr.rel (0) target = $region65
    $region64: #{tpu_custom_call.1} parent=1 // pred_region
      %s130 = ssub.s32 7168, 7168
      %131 = vsyncadd [#allocation18], %s130
      %s132 = sshll.u32 [#allocation17], 4
      %s133 = int_to_ptr.vmem [resolvable:$true] %s132
      %138 = dma.hbm_to_vmem [thread:$0]  %s15, 7168, %s133, [#allocation18], 448, 448, 28
    $region65: #{tpu_custom_call.1} parent=1 // pred_fallthru
      _
    // Predicated region
    $region66: #{tpu_custom_call.1} parent=1 // pred_check
      _
    $region67: #{tpu_custom_call.1} parent=1 // pred_check_branch
      %140 = sbr.rel (0) target = $region69
    $region68: #{tpu_custom_call.1} parent=1 // pred_region
      %141 = dma.done [#allocation6], 1536
    $region69: #{tpu_custom_call.1} parent=1 // pred_fallthru
      _
    // Predicated region
    $region70: #{tpu_custom_call.1} parent=1 // pred_check
      _
    $region71: #{tpu_custom_call.1} parent=1 // pred_check_branch
      %143 = sbr.rel (0) target = $region73
    $region72: #{tpu_custom_call.1} parent=1 // pred_region
      %144 = dma.done [#allocation9], 3072
    $region73: #{tpu_custom_call.1} parent=1 // pred_fallthru
      _
    // Predicated region
    $region74: #{tpu_custom_call.1} parent=1 // pred_check
      _
    $region75: #{tpu_custom_call.1} parent=1 // pred_check_branch
      %146 = sbr.rel (0) target = $region77
    $region76: #{tpu_custom_call.1} parent=1 // pred_region
      %147 = dma.done [#allocation9], 6144
    $region77: #{tpu_custom_call.1} parent=1 // pred_fallthru
      _
    // Predicated region
    $region78: #{tpu_custom_call.1} parent=1 // pred_check
      _
    $region79: #{tpu_custom_call.1} parent=1 // pred_check_branch
      %149 = sbr.rel (0) target = $region81
    $region80: #{tpu_custom_call.1} parent=1 // pred_region
      %150 = dma.done [#allocation12], 6144
    $region81: #{tpu_custom_call.1} parent=1 // pred_fallthru
      _
    // Predicated region
    $region82: #{tpu_custom_call.1} parent=1 // pred_check
      _
    $region83: #{tpu_custom_call.1} parent=1 // pred_check_branch
      %152 = sbr.rel (0) target = $region85
    $region84: #{tpu_custom_call.1} parent=1 // pred_region
      %153 = dma.done [#allocation12], 2048
    $region85: #{tpu_custom_call.1} parent=1 // pred_fallthru
      _
    // Predicated region
    $region86: #{tpu_custom_call.1} parent=1 // pred_check
      _
    $region87: #{tpu_custom_call.1} parent=1 // pred_check_branch
      %155 = sbr.rel (0) target = $region89
    $region88: #{tpu_custom_call.1} parent=1 // pred_region
      %156 = dma.done [#allocation15], 7168
    $region89: #{tpu_custom_call.1} parent=1 // pred_fallthru
      _
    // Predicated region
    $region90: #{tpu_custom_call.1} parent=1 // pred_check
      _
    $region91: #{tpu_custom_call.1} parent=1 // pred_check_branch
      %158 = sbr.rel (0) target = $region93
    $region92: #{tpu_custom_call.1} parent=1 // pred_region
      %159 = dma.done [#allocation15], 14336
    $region93: #{tpu_custom_call.1} parent=1 // pred_fallthru
      _
    // Predicated region
    $region94: #{tpu_custom_call.1} parent=1 // pred_check
      _
    $region95: #{tpu_custom_call.1} parent=1 // pred_check_branch
      %161 = sbr.rel (0) target = $region97
    $region96: #{tpu_custom_call.1} parent=1 // pred_region
      %162 = dma.done [#allocation18], 7168
    $region97: #{tpu_custom_call.1} parent=1 // pred_fallthru
      _
    %v164 = vlaneseq
    %v165 = vshrl.u32 %v164, 7
    %v166 = vadd.s32 %v165, 8
    %v167 = vadd.s32 %v165, 16
    %v168 = vadd.s32 %v165, 24
    %vm169 = vcmp.lt.s32.totalorder %v165, 0
    %v170 = vsub.s32 0, %v165
    %v171 = vsel %vm169, %v170, %v165
    %v172 = vshrl.u32 %v171, 4
    %v173 = vand.u32 %v171, 15
    %v174 = vsub.s32 0, %v173
    %v175 = vsel %vm169, %v174, %v173
    %vm176 = vcmp.lt.s32.totalorder %v166, 0
    %v177 = vsub.s32 0, %v166
    %v178 = vsel %vm176, %v177, %v166
    %v179 = vshrl.u32 %v178, 4
    %v180 = vand.u32 %v178, 15
    %v181 = vsub.s32 0, %v180
    %v182 = vsel %vm176, %v181, %v180
    %vm183 = vcmp.lt.s32.totalorder %v167, 0
    %v184 = vsub.s32 0, %v167
    %v185 = vsel %vm183, %v184, %v167
    %v186 = vshrl.u32 %v185, 4
    %v187 = vand.u32 %v185, 15
    %v188 = vsub.s32 0, %v187
    %v189 = vsel %vm183, %v188, %v187
    %vm190 = vcmp.lt.s32.totalorder %v168, 0
    %v191 = vsub.s32 0, %v168
    %v192 = vsel %vm190, %v191, %v168
    %v193 = vshrl.u32 %v192, 4
    %v194 = vand.u32 %v192, 15
    %v195 = vsub.s32 0, %v194
    %v196 = vsel %vm190, %v195, %v194
    %vm197 = vcmp.ne.s32.totalorder %v175, 0
    %vm198 = vcmp.ne.s32.totalorder %v182, 0
    %vm199 = vcmp.ne.s32.totalorder %v189, 0
    %vm200 = vcmp.ne.s32.totalorder %v196, 0
    %vm201 = vcmp.lt.s32.totalorder %v175, 0
    %vm202 = vcmp.lt.s32.totalorder %v182, 0
    %vm203 = vcmp.lt.s32.totalorder %v189, 0
    %vm204 = vcmp.lt.s32.totalorder %v196, 0
    %vm205 = vmand %vm201, %vm197
    %vm206 = vmand %vm202, %vm198
    %vm207 = vmand %vm203, %vm199
    %vm208 = vmand %vm204, %vm200
    %v209 = vadd.s32 %v175, 16
    %v210 = vadd.s32 %v182, 16
    %v211 = vadd.s32 %v189, 16
    %v212 = vadd.s32 %v196, 16
    %v213 = vsel %vm205, %v209, %v175
    %v214 = vsel %vm206, %v210, %v182
    %v215 = vsel %vm207, %v211, %v189
    %v216 = vsel %vm208, %v212, %v196
    %vm217 = vcmp.ne.s32.totalorder %v213, 0
    %vm218 = vcmp.ne.s32.totalorder %v214, 0
    %vm219 = vcmp.ne.s32.totalorder %v215, 0
    %vm220 = vcmp.ne.s32.totalorder %v216, 0
    %vm221 = vcmp.ne.s32.totalorder %v213, 15
    %vm222 = vcmp.ne.s32.totalorder %v214, 15
    %vm223 = vcmp.ne.s32.totalorder %v215, 15
    %vm224 = vcmp.ne.s32.totalorder %v216, 15
    %vm225 = vcmp.lt.s32.totalorder %v165, 0
    %v226 = vsub.s32 0, %v165
    %v227 = vsel %vm225, %v226, %v165
    %v228 = vshrl.u32 %v227, 3
    %v229 = vand.u32 %v227, 7
    %v230 = vsub.s32 0, %v229
    %v231 = vsel %vm225, %v230, %v229
    %vm232 = vcmp.lt.s32.totalorder %v166, 0
    %v233 = vsub.s32 0, %v166
    %v234 = vsel %vm232, %v233, %v166
    %v235 = vshrl.u32 %v234, 3
    %v236 = vand.u32 %v234, 7
    %v237 = vsub.s32 0, %v236
    %v238 = vsel %vm232, %v237, %v236
    %vm239 = vcmp.ne.s32.totalorder %v231, 0
    %vm240 = vcmp.ne.s32.totalorder %v238, 0
    %vm241 = vcmp.lt.s32.totalorder %v231, 0
    %vm242 = vcmp.lt.s32.totalorder %v238, 0
    %vm243 = vmand %vm241, %vm239
    %vm244 = vmand %vm242, %vm240
    %v245 = vadd.s32 %v231, 8
    %v246 = vadd.s32 %v238, 8
    %v247 = vsel %vm243, %v245, %v231
    %v248 = vsel %vm244, %v246, %v238
    %vm249 = vcmp.ne.s32.totalorder %v247, 0
    %vm250 = vcmp.ne.s32.totalorder %v248, 0
    %vm251 = vcmp.ne.s32.totalorder %v247, 7
    %vm252 = vcmp.ne.s32.totalorder %v248, 7
    %v253 = vld [vmem:[%s0] sm:$0xff]
    %v254 = vld [vmem:[%s0 + $0x8] sm:$0xff]
    %v255 = vld [vmem:[%s0 + $0x10] sm:$0xff]
    %v256 = vld [vmem:[%s0 + $0x18] sm:$0xff]
    %vm257 = vcmask 523264
    %258 = vst.msk [vmem:[#allocation2 + $0x8] sm:$0xff] %vm257, %v253
    %259 = vst.msk [vmem:[#allocation2 + $0x10] sm:$0xff] %vm257, %v254
    %260 = vst.msk [vmem:[#allocation2 + $0x18] sm:$0xff] %vm257, %v255
    %261 = vst.msk [vmem:[#allocation2 + $0x20] sm:$0xff] %vm257, %v256
    %v262 = vld [vmem:[#allocation2 + $0x7] sm:$0xff]
    %v263 = vld [vmem:[#allocation2 + $0xf] sm:$0xff]
    %v264 = vld [vmem:[#allocation2 + $0x17] sm:$0xff]
    %v265 = vld [vmem:[#allocation2 + $0x1f] sm:$0xff]
    %v266 = vsel %vm217, 1, 0
    %v267 = vsel %vm218, 1, 0
    %v268 = vsel %vm219, 1, 0
    %v269 = vsel %vm220, 1, 0
    %vm270 = vcmp.eq.s32.totalorder %v266, 1
    %vm271 = vcmp.eq.s32.totalorder %v267, 1
    %vm272 = vcmp.eq.s32.totalorder %v268, 1
    %vm273 = vcmp.eq.s32.totalorder %v269, 1
    %v274 = vsel %vm270, %v262, 0.0
    %v275 = vsel %vm271, %v263, 0.0
    %v276 = vsel %vm272, %v264, 0.0
    %v277 = vsel %vm273, %v265, 0.0
    %v278 = vpack.c.bf16 %v275, %v274
    %v279 = vpack.c.bf16 %v277, %v276
    %v280 = vld [vmem:[#allocation2 + $0x8] sm:$0xff]
    %v281 = vld [vmem:[#allocation2 + $0x10] sm:$0xff]
    %v282 = vld [vmem:[#allocation2 + $0x18] sm:$0xff]
    %v283 = vld [vmem:[#allocation2 + $0x20] sm:$0xff]
    %v284 = vpack.c.bf16 %v281, %v280
    %v285 = vpack.c.bf16 %v283, %v282
    %v286 = vld [vmem:[#allocation2 + $0x9] sm:$0xff]
    %v287 = vld [vmem:[#allocation2 + $0x11] sm:$0xff]
    %v288 = vld [vmem:[#allocation2 + $0x19] sm:$0xff]
    %v289 = vld [vmem:[#allocation2 + $0x21] sm:$0xff]
    %v290 = vsel %vm221, 1, 0
    %v291 = vsel %vm222, 1, 0
    %v292 = vsel %vm223, 1, 0
    %v293 = vsel %vm224, 1, 0
    %vm294 = vcmp.eq.s32.totalorder %v290, 1
    %vm295 = vcmp.eq.s32.totalorder %v291, 1
    %vm296 = vcmp.eq.s32.totalorder %v292, 1
    %vm297 = vcmp.eq.s32.totalorder %v293, 1
    %v298 = vsel %vm294, %v286, 0.0
    %v299 = vsel %vm295, %v287, 0.0
    %v300 = vsel %vm296, %v288, 0.0
    %v301 = vsel %vm297, %v289, 0.0
    %v302 = vpack.c.bf16 %v299, %v298
    %v303 = vpack.c.bf16 %v301, %v300
    %v304 = vld [vmem:[#allocation5] sm:$0xf]
    %v305 = vld [vmem:[#allocation5 + $0x4] sm:$0xf]
    %v306 = vld [vmem:[#allocation5 + $0x8] sm:$0xf]
    %v307 = vld [vmem:[#allocation5 + $0xc] sm:$0xf]
    %v308 = vld [vmem:[#allocation5 + $0x10] sm:$0xf]
    %v309 = vld [vmem:[#allocation5 + $0x14] sm:$0xf]
    %v310 = vld [vmem:[#allocation5 + $0x18] sm:$0xf]
    %v311 = vld [vmem:[#allocation5 + $0x1c] sm:$0xf]
    %s312 = scalar_lea.vmem [#allocation5], 32
    %v313 = vld [vmem:[%s312] sm:$0xf]
    %v314 = vld [vmem:[%s312 + $0x4] sm:$0xf]
    %v315 = vld [vmem:[%s312 + $0x8] sm:$0xf]
    %v316 = vld [vmem:[%s312 + $0xc] sm:$0xf]
    %v317 = vld [vmem:[%s312 + $0x10] sm:$0xf]
    %v318 = vld [vmem:[%s312 + $0x14] sm:$0xf]
    %v319 = vld [vmem:[%s312 + $0x18] sm:$0xf]
    %v320 = vld [vmem:[%s312 + $0x1c] sm:$0xf]
    %v329 = vunpack.c.l.b16 %v313
    %v330 = vunpack.c.l.b16 %v314
    %v331 = vunpack.c.l.b16 %v315
    %v332 = vunpack.c.l.b16 %v316
    %v333 = vunpack.c.l.b16 %v317
    %v334 = vunpack.c.l.b16 %v318
    %v335 = vunpack.c.l.b16 %v319
    %v336 = vunpack.c.l.b16 %v320
    %v337 = vpack.c.b16 %v330, %v329
    %v338 = vpack.c.b16 %v332, %v331
    %v339 = vpack.c.b16 %v334, %v333
    %v340 = vpack.c.b16 %v336, %v335
    %v346 = vsel %vm257, %v284, 0
    %v349 = vsel %vm257, %v285, 0
    %351 = vmatprep.subr.bf16.mxu0 0
    %352 = vmatpush1.bf16.msra.mxu0 0
    %353 = vmatprep.subr.bf16.mxu0 0
    %354 = vmatpush1.bf16.msra.mxu0 0
    %355 = vmatprep.subr.bf16.mxu0 0
    %356 = vmatpush1.bf16.msra.mxu0 0
    %357 = vmatprep.subr.bf16.mxu0 0
    %358 = vmatpush1.bf16.msra.mxu0 0
    %359 = vmatprep.subr.bf16.mxu0 0
    %360 = vmatpush1.bf16.msra.mxu0 %v340
    %361 = vmatprep.subr.bf16.mxu0 0
    %362 = vmatpush1.bf16.msra.mxu0 %v339
    %363 = vmatprep.subr.bf16.mxu0 0
    %364 = vmatpush1.bf16.msra.mxu0 %v338
    %365 = vmatprep.subr.bf16.mxu0 0
    %366 = vmatpush1.bf16.msra.mxu0 %v337
    %367 = vmatprep.subr.bf16.mxu0 0
    %368 = vmatpush2.bf16.msra.mxu0 0
    %369 = vmatprep.subr.bf16.mxu0 0
    %370 = vmatpush2.bf16.msra.mxu0 0
    %371 = vmatprep.subr.bf16.mxu0 0
    %372 = vmatpush2.bf16.msra.mxu0 0
    %373 = vmatprep.subr.bf16.mxu0 0
    %374 = vmatpush2.bf16.msra.mxu0 0
    %375 = vmatprep.subr.bf16.mxu0 0
    %376 = vmatpush2.bf16.msra.mxu0 0
    %377 = vmatprep.subr.bf16.mxu0 0
    %378 = vmatpush2.bf16.msra.mxu0 0
    %379 = vmatprep.subr.bf16.mxu0 0
    %380 = vmatpush2.bf16.msra.mxu0 0
    %381 = vmatprep.subr.bf16.mxu0 0
    %382 = vmatpush2.bf16.msra.mxu0 0
    %383 = vmatprep.mubr.bf16.mxu0 0
    %384 = vmatmul.mubr.bf16.gmra.mxu0 %v346
    %v385 = vpop.f32.mrf.mxu0
    %v386 = vadd.f32 0.0, %v385
    %v387 = vpop.f32.mrf.mxu0
    %v388 = vpop.f32.mrf.mxu0
    %v389 = vadd.f32 0.0, %v388
    %v390 = vpop.f32.mrf.mxu0
    %391 = vmatprep.mubr.bf16.mxu0 0
    %392 = vmatmul.mubr.bf16.gmra.mxu0 %v349
    %v393 = vpop.f32.mrf.mxu0
    %v394 = vadd.f32 0.0, %v393
    %v395 = vpop.f32.mrf.mxu0
    %v396 = vpop.f32.mrf.mxu0
    %v397 = vadd.f32 0.0, %v396
    %v398 = vpop.f32.mrf.mxu0
    %399 = vdwg.mxu0
    %v408 = vunpack.c.l.b16 %v304
    %v409 = vunpack.c.l.b16 %v305
    %v410 = vunpack.c.l.b16 %v306
    %v411 = vunpack.c.l.b16 %v307
    %v412 = vunpack.c.l.b16 %v308
    %v413 = vunpack.c.l.b16 %v309
    %v414 = vunpack.c.l.b16 %v310
    %v415 = vunpack.c.l.b16 %v311
    %v416 = vpack.c.b16 %v409, %v408
    %v417 = vpack.c.b16 %v411, %v410
    %v418 = vpack.c.b16 %v413, %v412
    %v419 = vpack.c.b16 %v415, %v414
    %v425 = vsel %vm257, %v278, 0
    %v428 = vsel %vm257, %v279, 0
    %430 = vmatprep.subr.bf16.mxu0 0
    %431 = vmatpush1.bf16.msra.mxu0 0
    %432 = vmatprep.subr.bf16.mxu0 0
    %433 = vmatpush1.bf16.msra.mxu0 0
    %434 = vmatprep.subr.bf16.mxu0 0
    %435 = vmatpush1.bf16.msra.mxu0 0
    %436 = vmatprep.subr.bf16.mxu0 0
    %437 = vmatpush1.bf16.msra.mxu0 0
    %438 = vmatprep.subr.bf16.mxu0 0
    %439 = vmatpush1.bf16.msra.mxu0 %v419
    %440 = vmatprep.subr.bf16.mxu0 0
    %441 = vmatpush1.bf16.msra.mxu0 %v418
    %442 = vmatprep.subr.bf16.mxu0 0
    %443 = vmatpush1.bf16.msra.mxu0 %v417
    %444 = vmatprep.subr.bf16.mxu0 0
    %445 = vmatpush1.bf16.msra.mxu0 %v416
    %446 = vmatprep.subr.bf16.mxu0 0
    %447 = vmatpush2.bf16.msra.mxu0 0
    %448 = vmatprep.subr.bf16.mxu0 0
    %449 = vmatpush2.bf16.msra.mxu0 0
    %450 = vmatprep.subr.bf16.mxu0 0
    %451 = vmatpush2.bf16.msra.mxu0 0
    %452 = vmatprep.subr.bf16.mxu0 0
    %453 = vmatpush2.bf16.msra.mxu0 0
    %454 = vmatprep.subr.bf16.mxu0 0
    %455 = vmatpush2.bf16.msra.mxu0 0
    %456 = vmatprep.subr.bf16.mxu0 0
    %457 = vmatpush2.bf16.msra.mxu0 0
    %458 = vmatprep.subr.bf16.mxu0 0
    %459 = vmatpush2.bf16.msra.mxu0 0
    %460 = vmatprep.subr.bf16.mxu0 0
    %461 = vmatpush2.bf16.msra.mxu0 0
    %462 = vmatprep.mubr.bf16.mxu0 0
    %463 = vmatmul.mubr.bf16.gmra.mxu0 %v425
    %v464 = vpop.f32.mrf.mxu0
    %v465 = vadd.f32 %v386, %v464
    %v466 = vpop.f32.mrf.mxu0
    %v467 = vpop.f32.mrf.mxu0
    %v468 = vadd.f32 %v389, %v467
    %v469 = vpop.f32.mrf.mxu0
    %470 = vmatprep.mubr.bf16.mxu0 0
    %471 = vmatmul.mubr.bf16.gmra.mxu0 %v428
    %v472 = vpop.f32.mrf.mxu0
    %v473 = vadd.f32 %v394, %v472
    %v474 = vpop.f32.mrf.mxu0
    %v475 = vpop.f32.mrf.mxu0
    %v476 = vadd.f32 %v397, %v475
    %v477 = vpop.f32.mrf.mxu0
    %478 = vdwg.mxu0
    %s479 = scalar_lea.vmem [#allocation5], 64
    %v480 = vld [vmem:[%s479] sm:$0xf]
    %v481 = vld [vmem:[%s479 + $0x4] sm:$0xf]
    %v482 = vld [vmem:[%s479 + $0x8] sm:$0xf]
    %v483 = vld [vmem:[%s479 + $0xc] sm:$0xf]
    %v484 = vld [vmem:[%s479 + $0x10] sm:$0xf]
    %v485 = vld [vmem:[%s479 + $0x14] sm:$0xf]
    %v486 = vld [vmem:[%s479 + $0x18] sm:$0xf]
    %v487 = vld [vmem:[%s479 + $0x1c] sm:$0xf]
    %v496 = vunpack.c.l.b16 %v480
    %v497 = vunpack.c.l.b16 %v481
    %v498 = vunpack.c.l.b16 %v482
    %v499 = vunpack.c.l.b16 %v483
    %v500 = vunpack.c.l.b16 %v484
    %v501 = vunpack.c.l.b16 %v485
    %v502 = vunpack.c.l.b16 %v486
    %v503 = vunpack.c.l.b16 %v487
    %v504 = vpack.c.b16 %v497, %v496
    %v505 = vpack.c.b16 %v499, %v498
    %v506 = vpack.c.b16 %v501, %v500
    %v507 = vpack.c.b16 %v503, %v502
    %v513 = vsel %vm257, %v302, 0
    %v516 = vsel %vm257, %v303, 0
    %518 = vmatprep.subr.bf16.mxu0 0
    %519 = vmatpush1.bf16.msra.mxu0 0
    %520 = vmatprep.subr.bf16.mxu0 0
    %521 = vmatpush1.bf16.msra.mxu0 0
    %522 = vmatprep.subr.bf16.mxu0 0
    %523 = vmatpush1.bf16.msra.mxu0 0
    %524 = vmatprep.subr.bf16.mxu0 0
    %525 = vmatpush1.bf16.msra.mxu0 0
    %526 = vmatprep.subr.bf16.mxu0 0
    %527 = vmatpush1.bf16.msra.mxu0 %v507
    %528 = vmatprep.subr.bf16.mxu0 0
    %529 = vmatpush1.bf16.msra.mxu0 %v506
    %530 = vmatprep.subr.bf16.mxu0 0
    %531 = vmatpush1.bf16.msra.mxu0 %v505
    %532 = vmatprep.subr.bf16.mxu0 0
    %533 = vmatpush1.bf16.msra.mxu0 %v504
    %534 = vmatprep.subr.bf16.mxu0 0
    %535 = vmatpush2.bf16.msra.mxu0 0
    %536 = vmatprep.subr.bf16.mxu0 0
    %537 = vmatpush2.bf16.msra.mxu0 0
    %538 = vmatprep.subr.bf16.mxu0 0
    %539 = vmatpush2.bf16.msra.mxu0 0
    %540 = vmatprep.subr.bf16.mxu0 0
    %541 = vmatpush2.bf16.msra.mxu0 0
    %542 = vmatprep.subr.bf16.mxu0 0
    %543 = vmatpush2.bf16.msra.mxu0 0
    %544 = vmatprep.subr.bf16.mxu0 0
    %545 = vmatpush2.bf16.msra.mxu0 0
    %546 = vmatprep.subr.bf16.mxu0 0
    %547 = vmatpush2.bf16.msra.mxu0 0
    %548 = vmatprep.subr.bf16.mxu0 0
    %549 = vmatpush2.bf16.msra.mxu0 0
    %550 = vmatprep.mubr.bf16.mxu0 0
    %551 = vmatmul.mubr.bf16.gmra.mxu0 %v513
    %v552 = vpop.f32.mrf.mxu0
    %v553 = vadd.f32 0.0, %v552
    %v554 = vpop.f32.mrf.mxu0
    %v555 = vpop.f32.mrf.mxu0
    %v556 = vadd.f32 0.0, %v555
    %v557 = vpop.f32.mrf.mxu0
    %558 = vmatprep.mubr.bf16.mxu0 0
    %559 = vmatmul.mubr.bf16.gmra.mxu0 %v516
    %v560 = vpop.f32.mrf.mxu0
    %v561 = vadd.f32 0.0, %v560
    %v562 = vpop.f32.mrf.mxu0
    %v563 = vpop.f32.mrf.mxu0
    %v564 = vadd.f32 0.0, %v563
    %v565 = vpop.f32.mrf.mxu0
    %566 = vdwg.mxu0
    %v567 = vadd.f32 %v465, %v553
    %v568 = vadd.f32 %v468, %v556
    %v569 = vadd.f32 %v473, %v561
    %v570 = vadd.f32 %v476, %v564
    %v571 = vld [vmem:[%s2] sm:$0x1]
    %v573 = vlaneseq
    %v574 = vshrl.u32 %v573, 7
    %v575 = vsub.s32 0, %v574
    %v576 = vrot.slane %v571, %v575
    %v578 = vadd.f32 %v567, %v576
    %v579 = vadd.f32 %v568, %v576
    %v580 = vadd.f32 %v569, %v576
    %v581 = vadd.f32 %v570, %v576
    %v582 = vmax.f32 %v578, 0.0
    %v583 = vmax.f32 %v579, 0.0
    %v584 = vmax.f32 %v580, 0.0
    %v585 = vmax.f32 %v581, 0.0
    %586 = vst [vmem:[#allocation3 + $0x8] sm:$0xff] %v582
    %587 = vst [vmem:[#allocation3 + $0x10] sm:$0xff] %v583
    %588 = vst [vmem:[#allocation3 + $0x18] sm:$0xff] %v584
    %589 = vst [vmem:[#allocation3 + $0x20] sm:$0xff] %v585
    %v590 = vld [vmem:[#allocation3 + $0x7] sm:$0xff]
    %v591 = vld [vmem:[#allocation3 + $0xf] sm:$0xff]
    %v592 = vld [vmem:[#allocation3 + $0x17] sm:$0xff]
    %v593 = vld [vmem:[#allocation3 + $0x1f] sm:$0xff]
    %v594 = vsel %vm270, %v590, 0.0
    %v595 = vsel %vm271, %v591, 0.0
    %v596 = vsel %vm272, %v592, 0.0
    %v597 = vsel %vm273, %v593, 0.0
    %v598 = vpack.c.bf16 %v595, %v594
    %v599 = vpack.c.bf16 %v597, %v596
    %v600 = vld [vmem:[#allocation3 + $0x8] sm:$0xff]
    %v601 = vld [vmem:[#allocation3 + $0x10] sm:$0xff]
    %v602 = vld [vmem:[#allocation3 + $0x18] sm:$0xff]
    %v603 = vld [vmem:[#allocation3 + $0x20] sm:$0xff]
    %v604 = vpack.c.bf16 %v601, %v600
    %v605 = vpack.c.bf16 %v603, %v602
    %v606 = vld [vmem:[#allocation3 + $0x9] sm:$0xff]
    %v607 = vld [vmem:[#allocation3 + $0x11] sm:$0xff]
    %v608 = vld [vmem:[#allocation3 + $0x19] sm:$0xff]
    %v609 = vld [vmem:[#allocation3 + $0x21] sm:$0xff]
    %v610 = vsel %vm294, %v606, 0.0
    %v611 = vsel %vm295, %v607, 0.0
    %v612 = vsel %vm296, %v608, 0.0
    %v613 = vsel %vm297, %v609, 0.0
    %v614 = vpack.c.bf16 %v611, %v610
    %v615 = vpack.c.bf16 %v613, %v612
    %v616 = vld [vmem:[#allocation8] sm:$0xf]
    %v617 = vld [vmem:[#allocation8 + $0x4] sm:$0xf]
    %v618 = vld [vmem:[#allocation8 + $0x8] sm:$0xf]
    %v619 = vld [vmem:[#allocation8 + $0xc] sm:$0xf]
    %v620 = vld [vmem:[#allocation8 + $0x10] sm:$0xf]
    %v621 = vld [vmem:[#allocation8 + $0x14] sm:$0xf]
    %v622 = vld [vmem:[#allocation8 + $0x18] sm:$0xf]
    %v623 = vld [vmem:[#allocation8 + $0x1c] sm:$0xf]
    %v624 = vld [vmem:[#allocation8 + $0x20] sm:$0xf]
    %v625 = vld [vmem:[#allocation8 + $0x24] sm:$0xf]
    %v626 = vld [vmem:[#allocation8 + $0x28] sm:$0xf]
    %v627 = vld [vmem:[#allocation8 + $0x2c] sm:$0xf]
    %v628 = vld [vmem:[#allocation8 + $0x30] sm:$0xf]
    %v629 = vld [vmem:[#allocation8 + $0x34] sm:$0xf]
    %v630 = vld [vmem:[#allocation8 + $0x38] sm:$0xf]
    %v631 = vld [vmem:[#allocation8 + $0x3c] sm:$0xf]
    %s632 = scalar_lea.vmem [#allocation8], 64
    %v633 = vld [vmem:[%s632] sm:$0xf]
    %v634 = vld [vmem:[%s632 + $0x4] sm:$0xf]
    %v635 = vld [vmem:[%s632 + $0x8] sm:$0xf]
    %v636 = vld [vmem:[%s632 + $0xc] sm:$0xf]
    %v637 = vld [vmem:[%s632 + $0x10] sm:$0xf]
    %v638 = vld [vmem:[%s632 + $0x14] sm:$0xf]
    %v639 = vld [vmem:[%s632 + $0x18] sm:$0xf]
    %v640 = vld [vmem:[%s632 + $0x1c] sm:$0xf]
    %v641 = vld [vmem:[%s632 + $0x20] sm:$0xf]
    %v642 = vld [vmem:[%s632 + $0x24] sm:$0xf]
    %v643 = vld [vmem:[%s632 + $0x28] sm:$0xf]
    %v644 = vld [vmem:[%s632 + $0x2c] sm:$0xf]
    %v645 = vld [vmem:[%s632 + $0x30] sm:$0xf]
    %v646 = vld [vmem:[%s632 + $0x34] sm:$0xf]
    %v647 = vld [vmem:[%s632 + $0x38] sm:$0xf]
    %v648 = vld [vmem:[%s632 + $0x3c] sm:$0xf]
    %v665 = vunpack.c.l.b16 %v633
    %v666 = vunpack.c.l.b16 %v634
    %v667 = vunpack.c.l.b16 %v635
    %v668 = vunpack.c.l.b16 %v636
    %v669 = vunpack.c.l.b16 %v637
    %v670 = vunpack.c.l.b16 %v638
    %v671 = vunpack.c.l.b16 %v639
    %v672 = vunpack.c.l.b16 %v640
    %v673 = vunpack.c.l.b16 %v641
    %v674 = vunpack.c.l.b16 %v642
    %v675 = vunpack.c.l.b16 %v643
    %v676 = vunpack.c.l.b16 %v644
    %v677 = vunpack.c.l.b16 %v645
    %v678 = vunpack.c.l.b16 %v646
    %v679 = vunpack.c.l.b16 %v647
    %v680 = vunpack.c.l.b16 %v648
    %v681 = vpack.c.b16 %v666, %v665
    %v682 = vpack.c.b16 %v668, %v667
    %v683 = vpack.c.b16 %v670, %v669
    %v684 = vpack.c.b16 %v672, %v671
    %v685 = vpack.c.b16 %v674, %v673
    %v686 = vpack.c.b16 %v676, %v675
    %v687 = vpack.c.b16 %v678, %v677
    %v688 = vpack.c.b16 %v680, %v679
    %697 = vmatprep.subr.bf16.mxu0 0
    %698 = vmatpush1.bf16.msra.mxu0 %v688
    %699 = vmatprep.subr.bf16.mxu0 0
    %700 = vmatpush1.bf16.msra.mxu0 %v687
    %701 = vmatprep.subr.bf16.mxu0 0
    %702 = vmatpush1.bf16.msra.mxu0 %v686
    %703 = vmatprep.subr.bf16.mxu0 0
    %704 = vmatpush1.bf16.msra.mxu0 %v685
    %705 = vmatprep.subr.bf16.mxu0 0
    %706 = vmatpush1.bf16.msra.mxu0 %v684
    %707 = vmatprep.subr.bf16.mxu0 0
    %708 = vmatpush1.bf16.msra.mxu0 %v683
    %709 = vmatprep.subr.bf16.mxu0 0
    %710 = vmatpush1.bf16.msra.mxu0 %v682
    %711 = vmatprep.subr.bf16.mxu0 0
    %712 = vmatpush1.bf16.msra.mxu0 %v681
    %713 = vmatprep.subr.bf16.mxu0 0
    %714 = vmatpush2.bf16.msra.mxu0 0
    %715 = vmatprep.subr.bf16.mxu0 0
    %716 = vmatpush2.bf16.msra.mxu0 0
    %717 = vmatprep.subr.bf16.mxu0 0
    %718 = vmatpush2.bf16.msra.mxu0 0
    %719 = vmatprep.subr.bf16.mxu0 0
    %720 = vmatpush2.bf16.msra.mxu0 0
    %721 = vmatprep.subr.bf16.mxu0 0
    %722 = vmatpush2.bf16.msra.mxu0 0
    %723 = vmatprep.subr.bf16.mxu0 0
    %724 = vmatpush2.bf16.msra.mxu0 0
    %725 = vmatprep.subr.bf16.mxu0 0
    %726 = vmatpush2.bf16.msra.mxu0 0
    %727 = vmatprep.subr.bf16.mxu0 0
    %728 = vmatpush2.bf16.msra.mxu0 0
    %729 = vmatprep.mubr.bf16.mxu0 0
    %730 = vmatmul.mubr.bf16.gmra.mxu0 %v604
    %v731 = vpop.f32.mrf.mxu0
    %v732 = vadd.f32 0.0, %v731
    %v733 = vpop.f32.mrf.mxu0
    %v734 = vpop.f32.mrf.mxu0
    %v735 = vadd.f32 0.0, %v734
    %v736 = vpop.f32.mrf.mxu0
    %737 = vmatprep.mubr.bf16.mxu0 0
    %738 = vmatmul.mubr.bf16.gmra.mxu0 %v605
    %v739 = vpop.f32.mrf.mxu0
    %v740 = vadd.f32 0.0, %v739
    %v741 = vpop.f32.mrf.mxu0
    %v742 = vpop.f32.mrf.mxu0
    %v743 = vadd.f32 0.0, %v742
    %v744 = vpop.f32.mrf.mxu0
    %745 = vdwg.mxu0
    %v762 = vunpack.c.l.b16 %v616
    %v763 = vunpack.c.l.b16 %v617
    %v764 = vunpack.c.l.b16 %v618
    %v765 = vunpack.c.l.b16 %v619
    %v766 = vunpack.c.l.b16 %v620
    %v767 = vunpack.c.l.b16 %v621
    %v768 = vunpack.c.l.b16 %v622
    %v769 = vunpack.c.l.b16 %v623
    %v770 = vunpack.c.l.b16 %v624
    %v771 = vunpack.c.l.b16 %v625
    %v772 = vunpack.c.l.b16 %v626
    %v773 = vunpack.c.l.b16 %v627
    %v774 = vunpack.c.l.b16 %v628
    %v775 = vunpack.c.l.b16 %v629
    %v776 = vunpack.c.l.b16 %v630
    %v777 = vunpack.c.l.b16 %v631
    %v778 = vpack.c.b16 %v763, %v762
    %v779 = vpack.c.b16 %v765, %v764
    %v780 = vpack.c.b16 %v767, %v766
    %v781 = vpack.c.b16 %v769, %v768
    %v782 = vpack.c.b16 %v771, %v770
    %v783 = vpack.c.b16 %v773, %v772
    %v784 = vpack.c.b16 %v775, %v774
    %v785 = vpack.c.b16 %v777, %v776
    %794 = vmatprep.subr.bf16.mxu0 0
    %795 = vmatpush1.bf16.msra.mxu0 %v785
    %796 = vmatprep.subr.bf16.mxu0 0
    %797 = vmatpush1.bf16.msra.mxu0 %v784
    %798 = vmatprep.subr.bf16.mxu0 0
    %799 = vmatpush1.bf16.msra.mxu0 %v783
    %800 = vmatprep.subr.bf16.mxu0 0
    %801 = vmatpush1.bf16.msra.mxu0 %v782
    %802 = vmatprep.subr.bf16.mxu0 0
    %803 = vmatpush1.bf16.msra.mxu0 %v781
    %804 = vmatprep.subr.bf16.mxu0 0
    %805 = vmatpush1.bf16.msra.mxu0 %v780
    %806 = vmatprep.subr.bf16.mxu0 0
    %807 = vmatpush1.bf16.msra.mxu0 %v779
    %808 = vmatprep.subr.bf16.mxu0 0
    %809 = vmatpush1.bf16.msra.mxu0 %v778
    %810 = vmatprep.subr.bf16.mxu0 0
    %811 = vmatpush2.bf16.msra.mxu0 0
    %812 = vmatprep.subr.bf16.mxu0 0
    %813 = vmatpush2.bf16.msra.mxu0 0
    %814 = vmatprep.subr.bf16.mxu0 0
    %815 = vmatpush2.bf16.msra.mxu0 0
    %816 = vmatprep.subr.bf16.mxu0 0
    %817 = vmatpush2.bf16.msra.mxu0 0
    %818 = vmatprep.subr.bf16.mxu0 0
    %819 = vmatpush2.bf16.msra.mxu0 0
    %820 = vmatprep.subr.bf16.mxu0 0
    %821 = vmatpush2.bf16.msra.mxu0 0
    %822 = vmatprep.subr.bf16.mxu0 0
    %823 = vmatpush2.bf16.msra.mxu0 0
    %824 = vmatprep.subr.bf16.mxu0 0
    %825 = vmatpush2.bf16.msra.mxu0 0
    %826 = vmatprep.mubr.bf16.mxu0 0
    %827 = vmatmul.mubr.bf16.gmra.mxu0 %v598
    %v828 = vpop.f32.mrf.mxu0
    %v829 = vadd.f32 %v732, %v828
    %v830 = vpop.f32.mrf.mxu0
    %v831 = vpop.f32.mrf.mxu0
    %v832 = vadd.f32 %v735, %v831
    %v833 = vpop.f32.mrf.mxu0
    %834 = vmatprep.mubr.bf16.mxu0 0
    %835 = vmatmul.mubr.bf16.gmra.mxu0 %v599
    %v836 = vpop.f32.mrf.mxu0
    %v837 = vadd.f32 %v740, %v836
    %v838 = vpop.f32.mrf.mxu0
    %v839 = vpop.f32.mrf.mxu0
    %v840 = vadd.f32 %v743, %v839
    %v841 = vpop.f32.mrf.mxu0
    %842 = vdwg.mxu0
    %s843 = scalar_lea.vmem [#allocation8], 128
    %v844 = vld [vmem:[%s843] sm:$0xf]
    %v845 = vld [vmem:[%s843 + $0x4] sm:$0xf]
    %v846 = vld [vmem:[%s843 + $0x8] sm:$0xf]
    %v847 = vld [vmem:[%s843 + $0xc] sm:$0xf]
    %v848 = vld [vmem:[%s843 + $0x10] sm:$0xf]
    %v849 = vld [vmem:[%s843 + $0x14] sm:$0xf]
    %v850 = vld [vmem:[%s843 + $0x18] sm:$0xf]
    %v851 = vld [vmem:[%s843 + $0x1c] sm:$0xf]
    %v852 = vld [vmem:[%s843 + $0x20] sm:$0xf]
    %v853 = vld [vmem:[%s843 + $0x24] sm:$0xf]
    %v854 = vld [vmem:[%s843 + $0x28] sm:$0xf]
    %v855 = vld [vmem:[%s843 + $0x2c] sm:$0xf]
    %v856 = vld [vmem:[%s843 + $0x30] sm:$0xf]
    %v857 = vld [vmem:[%s843 + $0x34] sm:$0xf]
    %v858 = vld [vmem:[%s843 + $0x38] sm:$0xf]
    %v859 = vld [vmem:[%s843 + $0x3c] sm:$0xf]
    %v876 = vunpack.c.l.b16 %v844
    %v877 = vunpack.c.l.b16 %v845
    %v878 = vunpack.c.l.b16 %v846
    %v879 = vunpack.c.l.b16 %v847
    %v880 = vunpack.c.l.b16 %v848
    %v881 = vunpack.c.l.b16 %v849
    %v882 = vunpack.c.l.b16 %v850
    %v883 = vunpack.c.l.b16 %v851
    %v884 = vunpack.c.l.b16 %v852
    %v885 = vunpack.c.l.b16 %v853
    %v886 = vunpack.c.l.b16 %v854
    %v887 = vunpack.c.l.b16 %v855
    %v888 = vunpack.c.l.b16 %v856
    %v889 = vunpack.c.l.b16 %v857
    %v890 = vunpack.c.l.b16 %v858
    %v891 = vunpack.c.l.b16 %v859
    %v892 = vpack.c.b16 %v877, %v876
    %v893 = vpack.c.b16 %v879, %v878
    %v894 = vpack.c.b16 %v881, %v880
    %v895 = vpack.c.b16 %v883, %v882
    %v896 = vpack.c.b16 %v885, %v884
    %v897 = vpack.c.b16 %v887, %v886
    %v898 = vpack.c.b16 %v889, %v888
    %v899 = vpack.c.b16 %v891, %v890
    %908 = vmatprep.subr.bf16.mxu0 0
    %909 = vmatpush1.bf16.msra.mxu0 %v899
    %910 = vmatprep.subr.bf16.mxu0 0
    %911 = vmatpush1.bf16.msra.mxu0 %v898
    %912 = vmatprep.subr.bf16.mxu0 0
    %913 = vmatpush1.bf16.msra.mxu0 %v897
    %914 = vmatprep.subr.bf16.mxu0 0
    %915 = vmatpush1.bf16.msra.mxu0 %v896
    %916 = vmatprep.subr.bf16.mxu0 0
    %917 = vmatpush1.bf16.msra.mxu0 %v895
    %918 = vmatprep.subr.bf16.mxu0 0
    %919 = vmatpush1.bf16.msra.mxu0 %v894
    %920 = vmatprep.subr.bf16.mxu0 0
    %921 = vmatpush1.bf16.msra.mxu0 %v893
    %922 = vmatprep.subr.bf16.mxu0 0
    %923 = vmatpush1.bf16.msra.mxu0 %v892
    %924 = vmatprep.subr.bf16.mxu0 0
    %925 = vmatpush2.bf16.msra.mxu0 0
    %926 = vmatprep.subr.bf16.mxu0 0
    %927 = vmatpush2.bf16.msra.mxu0 0
    %928 = vmatprep.subr.bf16.mxu0 0
    %929 = vmatpush2.bf16.msra.mxu0 0
    %930 = vmatprep.subr.bf16.mxu0 0
    %931 = vmatpush2.bf16.msra.mxu0 0
    %932 = vmatprep.subr.bf16.mxu0 0
    %933 = vmatpush2.bf16.msra.mxu0 0
    %934 = vmatprep.subr.bf16.mxu0 0
    %935 = vmatpush2.bf16.msra.mxu0 0
    %936 = vmatprep.subr.bf16.mxu0 0
    %937 = vmatpush2.bf16.msra.mxu0 0
    %938 = vmatprep.subr.bf16.mxu0 0
    %939 = vmatpush2.bf16.msra.mxu0 0
    %940 = vmatprep.mubr.bf16.mxu0 0
    %941 = vmatmul.mubr.bf16.gmra.mxu0 %v614
    %v942 = vpop.f32.mrf.mxu0
    %v943 = vadd.f32 0.0, %v942
    %v944 = vpop.f32.mrf.mxu0
    %v945 = vpop.f32.mrf.mxu0
    %v946 = vadd.f32 0.0, %v945
    %v947 = vpop.f32.mrf.mxu0
    %948 = vmatprep.mubr.bf16.mxu0 0
    %949 = vmatmul.mubr.bf16.gmra.mxu0 %v615
    %v950 = vpop.f32.mrf.mxu0
    %v951 = vadd.f32 0.0, %v950
    %v952 = vpop.f32.mrf.mxu0
    %v953 = vpop.f32.mrf.mxu0
    %v954 = vadd.f32 0.0, %v953
    %v955 = vpop.f32.mrf.mxu0
    %956 = vdwg.mxu0
    %v957 = vadd.f32 %v829, %v943
    %v958 = vadd.f32 %v832, %v946
    %v959 = vadd.f32 %v837, %v951
    %v960 = vadd.f32 %v840, %v954
    %v961 = vld [vmem:[%s4] sm:$0x1]
    %v963 = vlaneseq
    %v964 = vshrl.u32 %v963, 7
    %v965 = vsub.s32 0, %v964
    %v966 = vrot.slane %v961, %v965
    %v968 = vadd.f32 %v957, %v966
    %v969 = vadd.f32 %v958, %v966
    %v970 = vadd.f32 %v959, %v966
    %v971 = vadd.f32 %v960, %v966
    %v972 = vadd.f32 %v968, %v582
    %v973 = vadd.f32 %v969, %v583
    %v974 = vadd.f32 %v970, %v584
    %v975 = vadd.f32 %v971, %v585
    %v976 = vmax.f32 %v972, 0.0
    %v977 = vmax.f32 %v973, 0.0
    %v978 = vmax.f32 %v974, 0.0
    %v979 = vmax.f32 %v975, 0.0
    %980 = vst [vmem:[#allocation3 + $0x8] sm:$0xff] %v976
    %981 = vst [vmem:[#allocation3 + $0x10] sm:$0xff] %v977
    %982 = vst [vmem:[#allocation3 + $0x18] sm:$0xff] %v978
    %983 = vst [vmem:[#allocation3 + $0x20] sm:$0xff] %v979
    %v984 = vld [vmem:[#allocation3 + $0x7] sm:$0xff]
    %v985 = vld [vmem:[#allocation3 + $0xf] sm:$0xff]
    %v986 = vld [vmem:[#allocation3 + $0x17] sm:$0xff]
    %v987 = vld [vmem:[#allocation3 + $0x1f] sm:$0xff]
    %v988 = vsel %vm270, %v984, 0.0
    %v989 = vsel %vm271, %v985, 0.0
    %v990 = vsel %vm272, %v986, 0.0
    %v991 = vsel %vm273, %v987, 0.0
    %v992 = vpack.c.bf16 %v989, %v988
    %v993 = vpack.c.bf16 %v991, %v990
    %v994 = vld [vmem:[#allocation3 + $0x8] sm:$0xff]
    %v995 = vld [vmem:[#allocation3 + $0x10] sm:$0xff]
    %v996 = vld [vmem:[#allocation3 + $0x18] sm:$0xff]
    %v997 = vld [vmem:[#allocation3 + $0x20] sm:$0xff]
    %v998 = vpack.c.bf16 %v995, %v994
    %v999 = vpack.c.bf16 %v997, %v996
    %v1000 = vld [vmem:[#allocation3 + $0x9] sm:$0xff]
    %v1001 = vld [vmem:[#allocation3 + $0x11] sm:$0xff]
    %v1002 = vld [vmem:[#allocation3 + $0x19] sm:$0xff]
    %v1003 = vld [vmem:[#allocation3 + $0x21] sm:$0xff]
    %v1004 = vsel %vm294, %v1000, 0.0
    %v1005 = vsel %vm295, %v1001, 0.0
    %v1006 = vsel %vm296, %v1002, 0.0
    %v1007 = vsel %vm297, %v1003, 0.0
    %v1008 = vpack.c.bf16 %v1005, %v1004
    %v1009 = vpack.c.bf16 %v1007, %v1006
    %v1010 = vld [vmem:[#allocation10] sm:$0xff]
    %v1011 = vld [vmem:[#allocation10 + $0x8] sm:$0xff]
    %v1012 = vld [vmem:[#allocation10 + $0x10] sm:$0xff]
    %v1013 = vld [vmem:[#allocation10 + $0x18] sm:$0xff]
    %v1014 = vld [vmem:[#allocation10 + $0x20] sm:$0xff]
    %v1015 = vld [vmem:[#allocation10 + $0x28] sm:$0xff]
    %v1016 = vld [vmem:[#allocation10 + $0x30] sm:$0xff]
    %v1017 = vld [vmem:[#allocation10 + $0x38] sm:$0xff]
    %v1018 = vld [vmem:[#allocation10 + $0x40] sm:$0xff]
    %v1019 = vld [vmem:[#allocation10 + $0x48] sm:$0xff]
    %v1020 = vld [vmem:[#allocation10 + $0x50] sm:$0xff]
    %v1021 = vld [vmem:[#allocation10 + $0x58] sm:$0xff]
    %v1022 = vld [vmem:[#allocation10 + $0x60] sm:$0xff]
    %v1023 = vld [vmem:[#allocation10 + $0x68] sm:$0xff]
    %v1024 = vld [vmem:[#allocation10 + $0x70] sm:$0xff]
    %v1025 = vld [vmem:[#allocation10 + $0x78] sm:$0xff]
    %s1026 = scalar_lea.vmem [#allocation10], 128
    %v1027 = vld [vmem:[%s1026] sm:$0xff]
    %v1028 = vld [vmem:[%s1026 + $0x8] sm:$0xff]
    %v1029 = vld [vmem:[%s1026 + $0x10] sm:$0xff]
    %v1030 = vld [vmem:[%s1026 + $0x18] sm:$0xff]
    %v1031 = vld [vmem:[%s1026 + $0x20] sm:$0xff]
    %v1032 = vld [vmem:[%s1026 + $0x28] sm:$0xff]
    %v1033 = vld [vmem:[%s1026 + $0x30] sm:$0xff]
    %v1034 = vld [vmem:[%s1026 + $0x38] sm:$0xff]
    %v1035 = vld [vmem:[%s1026 + $0x40] sm:$0xff]
    %v1036 = vld [vmem:[%s1026 + $0x48] sm:$0xff]
    %v1037 = vld [vmem:[%s1026 + $0x50] sm:$0xff]
    %v1038 = vld [vmem:[%s1026 + $0x58] sm:$0xff]
    %v1039 = vld [vmem:[%s1026 + $0x60] sm:$0xff]
    %v1040 = vld [vmem:[%s1026 + $0x68] sm:$0xff]
    %v1041 = vld [vmem:[%s1026 + $0x70] sm:$0xff]
    %v1042 = vld [vmem:[%s1026 + $0x78] sm:$0xff]
    %v1059 = vunpack.c.l.b16 %v1027
    %v1060 = vunpack.c.h.b16 %v1027
    %v1061 = vunpack.c.l.b16 %v1028
    %v1062 = vunpack.c.h.b16 %v1028
    %v1063 = vunpack.c.l.b16 %v1029
    %v1064 = vunpack.c.h.b16 %v1029
    %v1065 = vunpack.c.l.b16 %v1030
    %v1066 = vunpack.c.h.b16 %v1030
    %v1067 = vunpack.c.l.b16 %v1031
    %v1068 = vunpack.c.h.b16 %v1031
    %v1069 = vunpack.c.l.b16 %v1032
    %v1070 = vunpack.c.h.b16 %v1032
    %v1071 = vunpack.c.l.b16 %v1033
    %v1072 = vunpack.c.h.b16 %v1033
    %v1073 = vunpack.c.l.b16 %v1034
    %v1074 = vunpack.c.h.b16 %v1034
    %v1075 = vunpack.c.l.b16 %v1035
    %v1076 = vunpack.c.h.b16 %v1035
    %v1077 = vunpack.c.l.b16 %v1036
    %v1078 = vunpack.c.h.b16 %v1036
    %v1079 = vunpack.c.l.b16 %v1037
    %v1080 = vunpack.c.h.b16 %v1037
    %v1081 = vunpack.c.l.b16 %v1038
    %v1082 = vunpack.c.h.b16 %v1038
    %v1083 = vunpack.c.l.b16 %v1039
    %v1084 = vunpack.c.h.b16 %v1039
    %v1085 = vunpack.c.l.b16 %v1040
    %v1086 = vunpack.c.h.b16 %v1040
    %v1087 = vunpack.c.l.b16 %v1041
    %v1088 = vunpack.c.h.b16 %v1041
    %v1089 = vunpack.c.l.b16 %v1042
    %v1090 = vunpack.c.h.b16 %v1042
    %v1091 = vpack.c.b16 %v1061, %v1059
    %v1092 = vpack.c.b16 %v1062, %v1060
    %v1093 = vpack.c.b16 %v1065, %v1063
    %v1094 = vpack.c.b16 %v1066, %v1064
    %v1095 = vpack.c.b16 %v1069, %v1067
    %v1096 = vpack.c.b16 %v1070, %v1068
    %v1097 = vpack.c.b16 %v1073, %v1071
    %v1098 = vpack.c.b16 %v1074, %v1072
    %v1099 = vpack.c.b16 %v1077, %v1075
    %v1100 = vpack.c.b16 %v1078, %v1076
    %v1101 = vpack.c.b16 %v1081, %v1079
    %v1102 = vpack.c.b16 %v1082, %v1080
    %v1103 = vpack.c.b16 %v1085, %v1083
    %v1104 = vpack.c.b16 %v1086, %v1084
    %v1105 = vpack.c.b16 %v1089, %v1087
    %v1106 = vpack.c.b16 %v1090, %v1088
    %1123 = vmatprep.subr.bf16.mxu0 %v1106
    %1124 = vmatpush1.bf16.msra.mxu0 %v1105
    %1125 = vmatprep.subr.bf16.mxu0 %v1104
    %1126 = vmatpush1.bf16.msra.mxu0 %v1103
    %1127 = vmatprep.subr.bf16.mxu0 %v1102
    %1128 = vmatpush1.bf16.msra.mxu0 %v1101
    %1129 = vmatprep.subr.bf16.mxu0 %v1100
    %1130 = vmatpush1.bf16.msra.mxu0 %v1099
    %1131 = vmatprep.subr.bf16.mxu0 %v1098
    %1132 = vmatpush1.bf16.msra.mxu0 %v1097
    %1133 = vmatprep.subr.bf16.mxu0 %v1096
    %1134 = vmatpush1.bf16.msra.mxu0 %v1095
    %1135 = vmatprep.subr.bf16.mxu0 %v1094
    %1136 = vmatpush1.bf16.msra.mxu0 %v1093
    %1137 = vmatprep.subr.bf16.mxu0 %v1092
    %1138 = vmatpush1.bf16.msra.mxu0 %v1091
    %1139 = vmatprep.subr.bf16.mxu0 0
    %1140 = vmatpush2.bf16.msra.mxu0 0
    %1141 = vmatprep.subr.bf16.mxu0 0
    %1142 = vmatpush2.bf16.msra.mxu0 0
    %1143 = vmatprep.subr.bf16.mxu0 0
    %1144 = vmatpush2.bf16.msra.mxu0 0
    %1145 = vmatprep.subr.bf16.mxu0 0
    %1146 = vmatpush2.bf16.msra.mxu0 0
    %1147 = vmatprep.subr.bf16.mxu0 0
    %1148 = vmatpush2.bf16.msra.mxu0 0
    %1149 = vmatprep.subr.bf16.mxu0 0
    %1150 = vmatpush2.bf16.msra.mxu0 0
    %1151 = vmatprep.subr.bf16.mxu0 0
    %1152 = vmatpush2.bf16.msra.mxu0 0
    %1153 = vmatprep.subr.bf16.mxu0 0
    %1154 = vmatpush2.bf16.msra.mxu0 0
    %1155 = vmatprep.mubr.bf16.mxu0 0
    %1156 = vmatmul.mubr.bf16.gmra.mxu0 %v998
    %v1157 = vpop.f32.mrf.mxu0
    %v1158 = vadd.f32 0.0, %v1157
    %v1159 = vpop.f32.mrf.mxu0
    %v1160 = vadd.f32 0.0, %v1159
    %v1161 = vpop.f32.mrf.mxu0
    %v1162 = vadd.f32 0.0, %v1161
    %v1163 = vpop.f32.mrf.mxu0
    %v1164 = vadd.f32 0.0, %v1163
    %1165 = vmatprep.mubr.bf16.mxu0 0
    %1166 = vmatmul.mubr.bf16.gmra.mxu0 %v999
    %v1167 = vpop.f32.mrf.mxu0
    %v1168 = vadd.f32 0.0, %v1167
    %v1169 = vpop.f32.mrf.mxu0
    %v1170 = vadd.f32 0.0, %v1169
    %v1171 = vpop.f32.mrf.mxu0
    %v1172 = vadd.f32 0.0, %v1171
    %v1173 = vpop.f32.mrf.mxu0
    %v1174 = vadd.f32 0.0, %v1173
    %1175 = vdwg.mxu0
    %v1192 = vunpack.c.l.b16 %v1010
    %v1193 = vunpack.c.h.b16 %v1010
    %v1194 = vunpack.c.l.b16 %v1011
    %v1195 = vunpack.c.h.b16 %v1011
    %v1196 = vunpack.c.l.b16 %v1012
    %v1197 = vunpack.c.h.b16 %v1012
    %v1198 = vunpack.c.l.b16 %v1013
    %v1199 = vunpack.c.h.b16 %v1013
    %v1200 = vunpack.c.l.b16 %v1014
    %v1201 = vunpack.c.h.b16 %v1014
    %v1202 = vunpack.c.l.b16 %v1015
    %v1203 = vunpack.c.h.b16 %v1015
    %v1204 = vunpack.c.l.b16 %v1016
    %v1205 = vunpack.c.h.b16 %v1016
    %v1206 = vunpack.c.l.b16 %v1017
    %v1207 = vunpack.c.h.b16 %v1017
    %v1208 = vunpack.c.l.b16 %v1018
    %v1209 = vunpack.c.h.b16 %v1018
    %v1210 = vunpack.c.l.b16 %v1019
    %v1211 = vunpack.c.h.b16 %v1019
    %v1212 = vunpack.c.l.b16 %v1020
    %v1213 = vunpack.c.h.b16 %v1020
    %v1214 = vunpack.c.l.b16 %v1021
    %v1215 = vunpack.c.h.b16 %v1021
    %v1216 = vunpack.c.l.b16 %v1022
    %v1217 = vunpack.c.h.b16 %v1022
    %v1218 = vunpack.c.l.b16 %v1023
    %v1219 = vunpack.c.h.b16 %v1023
    %v1220 = vunpack.c.l.b16 %v1024
    %v1221 = vunpack.c.h.b16 %v1024
    %v1222 = vunpack.c.l.b16 %v1025
    %v1223 = vunpack.c.h.b16 %v1025
    %v1224 = vpack.c.b16 %v1194, %v1192
    %v1225 = vpack.c.b16 %v1195, %v1193
    %v1226 = vpack.c.b16 %v1198, %v1196
    %v1227 = vpack.c.b16 %v1199, %v1197
    %v1228 = vpack.c.b16 %v1202, %v1200
    %v1229 = vpack.c.b16 %v1203, %v1201
    %v1230 = vpack.c.b16 %v1206, %v1204
    %v1231 = vpack.c.b16 %v1207, %v1205
    %v1232 = vpack.c.b16 %v1210, %v1208
    %v1233 = vpack.c.b16 %v1211, %v1209
    %v1234 = vpack.c.b16 %v1214, %v1212
    %v1235 = vpack.c.b16 %v1215, %v1213
    %v1236 = vpack.c.b16 %v1218, %v1216
    %v1237 = vpack.c.b16 %v1219, %v1217
    %v1238 = vpack.c.b16 %v1222, %v1220
    %v1239 = vpack.c.b16 %v1223, %v1221
    %1256 = vmatprep.subr.bf16.mxu0 %v1239
    %1257 = vmatpush1.bf16.msra.mxu0 %v1238
    %1258 = vmatprep.subr.bf16.mxu0 %v1237
    %1259 = vmatpush1.bf16.msra.mxu0 %v1236
    %1260 = vmatprep.subr.bf16.mxu0 %v1235
    %1261 = vmatpush1.bf16.msra.mxu0 %v1234
    %1262 = vmatprep.subr.bf16.mxu0 %v1233
    %1263 = vmatpush1.bf16.msra.mxu0 %v1232
    %1264 = vmatprep.subr.bf16.mxu0 %v1231
    %1265 = vmatpush1.bf16.msra.mxu0 %v1230
    %1266 = vmatprep.subr.bf16.mxu0 %v1229
    %1267 = vmatpush1.bf16.msra.mxu0 %v1228
    %1268 = vmatprep.subr.bf16.mxu0 %v1227
    %1269 = vmatpush1.bf16.msra.mxu0 %v1226
    %1270 = vmatprep.subr.bf16.mxu0 %v1225
    %1271 = vmatpush1.bf16.msra.mxu0 %v1224
    %1272 = vmatprep.subr.bf16.mxu0 0
    %1273 = vmatpush2.bf16.msra.mxu0 0
    %1274 = vmatprep.subr.bf16.mxu0 0
    %1275 = vmatpush2.bf16.msra.mxu0 0
    %1276 = vmatprep.subr.bf16.mxu0 0
    %1277 = vmatpush2.bf16.msra.mxu0 0
    %1278 = vmatprep.subr.bf16.mxu0 0
    %1279 = vmatpush2.bf16.msra.mxu0 0
    %1280 = vmatprep.subr.bf16.mxu0 0
    %1281 = vmatpush2.bf16.msra.mxu0 0
    %1282 = vmatprep.subr.bf16.mxu0 0
    %1283 = vmatpush2.bf16.msra.mxu0 0
    %1284 = vmatprep.subr.bf16.mxu0 0
    %1285 = vmatpush2.bf16.msra.mxu0 0
    %1286 = vmatprep.subr.bf16.mxu0 0
    %1287 = vmatpush2.bf16.msra.mxu0 0
    %1288 = vmatprep.mubr.bf16.mxu0 0
    %1289 = vmatmul.mubr.bf16.gmra.mxu0 %v992
    %v1290 = vpop.f32.mrf.mxu0
    %v1291 = vadd.f32 %v1158, %v1290
    %v1292 = vpop.f32.mrf.mxu0
    %v1293 = vadd.f32 %v1160, %v1292
    %v1294 = vpop.f32.mrf.mxu0
    %v1295 = vadd.f32 %v1162, %v1294
    %v1296 = vpop.f32.mrf.mxu0
    %v1297 = vadd.f32 %v1164, %v1296
    %1298 = vmatprep.mubr.bf16.mxu0 0
    %1299 = vmatmul.mubr.bf16.gmra.mxu0 %v993
    %v1300 = vpop.f32.mrf.mxu0
    %v1301 = vadd.f32 %v1168, %v1300
    %v1302 = vpop.f32.mrf.mxu0
    %v1303 = vadd.f32 %v1170, %v1302
    %v1304 = vpop.f32.mrf.mxu0
    %v1305 = vadd.f32 %v1172, %v1304
    %v1306 = vpop.f32.mrf.mxu0
    %v1307 = vadd.f32 %v1174, %v1306
    %1308 = vdwg.mxu0
    %s1309 = scalar_lea.vmem [#allocation10], 256
    %v1310 = vld [vmem:[%s1309] sm:$0xff]
    %v1311 = vld [vmem:[%s1309 + $0x8] sm:$0xff]
    %v1312 = vld [vmem:[%s1309 + $0x10] sm:$0xff]
    %v1313 = vld [vmem:[%s1309 + $0x18] sm:$0xff]
    %v1314 = vld [vmem:[%s1309 + $0x20] sm:$0xff]
    %v1315 = vld [vmem:[%s1309 + $0x28] sm:$0xff]
    %v1316 = vld [vmem:[%s1309 + $0x30] sm:$0xff]
    %v1317 = vld [vmem:[%s1309 + $0x38] sm:$0xff]
    %v1318 = vld [vmem:[%s1309 + $0x40] sm:$0xff]
    %v1319 = vld [vmem:[%s1309 + $0x48] sm:$0xff]
    %v1320 = vld [vmem:[%s1309 + $0x50] sm:$0xff]
    %v1321 = vld [vmem:[%s1309 + $0x58] sm:$0xff]
    %v1322 = vld [vmem:[%s1309 + $0x60] sm:$0xff]
    %v1323 = vld [vmem:[%s1309 + $0x68] sm:$0xff]
    %v1324 = vld [vmem:[%s1309 + $0x70] sm:$0xff]
    %v1325 = vld [vmem:[%s1309 + $0x78] sm:$0xff]
    %v1342 = vunpack.c.l.b16 %v1310
    %v1343 = vunpack.c.h.b16 %v1310
    %v1344 = vunpack.c.l.b16 %v1311
    %v1345 = vunpack.c.h.b16 %v1311
    %v1346 = vunpack.c.l.b16 %v1312
    %v1347 = vunpack.c.h.b16 %v1312
    %v1348 = vunpack.c.l.b16 %v1313
    %v1349 = vunpack.c.h.b16 %v1313
    %v1350 = vunpack.c.l.b16 %v1314
    %v1351 = vunpack.c.h.b16 %v1314
    %v1352 = vunpack.c.l.b16 %v1315
    %v1353 = vunpack.c.h.b16 %v1315
    %v1354 = vunpack.c.l.b16 %v1316
    %v1355 = vunpack.c.h.b16 %v1316
    %v1356 = vunpack.c.l.b16 %v1317
    %v1357 = vunpack.c.h.b16 %v1317
    %v1358 = vunpack.c.l.b16 %v1318
    %v1359 = vunpack.c.h.b16 %v1318
    %v1360 = vunpack.c.l.b16 %v1319
    %v1361 = vunpack.c.h.b16 %v1319
    %v1362 = vunpack.c.l.b16 %v1320
    %v1363 = vunpack.c.h.b16 %v1320
    %v1364 = vunpack.c.l.b16 %v1321
    %v1365 = vunpack.c.h.b16 %v1321
    %v1366 = vunpack.c.l.b16 %v1322
    %v1367 = vunpack.c.h.b16 %v1322
    %v1368 = vunpack.c.l.b16 %v1323
    %v1369 = vunpack.c.h.b16 %v1323
    %v1370 = vunpack.c.l.b16 %v1324
    %v1371 = vunpack.c.h.b16 %v1324
    %v1372 = vunpack.c.l.b16 %v1325
    %v1373 = vunpack.c.h.b16 %v1325
    %v1374 = vpack.c.b16 %v1344, %v1342
    %v1375 = vpack.c.b16 %v1345, %v1343
    %v1376 = vpack.c.b16 %v1348, %v1346
    %v1377 = vpack.c.b16 %v1349, %v1347
    %v1378 = vpack.c.b16 %v1352, %v1350
    %v1379 = vpack.c.b16 %v1353, %v1351
    %v1380 = vpack.c.b16 %v1356, %v1354
    %v1381 = vpack.c.b16 %v1357, %v1355
    %v1382 = vpack.c.b16 %v1360, %v1358
    %v1383 = vpack.c.b16 %v1361, %v1359
    %v1384 = vpack.c.b16 %v1364, %v1362
    %v1385 = vpack.c.b16 %v1365, %v1363
    %v1386 = vpack.c.b16 %v1368, %v1366
    %v1387 = vpack.c.b16 %v1369, %v1367
    %v1388 = vpack.c.b16 %v1372, %v1370
    %v1389 = vpack.c.b16 %v1373, %v1371
    %1406 = vmatprep.subr.bf16.mxu0 %v1389
    %1407 = vmatpush1.bf16.msra.mxu0 %v1388
    %1408 = vmatprep.subr.bf16.mxu0 %v1387
    %1409 = vmatpush1.bf16.msra.mxu0 %v1386
    %1410 = vmatprep.subr.bf16.mxu0 %v1385
    %1411 = vmatpush1.bf16.msra.mxu0 %v1384
    %1412 = vmatprep.subr.bf16.mxu0 %v1383
    %1413 = vmatpush1.bf16.msra.mxu0 %v1382
    %1414 = vmatprep.subr.bf16.mxu0 %v1381
    %1415 = vmatpush1.bf16.msra.mxu0 %v1380
    %1416 = vmatprep.subr.bf16.mxu0 %v1379
    %1417 = vmatpush1.bf16.msra.mxu0 %v1378
    %1418 = vmatprep.subr.bf16.mxu0 %v1377
    %1419 = vmatpush1.bf16.msra.mxu0 %v1376
    %1420 = vmatprep.subr.bf16.mxu0 %v1375
    %1421 = vmatpush1.bf16.msra.mxu0 %v1374
    %1422 = vmatprep.subr.bf16.mxu0 0
    %1423 = vmatpush2.bf16.msra.mxu0 0
    %1424 = vmatprep.subr.bf16.mxu0 0
    %1425 = vmatpush2.bf16.msra.mxu0 0
    %1426 = vmatprep.subr.bf16.mxu0 0
    %1427 = vmatpush2.bf16.msra.mxu0 0
    %1428 = vmatprep.subr.bf16.mxu0 0
    %1429 = vmatpush2.bf16.msra.mxu0 0
    %1430 = vmatprep.subr.bf16.mxu0 0
    %1431 = vmatpush2.bf16.msra.mxu0 0
    %1432 = vmatprep.subr.bf16.mxu0 0
    %1433 = vmatpush2.bf16.msra.mxu0 0
    %1434 = vmatprep.subr.bf16.mxu0 0
    %1435 = vmatpush2.bf16.msra.mxu0 0
    %1436 = vmatprep.subr.bf16.mxu0 0
    %1437 = vmatpush2.bf16.msra.mxu0 0
    %1438 = vmatprep.mubr.bf16.mxu0 0
    %1439 = vmatmul.mubr.bf16.gmra.mxu0 %v1008
    %v1440 = vpop.f32.mrf.mxu0
    %v1441 = vadd.f32 0.0, %v1440
    %v1442 = vpop.f32.mrf.mxu0
    %v1443 = vadd.f32 0.0, %v1442
    %v1444 = vpop.f32.mrf.mxu0
    %v1445 = vadd.f32 0.0, %v1444
    %v1446 = vpop.f32.mrf.mxu0
    %v1447 = vadd.f32 0.0, %v1446
    %1448 = vmatprep.mubr.bf16.mxu0 0
    %1449 = vmatmul.mubr.bf16.gmra.mxu0 %v1009
    %v1450 = vpop.f32.mrf.mxu0
    %v1451 = vadd.f32 0.0, %v1450
    %v1452 = vpop.f32.mrf.mxu0
    %v1453 = vadd.f32 0.0, %v1452
    %v1454 = vpop.f32.mrf.mxu0
    %v1455 = vadd.f32 0.0, %v1454
    %v1456 = vpop.f32.mrf.mxu0
    %v1457 = vadd.f32 0.0, %v1456
    %1458 = vdwg.mxu0
    %v1459 = vadd.f32 %v1291, %v1441
    %v1460 = vadd.f32 %v1293, %v1443
    %v1461 = vadd.f32 %v1295, %v1445
    %v1462 = vadd.f32 %v1297, %v1447
    %v1463 = vadd.f32 %v1301, %v1451
    %v1464 = vadd.f32 %v1303, %v1453
    %v1465 = vadd.f32 %v1305, %v1455
    %v1466 = vadd.f32 %v1307, %v1457
    %v1467 = vld [vmem:[%s6] sm:$0x3]
    %v1469 = vlaneseq
    %v1470 = vshrl.u32 %v1469, 7
    %v1471 = vsub.s32 0, %v1470
    %v1472 = vrot.slane %v1467, %v1471
    %v1473 = vlaneseq
    %v1474 = vshrl.u32 %v1473, 7
    %v1475 = vsub.s32 1, %v1474
    %v1476 = vrot.slane %v1467, %v1475
    %v1479 = vadd.f32 %v1459, %v1472
    %v1480 = vadd.f32 %v1460, %v1476
    %v1481 = vadd.f32 %v1461, %v1472
    %v1482 = vadd.f32 %v1462, %v1476
    %v1483 = vadd.f32 %v1463, %v1472
    %v1484 = vadd.f32 %v1464, %v1476
    %v1485 = vadd.f32 %v1465, %v1472
    %v1486 = vadd.f32 %v1466, %v1476
    %v1487 = vmax.f32 %v1479, 0.0
    %v1488 = vmax.f32 %v1480, 0.0
    %v1489 = vmax.f32 %v1481, 0.0
    %v1490 = vmax.f32 %v1482, 0.0
    %v1491 = vmax.f32 %v1483, 0.0
    %v1492 = vmax.f32 %v1484, 0.0
    %v1493 = vmax.f32 %v1485, 0.0
    %v1494 = vmax.f32 %v1486, 0.0
    %v1495 = vld [vmem:[%s9] sm:$0xf]
    %v1496 = vld [vmem:[%s9 + $0x4] sm:$0xf]
    %v1497 = vpack.c.bf16 %v1489, %v1487
    %v1498 = vpack.c.bf16 %v1490, %v1488
    %v1499 = vpack.c.bf16 %v1493, %v1491
    %v1500 = vpack.c.bf16 %v1494, %v1492
    %v1503 = vunpack.c.l.b16 %v1495
    %v1504 = vunpack.c.l.b16 %v1496
    %v1505 = vpack.c.b16 %v1504, %v1503
    %vm1506 = vcmask 261120
    %v1508 = vsel %vm1506, %v1505, 0
    %1510 = vmatprep.subr.bf16.mxu0 0
    %1511 = vmatpush1.bf16.msra.mxu0 0
    %1512 = vmatprep.subr.bf16.mxu0 0
    %1513 = vmatpush1.bf16.msra.mxu0 0
    %1514 = vmatprep.subr.bf16.mxu0 0
    %1515 = vmatpush1.bf16.msra.mxu0 0
    %1516 = vmatprep.subr.bf16.mxu0 0
    %1517 = vmatpush1.bf16.msra.mxu0 0
    %1518 = vmatprep.subr.bf16.mxu0 0
    %1519 = vmatpush1.bf16.msra.mxu0 0
    %1520 = vmatprep.subr.bf16.mxu0 0
    %1521 = vmatpush1.bf16.msra.mxu0 0
    %1522 = vmatprep.subr.bf16.mxu0 %v1500
    %1523 = vmatpush1.bf16.msra.mxu0 %v1499
    %1524 = vmatprep.subr.bf16.mxu0 %v1498
    %1525 = vmatpush1.bf16.msra.mxu0 %v1497
    %1526 = vmatprep.subr.bf16.mxu0 0
    %1527 = vmatpush2.bf16.msra.mxu0 0
    %1528 = vmatprep.subr.bf16.mxu0 0
    %1529 = vmatpush2.bf16.msra.mxu0 0
    %1530 = vmatprep.subr.bf16.mxu0 0
    %1531 = vmatpush2.bf16.msra.mxu0 0
    %1532 = vmatprep.subr.bf16.mxu0 0
    %1533 = vmatpush2.bf16.msra.mxu0 0
    %1534 = vmatprep.subr.bf16.mxu0 0
    %1535 = vmatpush2.bf16.msra.mxu0 0
    %1536 = vmatprep.subr.bf16.mxu0 0
    %1537 = vmatpush2.bf16.msra.mxu0 0
    %1538 = vmatprep.subr.bf16.mxu0 0
    %1539 = vmatpush2.bf16.msra.mxu0 0
    %1540 = vmatprep.subr.bf16.mxu0 0
    %1541 = vmatpush2.bf16.msra.mxu0 0
    %1542 = vmatprep.mubr.bf16.mxu0 0
    %1543 = vmatmul.mubr.bf16.gmra.mxu0 %v1508
    %v1544 = vpop.f32.mrf.mxu0
    %v1545 = vadd.f32 0.0, %v1544
    %v1546 = vpop.f32.mrf.mxu0
    %v1547 = vadd.f32 0.0, %v1546
    %v1548 = vpop.f32.mrf.mxu0
    %v1549 = vadd.f32 0.0, %v1548
    %v1550 = vpop.f32.mrf.mxu0
    %v1551 = vadd.f32 0.0, %v1550
    %1552 = vdwg.mxu0
    %v1553 = vpack.c.bf16 %v1549, %v1545
    %v1554 = vpack.c.bf16 %v1551, %v1547
    %v1555 = vld [vmem:[#allocation13] sm:$0xf]
    %v1556 = vld [vmem:[#allocation13 + $0x4] sm:$0xf]
    %v1557 = vld [vmem:[#allocation13 + $0x8] sm:$0xf]
    %v1558 = vld [vmem:[#allocation13 + $0xc] sm:$0xf]
    %v1559 = vld [vmem:[#allocation13 + $0x10] sm:$0xf]
    %v1560 = vld [vmem:[#allocation13 + $0x14] sm:$0xf]
    %v1561 = vld [vmem:[#allocation13 + $0x18] sm:$0xf]
    %v1562 = vld [vmem:[#allocation13 + $0x1c] sm:$0xf]
    %v1563 = vld [vmem:[#allocation13 + $0x20] sm:$0xf]
    %v1564 = vld [vmem:[#allocation13 + $0x24] sm:$0xf]
    %v1565 = vld [vmem:[#allocation13 + $0x28] sm:$0xf]
    %v1566 = vld [vmem:[#allocation13 + $0x2c] sm:$0xf]
    %v1567 = vld [vmem:[#allocation13 + $0x30] sm:$0xf]
    %v1568 = vld [vmem:[#allocation13 + $0x34] sm:$0xf]
    %v1569 = vld [vmem:[#allocation13 + $0x38] sm:$0xf]
    %v1570 = vld [vmem:[#allocation13 + $0x3c] sm:$0xf]
    %v1571 = vld [vmem:[#allocation13 + $0x40] sm:$0xf]
    %v1572 = vld [vmem:[#allocation13 + $0x44] sm:$0xf]
    %v1573 = vld [vmem:[#allocation13 + $0x48] sm:$0xf]
    %v1574 = vld [vmem:[#allocation13 + $0x4c] sm:$0xf]
    %v1575 = vld [vmem:[#allocation13 + $0x50] sm:$0xf]
    %v1576 = vld [vmem:[#allocation13 + $0x54] sm:$0xf]
    %v1577 = vld [vmem:[#allocation13 + $0x58] sm:$0xf]
    %v1578 = vld [vmem:[#allocation13 + $0x5c] sm:$0xf]
    %v1579 = vld [vmem:[#allocation13 + $0x60] sm:$0xf]
    %v1580 = vld [vmem:[#allocation13 + $0x64] sm:$0xf]
    %v1581 = vld [vmem:[#allocation13 + $0x68] sm:$0xf]
    %v1582 = vld [vmem:[#allocation13 + $0x6c] sm:$0xf]
    %v1583 = vld [vmem:[#allocation13 + $0x70] sm:$0xf]
    %v1584 = vld [vmem:[#allocation13 + $0x74] sm:$0xf]
    %v1585 = vld [vmem:[#allocation13 + $0x78] sm:$0xf]
    %v1586 = vld [vmem:[#allocation13 + $0x7c] sm:$0xf]
    %v1619 = vunpack.c.l.b16 %v1555
    %v1620 = vunpack.c.l.b16 %v1556
    %v1621 = vunpack.c.l.b16 %v1557
    %v1622 = vunpack.c.l.b16 %v1558
    %v1623 = vunpack.c.l.b16 %v1559
    %v1624 = vunpack.c.l.b16 %v1560
    %v1625 = vunpack.c.l.b16 %v1561
    %v1626 = vunpack.c.l.b16 %v1562
    %v1627 = vunpack.c.l.b16 %v1563
    %v1628 = vunpack.c.l.b16 %v1564
    %v1629 = vunpack.c.l.b16 %v1565
    %v1630 = vunpack.c.l.b16 %v1566
    %v1631 = vunpack.c.l.b16 %v1567
    %v1632 = vunpack.c.l.b16 %v1568
    %v1633 = vunpack.c.l.b16 %v1569
    %v1634 = vunpack.c.l.b16 %v1570
    %v1635 = vunpack.c.l.b16 %v1571
    %v1636 = vunpack.c.l.b16 %v1572
    %v1637 = vunpack.c.l.b16 %v1573
    %v1638 = vunpack.c.l.b16 %v1574
    %v1639 = vunpack.c.l.b16 %v1575
    %v1640 = vunpack.c.l.b16 %v1576
    %v1641 = vunpack.c.l.b16 %v1577
    %v1642 = vunpack.c.l.b16 %v1578
    %v1643 = vunpack.c.l.b16 %v1579
    %v1644 = vunpack.c.l.b16 %v1580
    %v1645 = vunpack.c.l.b16 %v1581
    %v1646 = vunpack.c.l.b16 %v1582
    %v1647 = vunpack.c.l.b16 %v1583
    %v1648 = vunpack.c.l.b16 %v1584
    %v1649 = vunpack.c.l.b16 %v1585
    %v1650 = vunpack.c.l.b16 %v1586
    %v1651 = vpack.c.b16 %v1620, %v1619
    %v1652 = vpack.c.b16 %v1622, %v1621
    %v1653 = vpack.c.b16 %v1624, %v1623
    %v1654 = vpack.c.b16 %v1626, %v1625
    %v1655 = vpack.c.b16 %v1628, %v1627
    %v1656 = vpack.c.b16 %v1630, %v1629
    %v1657 = vpack.c.b16 %v1632, %v1631
    %v1658 = vpack.c.b16 %v1634, %v1633
    %v1659 = vpack.c.b16 %v1636, %v1635
    %v1660 = vpack.c.b16 %v1638, %v1637
    %v1661 = vpack.c.b16 %v1640, %v1639
    %v1662 = vpack.c.b16 %v1642, %v1641
    %v1663 = vpack.c.b16 %v1644, %v1643
    %v1664 = vpack.c.b16 %v1646, %v1645
    %v1665 = vpack.c.b16 %v1648, %v1647
    %v1666 = vpack.c.b16 %v1650, %v1649
    %1683 = vmatprep.subr.bf16.mxu0 0
    %1684 = vmatpush1.bf16.msra.mxu0 %v1658
    %1685 = vmatprep.subr.bf16.mxu0 0
    %1686 = vmatpush1.bf16.msra.mxu0 %v1657
    %1687 = vmatprep.subr.bf16.mxu0 0
    %1688 = vmatpush1.bf16.msra.mxu0 %v1656
    %1689 = vmatprep.subr.bf16.mxu0 0
    %1690 = vmatpush1.bf16.msra.mxu0 %v1655
    %1691 = vmatprep.subr.bf16.mxu0 0
    %1692 = vmatpush1.bf16.msra.mxu0 %v1654
    %1693 = vmatprep.subr.bf16.mxu0 0
    %1694 = vmatpush1.bf16.msra.mxu0 %v1653
    %1695 = vmatprep.subr.bf16.mxu0 0
    %1696 = vmatpush1.bf16.msra.mxu0 %v1652
    %1697 = vmatprep.subr.bf16.mxu0 0
    %1698 = vmatpush1.bf16.msra.mxu0 %v1651
    %1699 = vmatprep.subr.bf16.mxu0 0
    %1700 = vmatpush2.bf16.msra.mxu0 %v1666
    %1701 = vmatprep.subr.bf16.mxu0 0
    %1702 = vmatpush2.bf16.msra.mxu0 %v1665
    %1703 = vmatprep.subr.bf16.mxu0 0
    %1704 = vmatpush2.bf16.msra.mxu0 %v1664
    %1705 = vmatprep.subr.bf16.mxu0 0
    %1706 = vmatpush2.bf16.msra.mxu0 %v1663
    %1707 = vmatprep.subr.bf16.mxu0 0
    %1708 = vmatpush2.bf16.msra.mxu0 %v1662
    %1709 = vmatprep.subr.bf16.mxu0 0
    %1710 = vmatpush2.bf16.msra.mxu0 %v1661
    %1711 = vmatprep.subr.bf16.mxu0 0
    %1712 = vmatpush2.bf16.msra.mxu0 %v1660
    %1713 = vmatprep.subr.bf16.mxu0 0
    %1714 = vmatpush2.bf16.msra.mxu0 %v1659
    %1715 = vmatprep.mubr.bf16.mxu0 %v1554
    %1716 = vmatmul.mubr.bf16.gmra.mxu0 %v1553
    %v1717 = vpop.f32.mrf.mxu0
    %v1718 = vadd.f32 0.0, %v1717
    %v1719 = vpop.f32.mrf.mxu0
    %v1720 = vpop.f32.mrf.mxu0
    %v1721 = vadd.f32 0.0, %v1720
    %v1722 = vpop.f32.mrf.mxu0
    %1723 = vdwg.mxu0
    %1724 = vst [vmem:[#allocation4 + $0x8] sm:$0xff] %v1718
    %1725 = vst [vmem:[#allocation4 + $0x10] sm:$0xff] %v1721
    %v1726 = vld [vmem:[#allocation4 + $0x7] sm:$0xff]
    %v1727 = vld [vmem:[#allocation4 + $0xf] sm:$0xff]
    %v1728 = vsel %vm249, 1, 0
    %v1729 = vsel %vm250, 1, 0
    %vm1730 = vcmp.eq.s32.totalorder %v1728, 1
    %vm1731 = vcmp.eq.s32.totalorder %v1729, 1
    %v1732 = vsel %vm1730, %v1726, 0.0
    %v1733 = vsel %vm1731, %v1727, 0.0
    %v1734 = vpack.c.bf16 %v1733, %v1732
    %v1735 = vld [vmem:[#allocation4 + $0x8] sm:$0xff]
    %v1736 = vld [vmem:[#allocation4 + $0x10] sm:$0xff]
    %v1737 = vpack.c.bf16 %v1736, %v1735
    %v1738 = vld [vmem:[#allocation4 + $0x9] sm:$0xff]
    %v1739 = vld [vmem:[#allocation4 + $0x11] sm:$0xff]
    %v1740 = vsel %vm251, 1, 0
    %v1741 = vsel %vm252, 1, 0
    %vm1742 = vcmp.eq.s32.totalorder %v1740, 1
    %vm1743 = vcmp.eq.s32.totalorder %v1741, 1
    %v1744 = vsel %vm1742, %v1738, 0.0
    %v1745 = vsel %vm1743, %v1739, 0.0
    %v1746 = vpack.c.bf16 %v1745, %v1744
    %v1747 = vld [vmem:[#allocation11] sm:$0xff]
    %v1748 = vld [vmem:[#allocation11 + $0x8] sm:$0xff]
    %v1749 = vld [vmem:[#allocation11 + $0x10] sm:$0xff]
    %v1750 = vld [vmem:[#allocation11 + $0x18] sm:$0xff]
    %v1751 = vld [vmem:[#allocation11 + $0x20] sm:$0xff]
    %v1752 = vld [vmem:[#allocation11 + $0x28] sm:$0xff]
    %v1753 = vld [vmem:[#allocation11 + $0x30] sm:$0xff]
    %v1754 = vld [vmem:[#allocation11 + $0x38] sm:$0xff]
    %v1755 = vld [vmem:[#allocation11 + $0x40] sm:$0xff]
    %v1756 = vld [vmem:[#allocation11 + $0x48] sm:$0xff]
    %v1757 = vld [vmem:[#allocation11 + $0x50] sm:$0xff]
    %v1758 = vld [vmem:[#allocation11 + $0x58] sm:$0xff]
    %v1759 = vld [vmem:[#allocation11 + $0x60] sm:$0xff]
    %v1760 = vld [vmem:[#allocation11 + $0x68] sm:$0xff]
    %v1761 = vld [vmem:[#allocation11 + $0x70] sm:$0xff]
    %v1762 = vld [vmem:[#allocation11 + $0x78] sm:$0xff]
    %s1763 = scalar_lea.vmem [#allocation11], 128
    %v1764 = vld [vmem:[%s1763] sm:$0xff]
    %v1765 = vld [vmem:[%s1763 + $0x8] sm:$0xff]
    %v1766 = vld [vmem:[%s1763 + $0x10] sm:$0xff]
    %v1767 = vld [vmem:[%s1763 + $0x18] sm:$0xff]
    %v1768 = vld [vmem:[%s1763 + $0x20] sm:$0xff]
    %v1769 = vld [vmem:[%s1763 + $0x28] sm:$0xff]
    %v1770 = vld [vmem:[%s1763 + $0x30] sm:$0xff]
    %v1771 = vld [vmem:[%s1763 + $0x38] sm:$0xff]
    %v1772 = vld [vmem:[%s1763 + $0x40] sm:$0xff]
    %v1773 = vld [vmem:[%s1763 + $0x48] sm:$0xff]
    %v1774 = vld [vmem:[%s1763 + $0x50] sm:$0xff]
    %v1775 = vld [vmem:[%s1763 + $0x58] sm:$0xff]
    %v1776 = vld [vmem:[%s1763 + $0x60] sm:$0xff]
    %v1777 = vld [vmem:[%s1763 + $0x68] sm:$0xff]
    %v1778 = vld [vmem:[%s1763 + $0x70] sm:$0xff]
    %v1779 = vld [vmem:[%s1763 + $0x78] sm:$0xff]
    %v1796 = vunpack.c.l.b16 %v1764
    %v1797 = vunpack.c.h.b16 %v1764
    %v1798 = vunpack.c.l.b16 %v1765
    %v1799 = vunpack.c.h.b16 %v1765
    %v1800 = vunpack.c.l.b16 %v1766
    %v1801 = vunpack.c.h.b16 %v1766
    %v1802 = vunpack.c.l.b16 %v1767
    %v1803 = vunpack.c.h.b16 %v1767
    %v1804 = vunpack.c.l.b16 %v1768
    %v1805 = vunpack.c.h.b16 %v1768
    %v1806 = vunpack.c.l.b16 %v1769
    %v1807 = vunpack.c.h.b16 %v1769
    %v1808 = vunpack.c.l.b16 %v1770
    %v1809 = vunpack.c.h.b16 %v1770
    %v1810 = vunpack.c.l.b16 %v1771
    %v1811 = vunpack.c.h.b16 %v1771
    %v1812 = vunpack.c.l.b16 %v1772
    %v1813 = vunpack.c.h.b16 %v1772
    %v1814 = vunpack.c.l.b16 %v1773
    %v1815 = vunpack.c.h.b16 %v1773
    %v1816 = vunpack.c.l.b16 %v1774
    %v1817 = vunpack.c.h.b16 %v1774
    %v1818 = vunpack.c.l.b16 %v1775
    %v1819 = vunpack.c.h.b16 %v1775
    %v1820 = vunpack.c.l.b16 %v1776
    %v1821 = vunpack.c.h.b16 %v1776
    %v1822 = vunpack.c.l.b16 %v1777
    %v1823 = vunpack.c.h.b16 %v1777
    %v1824 = vunpack.c.l.b16 %v1778
    %v1825 = vunpack.c.h.b16 %v1778
    %v1826 = vunpack.c.l.b16 %v1779
    %v1827 = vunpack.c.h.b16 %v1779
    %v1828 = vpack.c.b16 %v1798, %v1796
    %v1829 = vpack.c.b16 %v1799, %v1797
    %v1830 = vpack.c.b16 %v1802, %v1800
    %v1831 = vpack.c.b16 %v1803, %v1801
    %v1832 = vpack.c.b16 %v1806, %v1804
    %v1833 = vpack.c.b16 %v1807, %v1805
    %v1834 = vpack.c.b16 %v1810, %v1808
    %v1835 = vpack.c.b16 %v1811, %v1809
    %v1836 = vpack.c.b16 %v1814, %v1812
    %v1837 = vpack.c.b16 %v1815, %v1813
    %v1838 = vpack.c.b16 %v1818, %v1816
    %v1839 = vpack.c.b16 %v1819, %v1817
    %v1840 = vpack.c.b16 %v1822, %v1820
    %v1841 = vpack.c.b16 %v1823, %v1821
    %v1842 = vpack.c.b16 %v1826, %v1824
    %v1843 = vpack.c.b16 %v1827, %v1825
    %1860 = vmatprep.subr.bf16.mxu0 %v1843
    %1861 = vmatpush1.bf16.msra.mxu0 %v1842
    %1862 = vmatprep.subr.bf16.mxu0 %v1841
    %1863 = vmatpush1.bf16.msra.mxu0 %v1840
    %1864 = vmatprep.subr.bf16.mxu0 %v1839
    %1865 = vmatpush1.bf16.msra.mxu0 %v1838
    %1866 = vmatprep.subr.bf16.mxu0 %v1837
    %1867 = vmatpush1.bf16.msra.mxu0 %v1836
    %1868 = vmatprep.subr.bf16.mxu0 %v1835
    %1869 = vmatpush1.bf16.msra.mxu0 %v1834
    %1870 = vmatprep.subr.bf16.mxu0 %v1833
    %1871 = vmatpush1.bf16.msra.mxu0 %v1832
    %1872 = vmatprep.subr.bf16.mxu0 %v1831
    %1873 = vmatpush1.bf16.msra.mxu0 %v1830
    %1874 = vmatprep.subr.bf16.mxu0 %v1829
    %1875 = vmatpush1.bf16.msra.mxu0 %v1828
    %1876 = vmatprep.subr.bf16.mxu0 0
    %1877 = vmatpush2.bf16.msra.mxu0 0
    %1878 = vmatprep.subr.bf16.mxu0 0
    %1879 = vmatpush2.bf16.msra.mxu0 0
    %1880 = vmatprep.subr.bf16.mxu0 0
    %1881 = vmatpush2.bf16.msra.mxu0 0
    %1882 = vmatprep.subr.bf16.mxu0 0
    %1883 = vmatpush2.bf16.msra.mxu0 0
    %1884 = vmatprep.subr.bf16.mxu0 0
    %1885 = vmatpush2.bf16.msra.mxu0 0
    %1886 = vmatprep.subr.bf16.mxu0 0
    %1887 = vmatpush2.bf16.msra.mxu0 0
    %1888 = vmatprep.subr.bf16.mxu0 0
    %1889 = vmatpush2.bf16.msra.mxu0 0
    %1890 = vmatprep.subr.bf16.mxu0 0
    %1891 = vmatpush2.bf16.msra.mxu0 0
    %1892 = vmatprep.mubr.bf16.mxu0 0
    %1893 = vmatmul.mubr.bf16.gmra.mxu0 %v1737
    %v1894 = vpop.f32.mrf.mxu0
    %v1895 = vadd.f32 0.0, %v1894
    %v1896 = vpop.f32.mrf.mxu0
    %v1897 = vadd.f32 0.0, %v1896
    %v1898 = vpop.f32.mrf.mxu0
    %v1899 = vadd.f32 0.0, %v1898
    %v1900 = vpop.f32.mrf.mxu0
    %v1901 = vadd.f32 0.0, %v1900
    %1902 = vdwg.mxu0
    %v1919 = vunpack.c.l.b16 %v1747
    %v1920 = vunpack.c.h.b16 %v1747
    %v1921 = vunpack.c.l.b16 %v1748
    %v1922 = vunpack.c.h.b16 %v1748
    %v1923 = vunpack.c.l.b16 %v1749
    %v1924 = vunpack.c.h.b16 %v1749
    %v1925 = vunpack.c.l.b16 %v1750
    %v1926 = vunpack.c.h.b16 %v1750
    %v1927 = vunpack.c.l.b16 %v1751
    %v1928 = vunpack.c.h.b16 %v1751
    %v1929 = vunpack.c.l.b16 %v1752
    %v1930 = vunpack.c.h.b16 %v1752
    %v1931 = vunpack.c.l.b16 %v1753
    %v1932 = vunpack.c.h.b16 %v1753
    %v1933 = vunpack.c.l.b16 %v1754
    %v1934 = vunpack.c.h.b16 %v1754
    %v1935 = vunpack.c.l.b16 %v1755
    %v1936 = vunpack.c.h.b16 %v1755
    %v1937 = vunpack.c.l.b16 %v1756
    %v1938 = vunpack.c.h.b16 %v1756
    %v1939 = vunpack.c.l.b16 %v1757
    %v1940 = vunpack.c.h.b16 %v1757
    %v1941 = vunpack.c.l.b16 %v1758
    %v1942 = vunpack.c.h.b16 %v1758
    %v1943 = vunpack.c.l.b16 %v1759
    %v1944 = vunpack.c.h.b16 %v1759
    %v1945 = vunpack.c.l.b16 %v1760
    %v1946 = vunpack.c.h.b16 %v1760
    %v1947 = vunpack.c.l.b16 %v1761
    %v1948 = vunpack.c.h.b16 %v1761
    %v1949 = vunpack.c.l.b16 %v1762
    %v1950 = vunpack.c.h.b16 %v1762
    %v1951 = vpack.c.b16 %v1921, %v1919
    %v1952 = vpack.c.b16 %v1922, %v1920
    %v1953 = vpack.c.b16 %v1925, %v1923
    %v1954 = vpack.c.b16 %v1926, %v1924
    %v1955 = vpack.c.b16 %v1929, %v1927
    %v1956 = vpack.c.b16 %v1930, %v1928
    %v1957 = vpack.c.b16 %v1933, %v1931
    %v1958 = vpack.c.b16 %v1934, %v1932
    %v1959 = vpack.c.b16 %v1937, %v1935
    %v1960 = vpack.c.b16 %v1938, %v1936
    %v1961 = vpack.c.b16 %v1941, %v1939
    %v1962 = vpack.c.b16 %v1942, %v1940
    %v1963 = vpack.c.b16 %v1945, %v1943
    %v1964 = vpack.c.b16 %v1946, %v1944
    %v1965 = vpack.c.b16 %v1949, %v1947
    %v1966 = vpack.c.b16 %v1950, %v1948
    %1983 = vmatprep.subr.bf16.mxu0 %v1966
    %1984 = vmatpush1.bf16.msra.mxu0 %v1965
    %1985 = vmatprep.subr.bf16.mxu0 %v1964
    %1986 = vmatpush1.bf16.msra.mxu0 %v1963
    %1987 = vmatprep.subr.bf16.mxu0 %v1962
    %1988 = vmatpush1.bf16.msra.mxu0 %v1961
    %1989 = vmatprep.subr.bf16.mxu0 %v1960
    %1990 = vmatpush1.bf16.msra.mxu0 %v1959
    %1991 = vmatprep.subr.bf16.mxu0 %v1958
    %1992 = vmatpush1.bf16.msra.mxu0 %v1957
    %1993 = vmatprep.subr.bf16.mxu0 %v1956
    %1994 = vmatpush1.bf16.msra.mxu0 %v1955
    %1995 = vmatprep.subr.bf16.mxu0 %v1954
    %1996 = vmatpush1.bf16.msra.mxu0 %v1953
    %1997 = vmatprep.subr.bf16.mxu0 %v1952
    %1998 = vmatpush1.bf16.msra.mxu0 %v1951
    %1999 = vmatprep.subr.bf16.mxu0 0
    %2000 = vmatpush2.bf16.msra.mxu0 0
    %2001 = vmatprep.subr.bf16.mxu0 0
    %2002 = vmatpush2.bf16.msra.mxu0 0
    %2003 = vmatprep.subr.bf16.mxu0 0
    %2004 = vmatpush2.bf16.msra.mxu0 0
    %2005 = vmatprep.subr.bf16.mxu0 0
    %2006 = vmatpush2.bf16.msra.mxu0 0
    %2007 = vmatprep.subr.bf16.mxu0 0
    %2008 = vmatpush2.bf16.msra.mxu0 0
    %2009 = vmatprep.subr.bf16.mxu0 0
    %2010 = vmatpush2.bf16.msra.mxu0 0
    %2011 = vmatprep.subr.bf16.mxu0 0
    %2012 = vmatpush2.bf16.msra.mxu0 0
    %2013 = vmatprep.subr.bf16.mxu0 0
    %2014 = vmatpush2.bf16.msra.mxu0 0
    %2015 = vmatprep.mubr.bf16.mxu0 0
    %2016 = vmatmul.mubr.bf16.gmra.mxu0 %v1734
    %v2017 = vpop.f32.mrf.mxu0
    %v2018 = vadd.f32 %v1895, %v2017
    %v2019 = vpop.f32.mrf.mxu0
    %v2020 = vadd.f32 %v1897, %v2019
    %v2021 = vpop.f32.mrf.mxu0
    %v2022 = vadd.f32 %v1899, %v2021
    %v2023 = vpop.f32.mrf.mxu0
    %v2024 = vadd.f32 %v1901, %v2023
    %2025 = vdwg.mxu0
    %s2026 = scalar_lea.vmem [#allocation11], 256
    %v2027 = vld [vmem:[%s2026] sm:$0xff]
    %v2028 = vld [vmem:[%s2026 + $0x8] sm:$0xff]
    %v2029 = vld [vmem:[%s2026 + $0x10] sm:$0xff]
    %v2030 = vld [vmem:[%s2026 + $0x18] sm:$0xff]
    %v2031 = vld [vmem:[%s2026 + $0x20] sm:$0xff]
    %v2032 = vld [vmem:[%s2026 + $0x28] sm:$0xff]
    %v2033 = vld [vmem:[%s2026 + $0x30] sm:$0xff]
    %v2034 = vld [vmem:[%s2026 + $0x38] sm:$0xff]
    %v2035 = vld [vmem:[%s2026 + $0x40] sm:$0xff]
    %v2036 = vld [vmem:[%s2026 + $0x48] sm:$0xff]
    %v2037 = vld [vmem:[%s2026 + $0x50] sm:$0xff]
    %v2038 = vld [vmem:[%s2026 + $0x58] sm:$0xff]
    %v2039 = vld [vmem:[%s2026 + $0x60] sm:$0xff]
    %v2040 = vld [vmem:[%s2026 + $0x68] sm:$0xff]
    %v2041 = vld [vmem:[%s2026 + $0x70] sm:$0xff]
    %v2042 = vld [vmem:[%s2026 + $0x78] sm:$0xff]
    %v2059 = vunpack.c.l.b16 %v2027
    %v2060 = vunpack.c.h.b16 %v2027
    %v2061 = vunpack.c.l.b16 %v2028
    %v2062 = vunpack.c.h.b16 %v2028
    %v2063 = vunpack.c.l.b16 %v2029
    %v2064 = vunpack.c.h.b16 %v2029
    %v2065 = vunpack.c.l.b16 %v2030
    %v2066 = vunpack.c.h.b16 %v2030
    %v2067 = vunpack.c.l.b16 %v2031
    %v2068 = vunpack.c.h.b16 %v2031
    %v2069 = vunpack.c.l.b16 %v2032
    %v2070 = vunpack.c.h.b16 %v2032
    %v2071 = vunpack.c.l.b16 %v2033
    %v2072 = vunpack.c.h.b16 %v2033
    %v2073 = vunpack.c.l.b16 %v2034
    %v2074 = vunpack.c.h.b16 %v2034
    %v2075 = vunpack.c.l.b16 %v2035
    %v2076 = vunpack.c.h.b16 %v2035
    %v2077 = vunpack.c.l.b16 %v2036
    %v2078 = vunpack.c.h.b16 %v2036
    %v2079 = vunpack.c.l.b16 %v2037
    %v2080 = vunpack.c.h.b16 %v2037
    %v2081 = vunpack.c.l.b16 %v2038
    %v2082 = vunpack.c.h.b16 %v2038
    %v2083 = vunpack.c.l.b16 %v2039
    %v2084 = vunpack.c.h.b16 %v2039
    %v2085 = vunpack.c.l.b16 %v2040
    %v2086 = vunpack.c.h.b16 %v2040
    %v2087 = vunpack.c.l.b16 %v2041
    %v2088 = vunpack.c.h.b16 %v2041
    %v2089 = vunpack.c.l.b16 %v2042
    %v2090 = vunpack.c.h.b16 %v2042
    %v2091 = vpack.c.b16 %v2061, %v2059
    %v2092 = vpack.c.b16 %v2062, %v2060
    %v2093 = vpack.c.b16 %v2065, %v2063
    %v2094 = vpack.c.b16 %v2066, %v2064
    %v2095 = vpack.c.b16 %v2069, %v2067
    %v2096 = vpack.c.b16 %v2070, %v2068
    %v2097 = vpack.c.b16 %v2073, %v2071
    %v2098 = vpack.c.b16 %v2074, %v2072
    %v2099 = vpack.c.b16 %v2077, %v2075
    %v2100 = vpack.c.b16 %v2078, %v2076
    %v2101 = vpack.c.b16 %v2081, %v2079
    %v2102 = vpack.c.b16 %v2082, %v2080
    %v2103 = vpack.c.b16 %v2085, %v2083
    %v2104 = vpack.c.b16 %v2086, %v2084
    %v2105 = vpack.c.b16 %v2089, %v2087
    %v2106 = vpack.c.b16 %v2090, %v2088
    %2123 = vmatprep.subr.bf16.mxu0 %v2106
    %2124 = vmatpush1.bf16.msra.mxu0 %v2105
    %2125 = vmatprep.subr.bf16.mxu0 %v2104
    %2126 = vmatpush1.bf16.msra.mxu0 %v2103
    %2127 = vmatprep.subr.bf16.mxu0 %v2102
    %2128 = vmatpush1.bf16.msra.mxu0 %v2101
    %2129 = vmatprep.subr.bf16.mxu0 %v2100
    %2130 = vmatpush1.bf16.msra.mxu0 %v2099
    %2131 = vmatprep.subr.bf16.mxu0 %v2098
    %2132 = vmatpush1.bf16.msra.mxu0 %v2097
    %2133 = vmatprep.subr.bf16.mxu0 %v2096
    %2134 = vmatpush1.bf16.msra.mxu0 %v2095
    %2135 = vmatprep.subr.bf16.mxu0 %v2094
    %2136 = vmatpush1.bf16.msra.mxu0 %v2093
    %2137 = vmatprep.subr.bf16.mxu0 %v2092
    %2138 = vmatpush1.bf16.msra.mxu0 %v2091
    %2139 = vmatprep.subr.bf16.mxu0 0
    %2140 = vmatpush2.bf16.msra.mxu0 0
    %2141 = vmatprep.subr.bf16.mxu0 0
    %2142 = vmatpush2.bf16.msra.mxu0 0
    %2143 = vmatprep.subr.bf16.mxu0 0
    %2144 = vmatpush2.bf16.msra.mxu0 0
    %2145 = vmatprep.subr.bf16.mxu0 0
    %2146 = vmatpush2.bf16.msra.mxu0 0
    %2147 = vmatprep.subr.bf16.mxu0 0
    %2148 = vmatpush2.bf16.msra.mxu0 0
    %2149 = vmatprep.subr.bf16.mxu0 0
    %2150 = vmatpush2.bf16.msra.mxu0 0
    %2151 = vmatprep.subr.bf16.mxu0 0
    %2152 = vmatpush2.bf16.msra.mxu0 0
    %2153 = vmatprep.subr.bf16.mxu0 0
    %2154 = vmatpush2.bf16.msra.mxu0 0
    %2155 = vmatprep.mubr.bf16.mxu0 0
    %2156 = vmatmul.mubr.bf16.gmra.mxu0 %v1746
    %v2157 = vpop.f32.mrf.mxu0
    %v2158 = vadd.f32 0.0, %v2157
    %v2159 = vpop.f32.mrf.mxu0
    %v2160 = vadd.f32 0.0, %v2159
    %v2161 = vpop.f32.mrf.mxu0
    %v2162 = vadd.f32 0.0, %v2161
    %v2163 = vpop.f32.mrf.mxu0
    %v2164 = vadd.f32 0.0, %v2163
    %2165 = vdwg.mxu0
    %v2166 = vadd.f32 %v2018, %v2158
    %v2167 = vadd.f32 %v2020, %v2160
    %v2168 = vadd.f32 %v2022, %v2162
    %v2169 = vadd.f32 %v2024, %v2164
    %v2170 = vld [vmem:[%s8] sm:$0x3]
    %v2172 = vlaneseq
    %v2173 = vshrl.u32 %v2172, 7
    %v2174 = vsub.s32 0, %v2173
    %v2175 = vrot.slane %v2170, %v2174
    %v2176 = vlaneseq
    %v2177 = vshrl.u32 %v2176, 7
    %v2178 = vsub.s32 1, %v2177
    %v2179 = vrot.slane %v2170, %v2178
    %v2182 = vadd.f32 %v2166, %v2175
    %v2183 = vadd.f32 %v2167, %v2179
    %v2184 = vadd.f32 %v2168, %v2175
    %v2185 = vadd.f32 %v2169, %v2179
    %v2186 = vmax.f32 %v2182, 0.0
    %v2187 = vmax.f32 %v2183, 0.0
    %v2188 = vmax.f32 %v2184, 0.0
    %v2189 = vmax.f32 %v2185, 0.0
    %v2190 = vpack.c.bf16 %v977, %v976
    %v2191 = vpack.c.bf16 %v979, %v978
    %v2192 = vld [vmem:[#allocation17] sm:$0xff]
    %v2193 = vld [vmem:[#allocation17 + $0x8] sm:$0xff]
    %v2194 = vld [vmem:[#allocation17 + $0x10] sm:$0xff]
    %v2195 = vld [vmem:[#allocation17 + $0x18] sm:$0xf]
    %v2196 = vld [vmem:[#allocation17 + $0x1c] sm:$0xff]
    %v2197 = vld [vmem:[#allocation17 + $0x24] sm:$0xff]
    %v2198 = vld [vmem:[#allocation17 + $0x2c] sm:$0xff]
    %v2199 = vld [vmem:[#allocation17 + $0x34] sm:$0xf]
    %v2200 = vld [vmem:[#allocation17 + $0x38] sm:$0xff]
    %v2201 = vld [vmem:[#allocation17 + $0x40] sm:$0xff]
    %v2202 = vld [vmem:[#allocation17 + $0x48] sm:$0xff]
    %v2203 = vld [vmem:[#allocation17 + $0x50] sm:$0xf]
    %v2204 = vld [vmem:[#allocation17 + $0x54] sm:$0xff]
    %v2205 = vld [vmem:[#allocation17 + $0x5c] sm:$0xff]
    %v2206 = vld [vmem:[#allocation17 + $0x64] sm:$0xff]
    %v2207 = vld [vmem:[#allocation17 + $0x6c] sm:$0xf]
    %v2208 = vld [vmem:[#allocation17 + $0x70] sm:$0xff]
    %v2209 = vld [vmem:[#allocation17 + $0x78] sm:$0xff]
    %v2210 = vld [vmem:[#allocation17 + $0x80] sm:$0xff]
    %v2211 = vld [vmem:[#allocation17 + $0x88] sm:$0xf]
    %v2212 = vld [vmem:[#allocation17 + $0x8c] sm:$0xff]
    %v2213 = vld [vmem:[#allocation17 + $0x94] sm:$0xff]
    %v2214 = vld [vmem:[#allocation17 + $0x9c] sm:$0xff]
    %v2215 = vld [vmem:[#allocation17 + $0xa4] sm:$0xf]
    %v2216 = vld [vmem:[#allocation17 + $0xa8] sm:$0xff]
    %v2217 = vld [vmem:[#allocation17 + $0xb0] sm:$0xff]
    %v2218 = vld [vmem:[#allocation17 + $0xb8] sm:$0xff]
    %v2219 = vld [vmem:[#allocation17 + $0xc0] sm:$0xf]
    %v2220 = vld [vmem:[#allocation17 + $0xc4] sm:$0xff]
    %v2221 = vld [vmem:[#allocation17 + $0xcc] sm:$0xff]
    %v2222 = vld [vmem:[#allocation17 + $0xd4] sm:$0xff]
    %v2223 = vld [vmem:[#allocation17 + $0xdc] sm:$0xf]
    %v2224 = vld [vmem:[#allocation17 + $0xe0] sm:$0xff]
    %v2225 = vld [vmem:[#allocation17 + $0xe8] sm:$0xff]
    %v2226 = vld [vmem:[#allocation17 + $0xf0] sm:$0xff]
    %v2227 = vld [vmem:[#allocation17 + $0xf8] sm:$0xf]
    %v2228 = vld [vmem:[#allocation17 + $0xfc] sm:$0xff]
    %v2229 = vld [vmem:[#allocation17 + $0x104] sm:$0xff]
    %v2230 = vld [vmem:[#allocation17 + $0x10c] sm:$0xff]
    %v2231 = vld [vmem:[#allocation17 + $0x114] sm:$0xf]
    %v2232 = vld [vmem:[#allocation17 + $0x118] sm:$0xff]
    %v2233 = vld [vmem:[#allocation17 + $0x120] sm:$0xff]
    %v2234 = vld [vmem:[#allocation17 + $0x128] sm:$0xff]
    %v2235 = vld [vmem:[#allocation17 + $0x130] sm:$0xf]
    %v2236 = vld [vmem:[#allocation17 + $0x134] sm:$0xff]
    %v2237 = vld [vmem:[#allocation17 + $0x13c] sm:$0xff]
    %v2238 = vld [vmem:[#allocation17 + $0x144] sm:$0xff]
    %v2239 = vld [vmem:[#allocation17 + $0x14c] sm:$0xf]
    %v2240 = vld [vmem:[#allocation17 + $0x150] sm:$0xff]
    %v2241 = vld [vmem:[#allocation17 + $0x158] sm:$0xff]
    %v2242 = vld [vmem:[#allocation17 + $0x160] sm:$0xff]
    %v2243 = vld [vmem:[#allocation17 + $0x168] sm:$0xf]
    %v2244 = vld [vmem:[#allocation17 + $0x16c] sm:$0xff]
    %v2245 = vld [vmem:[#allocation17 + $0x174] sm:$0xff]
    %v2246 = vld [vmem:[#allocation17 + $0x17c] sm:$0xff]
    %v2247 = vld [vmem:[#allocation17 + $0x184] sm:$0xf]
    %v2248 = vld [vmem:[#allocation17 + $0x188] sm:$0xff]
    %v2249 = vld [vmem:[#allocation17 + $0x190] sm:$0xff]
    %v2250 = vld [vmem:[#allocation17 + $0x198] sm:$0xff]
    %v2251 = vld [vmem:[#allocation17 + $0x1a0] sm:$0xf]
    %v2252 = vld [vmem:[#allocation17 + $0x1a4] sm:$0xff]
    %v2253 = vld [vmem:[#allocation17 + $0x1ac] sm:$0xff]
    %v2254 = vld [vmem:[#allocation17 + $0x1b4] sm:$0xff]
    %v2255 = vld [vmem:[#allocation17 + $0x1bc] sm:$0xf]
    %v2256 = vld [vmem:[%s11] sm:$0xf]
    %v2257 = vld [vmem:[%s11 + $0x4] sm:$0xf]
    %v2258 = vld [vmem:[%s11 + $0x8] sm:$0xf]
    %v2259 = vld [vmem:[%s11 + $0xc] sm:$0xf]
    %v2260 = vpack.c.bf16 %v1721, %v1718
    %v2265 = vunpack.c.l.b16 %v2256
    %v2266 = vunpack.c.l.b16 %v2257
    %v2267 = vunpack.c.l.b16 %v2258
    %v2268 = vunpack.c.l.b16 %v2259
    %v2269 = vpack.c.b16 %v2266, %v2265
    %v2270 = vpack.c.b16 %v2268, %v2267
    %vm2271 = vcmask 130048
    %v2273 = vsel %vm2271, %v2269, 0
    %v2276 = vsel %vm2271, %v2270, 0
    %2278 = vmatprep.subr.bf16.mxu0 0
    %2279 = vmatpush1.bf16.msra.mxu0 0
    %2280 = vmatprep.subr.bf16.mxu0 0
    %2281 = vmatpush1.bf16.msra.mxu0 0
    %2282 = vmatprep.subr.bf16.mxu0 0
    %2283 = vmatpush1.bf16.msra.mxu0 0
    %2284 = vmatprep.subr.bf16.mxu0 0
    %2285 = vmatpush1.bf16.msra.mxu0 0
    %2286 = vmatprep.subr.bf16.mxu0 0
    %2287 = vmatpush1.bf16.msra.mxu0 0
    %2288 = vmatprep.subr.bf16.mxu0 0
    %2289 = vmatpush1.bf16.msra.mxu0 0
    %2290 = vmatprep.subr.bf16.mxu0 0
    %2291 = vmatpush1.bf16.msra.mxu0 0
    %2292 = vmatprep.subr.bf16.mxu0 0
    %2293 = vmatpush1.bf16.msra.mxu0 %v2260
    %2294 = vmatprep.subr.bf16.mxu0 0
    %2295 = vmatpush2.bf16.msra.mxu0 0
    %2296 = vmatprep.subr.bf16.mxu0 0
    %2297 = vmatpush2.bf16.msra.mxu0 0
    %2298 = vmatprep.subr.bf16.mxu0 0
    %2299 = vmatpush2.bf16.msra.mxu0 0
    %2300 = vmatprep.subr.bf16.mxu0 0
    %2301 = vmatpush2.bf16.msra.mxu0 0
    %2302 = vmatprep.subr.bf16.mxu0 0
    %2303 = vmatpush2.bf16.msra.mxu0 0
    %2304 = vmatprep.subr.bf16.mxu0 0
    %2305 = vmatpush2.bf16.msra.mxu0 0
    %2306 = vmatprep.subr.bf16.mxu0 0
    %2307 = vmatpush2.bf16.msra.mxu0 0
    %2308 = vmatprep.subr.bf16.mxu0 0
    %2309 = vmatpush2.bf16.msra.mxu0 0
    %2310 = vmatprep.mubr.bf16.mxu0 0
    %2311 = vmatmul.mubr.bf16.gmra.mxu0 %v2273
    %v2312 = vpop.f32.mrf.mxu0
    %v2313 = vadd.f32 0.0, %v2312
    %v2314 = vpop.f32.mrf.mxu0
    %v2315 = vpop.f32.mrf.mxu0
    %v2316 = vadd.f32 0.0, %v2315
    %v2317 = vpop.f32.mrf.mxu0
    %2318 = vmatprep.mubr.bf16.mxu0 0
    %2319 = vmatmul.mubr.bf16.gmra.mxu0 %v2276
    %v2320 = vpop.f32.mrf.mxu0
    %v2321 = vadd.f32 0.0, %v2320
    %v2322 = vpop.f32.mrf.mxu0
    %v2323 = vpop.f32.mrf.mxu0
    %v2324 = vadd.f32 0.0, %v2323
    %v2325 = vpop.f32.mrf.mxu0
    %2326 = vdwg.mxu0
    %v2327 = vpack.c.bf16 %v2316, %v2313
    %v2328 = vpack.c.bf16 %v2324, %v2321
    %v2329 = vld [vmem:[#allocation14] sm:$0xff]
    %v2330 = vld [vmem:[#allocation14 + $0x8] sm:$0xff]
    %v2331 = vld [vmem:[#allocation14 + $0x10] sm:$0xff]
    %v2332 = vld [vmem:[#allocation14 + $0x18] sm:$0xf]
    %v2333 = vld [vmem:[#allocation14 + $0x1c] sm:$0xff]
    %v2334 = vld [vmem:[#allocation14 + $0x24] sm:$0xff]
    %v2335 = vld [vmem:[#allocation14 + $0x2c] sm:$0xff]
    %v2336 = vld [vmem:[#allocation14 + $0x34] sm:$0xf]
    %v2337 = vld [vmem:[#allocation14 + $0x38] sm:$0xff]
    %v2338 = vld [vmem:[#allocation14 + $0x40] sm:$0xff]
    %v2339 = vld [vmem:[#allocation14 + $0x48] sm:$0xff]
    %v2340 = vld [vmem:[#allocation14 + $0x50] sm:$0xf]
    %v2341 = vld [vmem:[#allocation14 + $0x54] sm:$0xff]
    %v2342 = vld [vmem:[#allocation14 + $0x5c] sm:$0xff]
    %v2343 = vld [vmem:[#allocation14 + $0x64] sm:$0xff]
    %v2344 = vld [vmem:[#allocation14 + $0x6c] sm:$0xf]
    %v2345 = vld [vmem:[#allocation14 + $0x70] sm:$0xff]
    %v2346 = vld [vmem:[#allocation14 + $0x78] sm:$0xff]
    %v2347 = vld [vmem:[#allocation14 + $0x80] sm:$0xff]
    %v2348 = vld [vmem:[#allocation14 + $0x88] sm:$0xf]
    %v2349 = vld [vmem:[#allocation14 + $0x8c] sm:$0xff]
    %v2350 = vld [vmem:[#allocation14 + $0x94] sm:$0xff]
    %v2351 = vld [vmem:[#allocation14 + $0x9c] sm:$0xff]
    %v2352 = vld [vmem:[#allocation14 + $0xa4] sm:$0xf]
    %v2353 = vld [vmem:[#allocation14 + $0xa8] sm:$0xff]
    %v2354 = vld [vmem:[#allocation14 + $0xb0] sm:$0xff]
    %v2355 = vld [vmem:[#allocation14 + $0xb8] sm:$0xff]
    %v2356 = vld [vmem:[#allocation14 + $0xc0] sm:$0xf]
    %v2357 = vld [vmem:[#allocation14 + $0xc4] sm:$0xff]
    %v2358 = vld [vmem:[#allocation14 + $0xcc] sm:$0xff]
    %v2359 = vld [vmem:[#allocation14 + $0xd4] sm:$0xff]
    %v2360 = vld [vmem:[#allocation14 + $0xdc] sm:$0xf]
    %v2361 = vld [vmem:[#allocation14 + $0xe0] sm:$0xff]
    %v2362 = vld [vmem:[#allocation14 + $0xe8] sm:$0xff]
    %v2363 = vld [vmem:[#allocation14 + $0xf0] sm:$0xff]
    %v2364 = vld [vmem:[#allocation14 + $0xf8] sm:$0xf]
    %v2365 = vld [vmem:[#allocation14 + $0xfc] sm:$0xff]
    %v2366 = vld [vmem:[#allocation14 + $0x104] sm:$0xff]
    %v2367 = vld [vmem:[#allocation14 + $0x10c] sm:$0xff]
    %v2368 = vld [vmem:[#allocation14 + $0x114] sm:$0xf]
    %v2369 = vld [vmem:[#allocation14 + $0x118] sm:$0xff]
    %v2370 = vld [vmem:[#allocation14 + $0x120] sm:$0xff]
    %v2371 = vld [vmem:[#allocation14 + $0x128] sm:$0xff]
    %v2372 = vld [vmem:[#allocation14 + $0x130] sm:$0xf]
    %v2373 = vld [vmem:[#allocation14 + $0x134] sm:$0xff]
    %v2374 = vld [vmem:[#allocation14 + $0x13c] sm:$0xff]
    %v2375 = vld [vmem:[#allocation14 + $0x144] sm:$0xff]
    %v2376 = vld [vmem:[#allocation14 + $0x14c] sm:$0xf]
    %v2377 = vld [vmem:[#allocation14 + $0x150] sm:$0xff]
    %v2378 = vld [vmem:[#allocation14 + $0x158] sm:$0xff]
    %v2379 = vld [vmem:[#allocation14 + $0x160] sm:$0xff]
    %v2380 = vld [vmem:[#allocation14 + $0x168] sm:$0xf]
    %v2381 = vld [vmem:[#allocation14 + $0x16c] sm:$0xff]
    %v2382 = vld [vmem:[#allocation14 + $0x174] sm:$0xff]
    %v2383 = vld [vmem:[#allocation14 + $0x17c] sm:$0xff]
    %v2384 = vld [vmem:[#allocation14 + $0x184] sm:$0xf]
    %v2385 = vld [vmem:[#allocation14 + $0x188] sm:$0xff]
    %v2386 = vld [vmem:[#allocation14 + $0x190] sm:$0xff]
    %v2387 = vld [vmem:[#allocation14 + $0x198] sm:$0xff]
    %v2388 = vld [vmem:[#allocation14 + $0x1a0] sm:$0xf]
    %v2389 = vld [vmem:[#allocation14 + $0x1a4] sm:$0xff]
    %v2390 = vld [vmem:[#allocation14 + $0x1ac] sm:$0xff]
    %v2391 = vld [vmem:[#allocation14 + $0x1b4] sm:$0xff]
    %v2392 = vld [vmem:[#allocation14 + $0x1bc] sm:$0xf]
    %v2457 = vunpack.c.l.b16 %v2329
    %v2458 = vunpack.c.h.b16 %v2329
    %v2459 = vunpack.c.l.b16 %v2330
    %v2460 = vunpack.c.h.b16 %v2330
    %v2461 = vunpack.c.l.b16 %v2331
    %v2462 = vunpack.c.h.b16 %v2331
    %v2463 = vunpack.c.l.b16 %v2332
    %v2464 = vunpack.c.l.b16 %v2333
    %v2465 = vunpack.c.h.b16 %v2333
    %v2466 = vunpack.c.l.b16 %v2334
    %v2467 = vunpack.c.h.b16 %v2334
    %v2468 = vunpack.c.l.b16 %v2335
    %v2469 = vunpack.c.h.b16 %v2335
    %v2470 = vunpack.c.l.b16 %v2336
    %v2471 = vunpack.c.l.b16 %v2337
    %v2472 = vunpack.c.h.b16 %v2337
    %v2473 = vunpack.c.l.b16 %v2338
    %v2474 = vunpack.c.h.b16 %v2338
    %v2475 = vunpack.c.l.b16 %v2339
    %v2476 = vunpack.c.h.b16 %v2339
    %v2477 = vunpack.c.l.b16 %v2340
    %v2478 = vunpack.c.l.b16 %v2341
    %v2479 = vunpack.c.h.b16 %v2341
    %v2480 = vunpack.c.l.b16 %v2342
    %v2481 = vunpack.c.h.b16 %v2342
    %v2482 = vunpack.c.l.b16 %v2343
    %v2483 = vunpack.c.h.b16 %v2343
    %v2484 = vunpack.c.l.b16 %v2344
    %v2485 = vunpack.c.l.b16 %v2345
    %v2486 = vunpack.c.h.b16 %v2345
    %v2487 = vunpack.c.l.b16 %v2346
    %v2488 = vunpack.c.h.b16 %v2346
    %v2489 = vunpack.c.l.b16 %v2347
    %v2490 = vunpack.c.h.b16 %v2347
    %v2491 = vunpack.c.l.b16 %v2348
    %v2492 = vunpack.c.l.b16 %v2349
    %v2493 = vunpack.c.h.b16 %v2349
    %v2494 = vunpack.c.l.b16 %v2350
    %v2495 = vunpack.c.h.b16 %v2350
    %v2496 = vunpack.c.l.b16 %v2351
    %v2497 = vunpack.c.h.b16 %v2351
    %v2498 = vunpack.c.l.b16 %v2352
    %v2499 = vunpack.c.l.b16 %v2353
    %v2500 = vunpack.c.h.b16 %v2353
    %v2501 = vunpack.c.l.b16 %v2354
    %v2502 = vunpack.c.h.b16 %v2354
    %v2503 = vunpack.c.l.b16 %v2355
    %v2504 = vunpack.c.h.b16 %v2355
    %v2505 = vunpack.c.l.b16 %v2356
    %v2506 = vunpack.c.l.b16 %v2357
    %v2507 = vunpack.c.h.b16 %v2357
    %v2508 = vunpack.c.l.b16 %v2358
    %v2509 = vunpack.c.h.b16 %v2358
    %v2510 = vunpack.c.l.b16 %v2359
    %v2511 = vunpack.c.h.b16 %v2359
    %v2512 = vunpack.c.l.b16 %v2360
    %v2513 = vunpack.c.l.b16 %v2361
    %v2514 = vunpack.c.h.b16 %v2361
    %v2515 = vunpack.c.l.b16 %v2362
    %v2516 = vunpack.c.h.b16 %v2362
    %v2517 = vunpack.c.l.b16 %v2363
    %v2518 = vunpack.c.h.b16 %v2363
    %v2519 = vunpack.c.l.b16 %v2364
    %v2520 = vunpack.c.l.b16 %v2365
    %v2521 = vunpack.c.h.b16 %v2365
    %v2522 = vunpack.c.l.b16 %v2366
    %v2523 = vunpack.c.h.b16 %v2366
    %v2524 = vunpack.c.l.b16 %v2367
    %v2525 = vunpack.c.h.b16 %v2367
    %v2526 = vunpack.c.l.b16 %v2368
    %v2527 = vunpack.c.l.b16 %v2369
    %v2528 = vunpack.c.h.b16 %v2369
    %v2529 = vunpack.c.l.b16 %v2370
    %v2530 = vunpack.c.h.b16 %v2370
    %v2531 = vunpack.c.l.b16 %v2371
    %v2532 = vunpack.c.h.b16 %v2371
    %v2533 = vunpack.c.l.b16 %v2372
    %v2534 = vunpack.c.l.b16 %v2373
    %v2535 = vunpack.c.h.b16 %v2373
    %v2536 = vunpack.c.l.b16 %v2374
    %v2537 = vunpack.c.h.b16 %v2374
    %v2538 = vunpack.c.l.b16 %v2375
    %v2539 = vunpack.c.h.b16 %v2375
    %v2540 = vunpack.c.l.b16 %v2376
    %v2541 = vunpack.c.l.b16 %v2377
    %v2542 = vunpack.c.h.b16 %v2377
    %v2543 = vunpack.c.l.b16 %v2378
    %v2544 = vunpack.c.h.b16 %v2378
    %v2545 = vunpack.c.l.b16 %v2379
    %v2546 = vunpack.c.h.b16 %v2379
    %v2547 = vunpack.c.l.b16 %v2380
    %v2548 = vunpack.c.l.b16 %v2381
    %v2549 = vunpack.c.h.b16 %v2381
    %v2550 = vunpack.c.l.b16 %v2382
    %v2551 = vunpack.c.h.b16 %v2382
    %v2552 = vunpack.c.l.b16 %v2383
    %v2553 = vunpack.c.h.b16 %v2383
    %v2554 = vunpack.c.l.b16 %v2384
    %v2555 = vunpack.c.l.b16 %v2385
    %v2556 = vunpack.c.h.b16 %v2385
    %v2557 = vunpack.c.l.b16 %v2386
    %v2558 = vunpack.c.h.b16 %v2386
    %v2559 = vunpack.c.l.b16 %v2387
    %v2560 = vunpack.c.h.b16 %v2387
    %v2561 = vunpack.c.l.b16 %v2388
    %v2562 = vunpack.c.l.b16 %v2389
    %v2563 = vunpack.c.h.b16 %v2389
    %v2564 = vunpack.c.l.b16 %v2390
    %v2565 = vunpack.c.h.b16 %v2390
    %v2566 = vunpack.c.l.b16 %v2391
    %v2567 = vunpack.c.h.b16 %v2391
    %v2568 = vunpack.c.l.b16 %v2392
    %v2569 = vpack.c.b16 %v2464, %v2457
    %v2570 = vpack.c.b16 %v2465, %v2458
    %v2571 = vpack.c.b16 %v2466, %v2459
    %v2572 = vpack.c.b16 %v2467, %v2460
    %v2573 = vpack.c.b16 %v2468, %v2461
    %v2574 = vpack.c.b16 %v2469, %v2462
    %v2575 = vpack.c.b16 %v2470, %v2463
    %v2576 = vpack.c.b16 %v2478, %v2471
    %v2577 = vpack.c.b16 %v2479, %v2472
    %v2578 = vpack.c.b16 %v2480, %v2473
    %v2579 = vpack.c.b16 %v2481, %v2474
    %v2580 = vpack.c.b16 %v2482, %v2475
    %v2581 = vpack.c.b16 %v2483, %v2476
    %v2582 = vpack.c.b16 %v2484, %v2477
    %v2583 = vpack.c.b16 %v2492, %v2485
    %v2584 = vpack.c.b16 %v2493, %v2486
    %v2585 = vpack.c.b16 %v2494, %v2487
    %v2586 = vpack.c.b16 %v2495, %v2488
    %v2587 = vpack.c.b16 %v2496, %v2489
    %v2588 = vpack.c.b16 %v2497, %v2490
    %v2589 = vpack.c.b16 %v2498, %v2491
    %v2590 = vpack.c.b16 %v2506, %v2499
    %v2591 = vpack.c.b16 %v2507, %v2500
    %v2592 = vpack.c.b16 %v2508, %v2501
    %v2593 = vpack.c.b16 %v2509, %v2502
    %v2594 = vpack.c.b16 %v2510, %v2503
    %v2595 = vpack.c.b16 %v2511, %v2504
    %v2596 = vpack.c.b16 %v2512, %v2505
    %v2597 = vpack.c.b16 %v2520, %v2513
    %v2598 = vpack.c.b16 %v2521, %v2514
    %v2599 = vpack.c.b16 %v2522, %v2515
    %v2600 = vpack.c.b16 %v2523, %v2516
    %v2601 = vpack.c.b16 %v2524, %v2517
    %v2602 = vpack.c.b16 %v2525, %v2518
    %v2603 = vpack.c.b16 %v2526, %v2519
    %v2604 = vpack.c.b16 %v2534, %v2527
    %v2605 = vpack.c.b16 %v2535, %v2528
    %v2606 = vpack.c.b16 %v2536, %v2529
    %v2607 = vpack.c.b16 %v2537, %v2530
    %v2608 = vpack.c.b16 %v2538, %v2531
    %v2609 = vpack.c.b16 %v2539, %v2532
    %v2610 = vpack.c.b16 %v2540, %v2533
    %v2611 = vpack.c.b16 %v2548, %v2541
    %v2612 = vpack.c.b16 %v2549, %v2542
    %v2613 = vpack.c.b16 %v2550, %v2543
    %v2614 = vpack.c.b16 %v2551, %v2544
    %v2615 = vpack.c.b16 %v2552, %v2545
    %v2616 = vpack.c.b16 %v2553, %v2546
    %v2617 = vpack.c.b16 %v2554, %v2547
    %v2618 = vpack.c.b16 %v2562, %v2555
    %v2619 = vpack.c.b16 %v2563, %v2556
    %v2620 = vpack.c.b16 %v2564, %v2557
    %v2621 = vpack.c.b16 %v2565, %v2558
    %v2622 = vpack.c.b16 %v2566, %v2559
    %v2623 = vpack.c.b16 %v2567, %v2560
    %v2624 = vpack.c.b16 %v2568, %v2561
    %2681 = vmatprep.subr.bf16.mxu0 %v2619
    %2682 = vmatpush1.bf16.msra.mxu0 %v2618
    %2683 = vmatprep.subr.bf16.mxu0 %v2612
    %2684 = vmatpush1.bf16.msra.mxu0 %v2611
    %2685 = vmatprep.subr.bf16.mxu0 %v2605
    %2686 = vmatpush1.bf16.msra.mxu0 %v2604
    %2687 = vmatprep.subr.bf16.mxu0 %v2598
    %2688 = vmatpush1.bf16.msra.mxu0 %v2597
    %2689 = vmatprep.subr.bf16.mxu0 %v2591
    %2690 = vmatpush1.bf16.msra.mxu0 %v2590
    %2691 = vmatprep.subr.bf16.mxu0 %v2584
    %2692 = vmatpush1.bf16.msra.mxu0 %v2583
    %2693 = vmatprep.subr.bf16.mxu0 %v2577
    %2694 = vmatpush1.bf16.msra.mxu0 %v2576
    %2695 = vmatprep.subr.bf16.mxu0 %v2570
    %2696 = vmatpush1.bf16.msra.mxu0 %v2569
    %2697 = vmatprep.subr.bf16.mxu0 0
    %2698 = vmatpush2.bf16.msra.mxu0 0
    %2699 = vmatprep.subr.bf16.mxu0 0
    %2700 = vmatpush2.bf16.msra.mxu0 0
    %2701 = vmatprep.subr.bf16.mxu0 0
    %2702 = vmatpush2.bf16.msra.mxu0 0
    %2703 = vmatprep.subr.bf16.mxu0 0
    %2704 = vmatpush2.bf16.msra.mxu0 0
    %2705 = vmatprep.subr.bf16.mxu0 0
    %2706 = vmatpush2.bf16.msra.mxu0 0
    %2707 = vmatprep.subr.bf16.mxu0 0
    %2708 = vmatpush2.bf16.msra.mxu0 0
    %2709 = vmatprep.subr.bf16.mxu0 0
    %2710 = vmatpush2.bf16.msra.mxu0 0
    %2711 = vmatprep.subr.bf16.mxu0 0
    %2712 = vmatpush2.bf16.msra.mxu0 0
    %2713 = vmatprep.mubr.bf16.mxu0 0
    %2714 = vmatmul.mubr.bf16.gmra.mxu0 %v2327
    %v2715 = vpop.f32.mrf.mxu0
    %v2716 = vadd.f32 0.0, %v2715
    %v2717 = vpop.f32.mrf.mxu0
    %v2718 = vadd.f32 0.0, %v2717
    %v2719 = vpop.f32.mrf.mxu0
    %v2720 = vadd.f32 0.0, %v2719
    %v2721 = vpop.f32.mrf.mxu0
    %v2722 = vadd.f32 0.0, %v2721
    %2723 = vmatprep.mubr.bf16.mxu0 0
    %2724 = vmatmul.mubr.bf16.gmra.mxu0 %v2328
    %v2725 = vpop.f32.mrf.mxu0
    %v2726 = vadd.f32 0.0, %v2725
    %v2727 = vpop.f32.mrf.mxu0
    %v2728 = vadd.f32 0.0, %v2727
    %v2729 = vpop.f32.mrf.mxu0
    %v2730 = vadd.f32 0.0, %v2729
    %v2731 = vpop.f32.mrf.mxu0
    %v2732 = vadd.f32 0.0, %v2731
    %2733 = vdwg.mxu0
    %2734 = vmatprep.subr.bf16.mxu0 %v2621
    %2735 = vmatpush1.bf16.msra.mxu0 %v2620
    %2736 = vmatprep.subr.bf16.mxu0 %v2614
    %2737 = vmatpush1.bf16.msra.mxu0 %v2613
    %2738 = vmatprep.subr.bf16.mxu0 %v2607
    %2739 = vmatpush1.bf16.msra.mxu0 %v2606
    %2740 = vmatprep.subr.bf16.mxu0 %v2600
    %2741 = vmatpush1.bf16.msra.mxu0 %v2599
    %2742 = vmatprep.subr.bf16.mxu0 %v2593
    %2743 = vmatpush1.bf16.msra.mxu0 %v2592
    %2744 = vmatprep.subr.bf16.mxu0 %v2586
    %2745 = vmatpush1.bf16.msra.mxu0 %v2585
    %2746 = vmatprep.subr.bf16.mxu0 %v2579
    %2747 = vmatpush1.bf16.msra.mxu0 %v2578
    %2748 = vmatprep.subr.bf16.mxu0 %v2572
    %2749 = vmatpush1.bf16.msra.mxu0 %v2571
    %2750 = vmatprep.subr.bf16.mxu0 0
    %2751 = vmatpush2.bf16.msra.mxu0 0
    %2752 = vmatprep.subr.bf16.mxu0 0
    %2753 = vmatpush2.bf16.msra.mxu0 0
    %2754 = vmatprep.subr.bf16.mxu0 0
    %2755 = vmatpush2.bf16.msra.mxu0 0
    %2756 = vmatprep.subr.bf16.mxu0 0
    %2757 = vmatpush2.bf16.msra.mxu0 0
    %2758 = vmatprep.subr.bf16.mxu0 0
    %2759 = vmatpush2.bf16.msra.mxu0 0
    %2760 = vmatprep.subr.bf16.mxu0 0
    %2761 = vmatpush2.bf16.msra.mxu0 0
    %2762 = vmatprep.subr.bf16.mxu0 0
    %2763 = vmatpush2.bf16.msra.mxu0 0
    %2764 = vmatprep.subr.bf16.mxu0 0
    %2765 = vmatpush2.bf16.msra.mxu0 0
    %2766 = vmatprep.mubr.bf16.mxu0 0
    %2767 = vmatmul.mubr.bf16.gmra.mxu0 %v2327
    %v2768 = vpop.f32.mrf.mxu0
    %v2769 = vadd.f32 0.0, %v2768
    %v2770 = vpop.f32.mrf.mxu0
    %v2771 = vadd.f32 0.0, %v2770
    %v2772 = vpop.f32.mrf.mxu0
    %v2773 = vadd.f32 0.0, %v2772
    %v2774 = vpop.f32.mrf.mxu0
    %v2775 = vadd.f32 0.0, %v2774
    %2776 = vmatprep.mubr.bf16.mxu0 0
    %2777 = vmatmul.mubr.bf16.gmra.mxu0 %v2328
    %v2778 = vpop.f32.mrf.mxu0
    %v2779 = vadd.f32 0.0, %v2778
    %v2780 = vpop.f32.mrf.mxu0
    %v2781 = vadd.f32 0.0, %v2780
    %v2782 = vpop.f32.mrf.mxu0
    %v2783 = vadd.f32 0.0, %v2782
    %v2784 = vpop.f32.mrf.mxu0
    %v2785 = vadd.f32 0.0, %v2784
    %2786 = vdwg.mxu0
    %2787 = vmatprep.subr.bf16.mxu0 %v2623
    %2788 = vmatpush1.bf16.msra.mxu0 %v2622
    %2789 = vmatprep.subr.bf16.mxu0 %v2616
    %2790 = vmatpush1.bf16.msra.mxu0 %v2615
    %2791 = vmatprep.subr.bf16.mxu0 %v2609
    %2792 = vmatpush1.bf16.msra.mxu0 %v2608
    %2793 = vmatprep.subr.bf16.mxu0 %v2602
    %2794 = vmatpush1.bf16.msra.mxu0 %v2601
    %2795 = vmatprep.subr.bf16.mxu0 %v2595
    %2796 = vmatpush1.bf16.msra.mxu0 %v2594
    %2797 = vmatprep.subr.bf16.mxu0 %v2588
    %2798 = vmatpush1.bf16.msra.mxu0 %v2587
    %2799 = vmatprep.subr.bf16.mxu0 %v2581
    %2800 = vmatpush1.bf16.msra.mxu0 %v2580
    %2801 = vmatprep.subr.bf16.mxu0 %v2574
    %2802 = vmatpush1.bf16.msra.mxu0 %v2573
    %2803 = vmatprep.subr.bf16.mxu0 0
    %2804 = vmatpush2.bf16.msra.mxu0 0
    %2805 = vmatprep.subr.bf16.mxu0 0
    %2806 = vmatpush2.bf16.msra.mxu0 0
    %2807 = vmatprep.subr.bf16.mxu0 0
    %2808 = vmatpush2.bf16.msra.mxu0 0
    %2809 = vmatprep.subr.bf16.mxu0 0
    %2810 = vmatpush2.bf16.msra.mxu0 0
    %2811 = vmatprep.subr.bf16.mxu0 0
    %2812 = vmatpush2.bf16.msra.mxu0 0
    %2813 = vmatprep.subr.bf16.mxu0 0
    %2814 = vmatpush2.bf16.msra.mxu0 0
    %2815 = vmatprep.subr.bf16.mxu0 0
    %2816 = vmatpush2.bf16.msra.mxu0 0
    %2817 = vmatprep.subr.bf16.mxu0 0
    %2818 = vmatpush2.bf16.msra.mxu0 0
    %2819 = vmatprep.mubr.bf16.mxu0 0
    %2820 = vmatmul.mubr.bf16.gmra.mxu0 %v2327
    %v2821 = vpop.f32.mrf.mxu0
    %v2822 = vadd.f32 0.0, %v2821
    %v2823 = vpop.f32.mrf.mxu0
    %v2824 = vadd.f32 0.0, %v2823
    %v2825 = vpop.f32.mrf.mxu0
    %v2826 = vadd.f32 0.0, %v2825
    %v2827 = vpop.f32.mrf.mxu0
    %v2828 = vadd.f32 0.0, %v2827
    %2829 = vmatprep.mubr.bf16.mxu0 0
    %2830 = vmatmul.mubr.bf16.gmra.mxu0 %v2328
    %v2831 = vpop.f32.mrf.mxu0
    %v2832 = vadd.f32 0.0, %v2831
    %v2833 = vpop.f32.mrf.mxu0
    %v2834 = vadd.f32 0.0, %v2833
    %v2835 = vpop.f32.mrf.mxu0
    %v2836 = vadd.f32 0.0, %v2835
    %v2837 = vpop.f32.mrf.mxu0
    %v2838 = vadd.f32 0.0, %v2837
    %2839 = vdwg.mxu0
    %2840 = vmatprep.subr.bf16.mxu0 0
    %2841 = vmatpush1.bf16.msra.mxu0 %v2624
    %2842 = vmatprep.subr.bf16.mxu0 0
    %2843 = vmatpush1.bf16.msra.mxu0 %v2617
    %2844 = vmatprep.subr.bf16.mxu0 0
    %2845 = vmatpush1.bf16.msra.mxu0 %v2610
    %2846 = vmatprep.subr.bf16.mxu0 0
    %2847 = vmatpush1.bf16.msra.mxu0 %v2603
    %2848 = vmatprep.subr.bf16.mxu0 0
    %2849 = vmatpush1.bf16.msra.mxu0 %v2596
    %2850 = vmatprep.subr.bf16.mxu0 0
    %2851 = vmatpush1.bf16.msra.mxu0 %v2589
    %2852 = vmatprep.subr.bf16.mxu0 0
    %2853 = vmatpush1.bf16.msra.mxu0 %v2582
    %2854 = vmatprep.subr.bf16.mxu0 0
    %2855 = vmatpush1.bf16.msra.mxu0 %v2575
    %2856 = vmatprep.subr.bf16.mxu0 0
    %2857 = vmatpush2.bf16.msra.mxu0 0
    %2858 = vmatprep.subr.bf16.mxu0 0
    %2859 = vmatpush2.bf16.msra.mxu0 0
    %2860 = vmatprep.subr.bf16.mxu0 0
    %2861 = vmatpush2.bf16.msra.mxu0 0
    %2862 = vmatprep.subr.bf16.mxu0 0
    %2863 = vmatpush2.bf16.msra.mxu0 0
    %2864 = vmatprep.subr.bf16.mxu0 0
    %2865 = vmatpush2.bf16.msra.mxu0 0
    %2866 = vmatprep.subr.bf16.mxu0 0
    %2867 = vmatpush2.bf16.msra.mxu0 0
    %2868 = vmatprep.subr.bf16.mxu0 0
    %2869 = vmatpush2.bf16.msra.mxu0 0
    %2870 = vmatprep.subr.bf16.mxu0 0
    %2871 = vmatpush2.bf16.msra.mxu0 0
    %2872 = vmatprep.mubr.bf16.mxu0 0
    %2873 = vmatmul.mubr.bf16.gmra.mxu0 %v2327
    %v2874 = vpop.f32.mrf.mxu0
    %v2875 = vadd.f32 0.0, %v2874
    %v2876 = vpop.f32.mrf.mxu0
    %v2877 = vpop.f32.mrf.mxu0
    %v2878 = vadd.f32 0.0, %v2877
    %v2879 = vpop.f32.mrf.mxu0
    %2880 = vmatprep.mubr.bf16.mxu0 0
    %2881 = vmatmul.mubr.bf16.gmra.mxu0 %v2328
    %v2882 = vpop.f32.mrf.mxu0
    %v2883 = vadd.f32 0.0, %v2882
    %v2884 = vpop.f32.mrf.mxu0
    %v2885 = vpop.f32.mrf.mxu0
    %v2886 = vadd.f32 0.0, %v2885
    %v2887 = vpop.f32.mrf.mxu0
    %2888 = vdwg.mxu0
    %v2953 = vunpack.c.l.b16 %v2192
    %v2954 = vunpack.c.h.b16 %v2192
    %v2955 = vunpack.c.l.b16 %v2193
    %v2956 = vunpack.c.h.b16 %v2193
    %v2957 = vunpack.c.l.b16 %v2194
    %v2958 = vunpack.c.h.b16 %v2194
    %v2959 = vunpack.c.l.b16 %v2195
    %v2960 = vunpack.c.l.b16 %v2196
    %v2961 = vunpack.c.h.b16 %v2196
    %v2962 = vunpack.c.l.b16 %v2197
    %v2963 = vunpack.c.h.b16 %v2197
    %v2964 = vunpack.c.l.b16 %v2198
    %v2965 = vunpack.c.h.b16 %v2198
    %v2966 = vunpack.c.l.b16 %v2199
    %v2967 = vunpack.c.l.b16 %v2200
    %v2968 = vunpack.c.h.b16 %v2200
    %v2969 = vunpack.c.l.b16 %v2201
    %v2970 = vunpack.c.h.b16 %v2201
    %v2971 = vunpack.c.l.b16 %v2202
    %v2972 = vunpack.c.h.b16 %v2202
    %v2973 = vunpack.c.l.b16 %v2203
    %v2974 = vunpack.c.l.b16 %v2204
    %v2975 = vunpack.c.h.b16 %v2204
    %v2976 = vunpack.c.l.b16 %v2205
    %v2977 = vunpack.c.h.b16 %v2205
    %v2978 = vunpack.c.l.b16 %v2206
    %v2979 = vunpack.c.h.b16 %v2206
    %v2980 = vunpack.c.l.b16 %v2207
    %v2981 = vunpack.c.l.b16 %v2208
    %v2982 = vunpack.c.h.b16 %v2208
    %v2983 = vunpack.c.l.b16 %v2209
    %v2984 = vunpack.c.h.b16 %v2209
    %v2985 = vunpack.c.l.b16 %v2210
    %v2986 = vunpack.c.h.b16 %v2210
    %v2987 = vunpack.c.l.b16 %v2211
    %v2988 = vunpack.c.l.b16 %v2212
    %v2989 = vunpack.c.h.b16 %v2212
    %v2990 = vunpack.c.l.b16 %v2213
    %v2991 = vunpack.c.h.b16 %v2213
    %v2992 = vunpack.c.l.b16 %v2214
    %v2993 = vunpack.c.h.b16 %v2214
    %v2994 = vunpack.c.l.b16 %v2215
    %v2995 = vunpack.c.l.b16 %v2216
    %v2996 = vunpack.c.h.b16 %v2216
    %v2997 = vunpack.c.l.b16 %v2217
    %v2998 = vunpack.c.h.b16 %v2217
    %v2999 = vunpack.c.l.b16 %v2218
    %v3000 = vunpack.c.h.b16 %v2218
    %v3001 = vunpack.c.l.b16 %v2219
    %v3002 = vunpack.c.l.b16 %v2220
    %v3003 = vunpack.c.h.b16 %v2220
    %v3004 = vunpack.c.l.b16 %v2221
    %v3005 = vunpack.c.h.b16 %v2221
    %v3006 = vunpack.c.l.b16 %v2222
    %v3007 = vunpack.c.h.b16 %v2222
    %v3008 = vunpack.c.l.b16 %v2223
    %v3009 = vunpack.c.l.b16 %v2224
    %v3010 = vunpack.c.h.b16 %v2224
    %v3011 = vunpack.c.l.b16 %v2225
    %v3012 = vunpack.c.h.b16 %v2225
    %v3013 = vunpack.c.l.b16 %v2226
    %v3014 = vunpack.c.h.b16 %v2226
    %v3015 = vunpack.c.l.b16 %v2227
    %v3016 = vunpack.c.l.b16 %v2228
    %v3017 = vunpack.c.h.b16 %v2228
    %v3018 = vunpack.c.l.b16 %v2229
    %v3019 = vunpack.c.h.b16 %v2229
    %v3020 = vunpack.c.l.b16 %v2230
    %v3021 = vunpack.c.h.b16 %v2230
    %v3022 = vunpack.c.l.b16 %v2231
    %v3023 = vunpack.c.l.b16 %v2232
    %v3024 = vunpack.c.h.b16 %v2232
    %v3025 = vunpack.c.l.b16 %v2233
    %v3026 = vunpack.c.h.b16 %v2233
    %v3027 = vunpack.c.l.b16 %v2234
    %v3028 = vunpack.c.h.b16 %v2234
    %v3029 = vunpack.c.l.b16 %v2235
    %v3030 = vunpack.c.l.b16 %v2236
    %v3031 = vunpack.c.h.b16 %v2236
    %v3032 = vunpack.c.l.b16 %v2237
    %v3033 = vunpack.c.h.b16 %v2237
    %v3034 = vunpack.c.l.b16 %v2238
    %v3035 = vunpack.c.h.b16 %v2238
    %v3036 = vunpack.c.l.b16 %v2239
    %v3037 = vunpack.c.l.b16 %v2240
    %v3038 = vunpack.c.h.b16 %v2240
    %v3039 = vunpack.c.l.b16 %v2241
    %v3040 = vunpack.c.h.b16 %v2241
    %v3041 = vunpack.c.l.b16 %v2242
    %v3042 = vunpack.c.h.b16 %v2242
    %v3043 = vunpack.c.l.b16 %v2243
    %v3044 = vunpack.c.l.b16 %v2244
    %v3045 = vunpack.c.h.b16 %v2244
    %v3046 = vunpack.c.l.b16 %v2245
    %v3047 = vunpack.c.h.b16 %v2245
    %v3048 = vunpack.c.l.b16 %v2246
    %v3049 = vunpack.c.h.b16 %v2246
    %v3050 = vunpack.c.l.b16 %v2247
    %v3051 = vunpack.c.l.b16 %v2248
    %v3052 = vunpack.c.h.b16 %v2248
    %v3053 = vunpack.c.l.b16 %v2249
    %v3054 = vunpack.c.h.b16 %v2249
    %v3055 = vunpack.c.l.b16 %v2250
    %v3056 = vunpack.c.h.b16 %v2250
    %v3057 = vunpack.c.l.b16 %v2251
    %v3058 = vunpack.c.l.b16 %v2252
    %v3059 = vunpack.c.h.b16 %v2252
    %v3060 = vunpack.c.l.b16 %v2253
    %v3061 = vunpack.c.h.b16 %v2253
    %v3062 = vunpack.c.l.b16 %v2254
    %v3063 = vunpack.c.h.b16 %v2254
    %v3064 = vunpack.c.l.b16 %v2255
    %v3065 = vpack.c.b16 %v2960, %v2953
    %v3066 = vpack.c.b16 %v2961, %v2954
    %v3067 = vpack.c.b16 %v2962, %v2955
    %v3068 = vpack.c.b16 %v2963, %v2956
    %v3069 = vpack.c.b16 %v2964, %v2957
    %v3070 = vpack.c.b16 %v2965, %v2958
    %v3071 = vpack.c.b16 %v2966, %v2959
    %v3072 = vpack.c.b16 %v2974, %v2967
    %v3073 = vpack.c.b16 %v2975, %v2968
    %v3074 = vpack.c.b16 %v2976, %v2969
    %v3075 = vpack.c.b16 %v2977, %v2970
    %v3076 = vpack.c.b16 %v2978, %v2971
    %v3077 = vpack.c.b16 %v2979, %v2972
    %v3078 = vpack.c.b16 %v2980, %v2973
    %v3079 = vpack.c.b16 %v2988, %v2981
    %v3080 = vpack.c.b16 %v2989, %v2982
    %v3081 = vpack.c.b16 %v2990, %v2983
    %v3082 = vpack.c.b16 %v2991, %v2984
    %v3083 = vpack.c.b16 %v2992, %v2985
    %v3084 = vpack.c.b16 %v2993, %v2986
    %v3085 = vpack.c.b16 %v2994, %v2987
    %v3086 = vpack.c.b16 %v3002, %v2995
    %v3087 = vpack.c.b16 %v3003, %v2996
    %v3088 = vpack.c.b16 %v3004, %v2997
    %v3089 = vpack.c.b16 %v3005, %v2998
    %v3090 = vpack.c.b16 %v3006, %v2999
    %v3091 = vpack.c.b16 %v3007, %v3000
    %v3092 = vpack.c.b16 %v3008, %v3001
    %v3093 = vpack.c.b16 %v3016, %v3009
    %v3094 = vpack.c.b16 %v3017, %v3010
    %v3095 = vpack.c.b16 %v3018, %v3011
    %v3096 = vpack.c.b16 %v3019, %v3012
    %v3097 = vpack.c.b16 %v3020, %v3013
    %v3098 = vpack.c.b16 %v3021, %v3014
    %v3099 = vpack.c.b16 %v3022, %v3015
    %v3100 = vpack.c.b16 %v3030, %v3023
    %v3101 = vpack.c.b16 %v3031, %v3024
    %v3102 = vpack.c.b16 %v3032, %v3025
    %v3103 = vpack.c.b16 %v3033, %v3026
    %v3104 = vpack.c.b16 %v3034, %v3027
    %v3105 = vpack.c.b16 %v3035, %v3028
    %v3106 = vpack.c.b16 %v3036, %v3029
    %v3107 = vpack.c.b16 %v3044, %v3037
    %v3108 = vpack.c.b16 %v3045, %v3038
    %v3109 = vpack.c.b16 %v3046, %v3039
    %v3110 = vpack.c.b16 %v3047, %v3040
    %v3111 = vpack.c.b16 %v3048, %v3041
    %v3112 = vpack.c.b16 %v3049, %v3042
    %v3113 = vpack.c.b16 %v3050, %v3043
    %v3114 = vpack.c.b16 %v3058, %v3051
    %v3115 = vpack.c.b16 %v3059, %v3052
    %v3116 = vpack.c.b16 %v3060, %v3053
    %v3117 = vpack.c.b16 %v3061, %v3054
    %v3118 = vpack.c.b16 %v3062, %v3055
    %v3119 = vpack.c.b16 %v3063, %v3056
    %v3120 = vpack.c.b16 %v3064, %v3057
    %3177 = vmatprep.subr.bf16.mxu0 %v3115
    %3178 = vmatpush1.bf16.msra.mxu0 %v3114
    %3179 = vmatprep.subr.bf16.mxu0 %v3108
    %3180 = vmatpush1.bf16.msra.mxu0 %v3107
    %3181 = vmatprep.subr.bf16.mxu0 %v3101
    %3182 = vmatpush1.bf16.msra.mxu0 %v3100
    %3183 = vmatprep.subr.bf16.mxu0 %v3094
    %3184 = vmatpush1.bf16.msra.mxu0 %v3093
    %3185 = vmatprep.subr.bf16.mxu0 %v3087
    %3186 = vmatpush1.bf16.msra.mxu0 %v3086
    %3187 = vmatprep.subr.bf16.mxu0 %v3080
    %3188 = vmatpush1.bf16.msra.mxu0 %v3079
    %3189 = vmatprep.subr.bf16.mxu0 %v3073
    %3190 = vmatpush1.bf16.msra.mxu0 %v3072
    %3191 = vmatprep.subr.bf16.mxu0 %v3066
    %3192 = vmatpush1.bf16.msra.mxu0 %v3065
    %3193 = vmatprep.subr.bf16.mxu0 0
    %3194 = vmatpush2.bf16.msra.mxu0 0
    %3195 = vmatprep.subr.bf16.mxu0 0
    %3196 = vmatpush2.bf16.msra.mxu0 0
    %3197 = vmatprep.subr.bf16.mxu0 0
    %3198 = vmatpush2.bf16.msra.mxu0 0
    %3199 = vmatprep.subr.bf16.mxu0 0
    %3200 = vmatpush2.bf16.msra.mxu0 0
    %3201 = vmatprep.subr.bf16.mxu0 0
    %3202 = vmatpush2.bf16.msra.mxu0 0
    %3203 = vmatprep.subr.bf16.mxu0 0
    %3204 = vmatpush2.bf16.msra.mxu0 0
    %3205 = vmatprep.subr.bf16.mxu0 0
    %3206 = vmatpush2.bf16.msra.mxu0 0
    %3207 = vmatprep.subr.bf16.mxu0 0
    %3208 = vmatpush2.bf16.msra.mxu0 0
    %3209 = vmatprep.mubr.bf16.mxu0 0
    %3210 = vmatmul.mubr.bf16.gmra.mxu0 %v2190
    %v3211 = vpop.f32.mrf.mxu0
    %v3212 = vadd.f32 %v2716, %v3211
    %v3213 = vpop.f32.mrf.mxu0
    %v3214 = vadd.f32 %v2718, %v3213
    %v3215 = vpop.f32.mrf.mxu0
    %v3216 = vadd.f32 %v2720, %v3215
    %v3217 = vpop.f32.mrf.mxu0
    %v3218 = vadd.f32 %v2722, %v3217
    %3219 = vmatprep.mubr.bf16.mxu0 0
    %3220 = vmatmul.mubr.bf16.gmra.mxu0 %v2191
    %v3221 = vpop.f32.mrf.mxu0
    %v3222 = vadd.f32 %v2726, %v3221
    %v3223 = vpop.f32.mrf.mxu0
    %v3224 = vadd.f32 %v2728, %v3223
    %v3225 = vpop.f32.mrf.mxu0
    %v3226 = vadd.f32 %v2730, %v3225
    %v3227 = vpop.f32.mrf.mxu0
    %v3228 = vadd.f32 %v2732, %v3227
    %3229 = vdwg.mxu0
    %3230 = vmatprep.subr.bf16.mxu0 %v3117
    %3231 = vmatpush1.bf16.msra.mxu0 %v3116
    %3232 = vmatprep.subr.bf16.mxu0 %v3110
    %3233 = vmatpush1.bf16.msra.mxu0 %v3109
    %3234 = vmatprep.subr.bf16.mxu0 %v3103
    %3235 = vmatpush1.bf16.msra.mxu0 %v3102
    %3236 = vmatprep.subr.bf16.mxu0 %v3096
    %3237 = vmatpush1.bf16.msra.mxu0 %v3095
    %3238 = vmatprep.subr.bf16.mxu0 %v3089
    %3239 = vmatpush1.bf16.msra.mxu0 %v3088
    %3240 = vmatprep.subr.bf16.mxu0 %v3082
    %3241 = vmatpush1.bf16.msra.mxu0 %v3081
    %3242 = vmatprep.subr.bf16.mxu0 %v3075
    %3243 = vmatpush1.bf16.msra.mxu0 %v3074
    %3244 = vmatprep.subr.bf16.mxu0 %v3068
    %3245 = vmatpush1.bf16.msra.mxu0 %v3067
    %3246 = vmatprep.subr.bf16.mxu0 0
    %3247 = vmatpush2.bf16.msra.mxu0 0
    %3248 = vmatprep.subr.bf16.mxu0 0
    %3249 = vmatpush2.bf16.msra.mxu0 0
    %3250 = vmatprep.subr.bf16.mxu0 0
    %3251 = vmatpush2.bf16.msra.mxu0 0
    %3252 = vmatprep.subr.bf16.mxu0 0
    %3253 = vmatpush2.bf16.msra.mxu0 0
    %3254 = vmatprep.subr.bf16.mxu0 0
    %3255 = vmatpush2.bf16.msra.mxu0 0
    %3256 = vmatprep.subr.bf16.mxu0 0
    %3257 = vmatpush2.bf16.msra.mxu0 0
    %3258 = vmatprep.subr.bf16.mxu0 0
    %3259 = vmatpush2.bf16.msra.mxu0 0
    %3260 = vmatprep.subr.bf16.mxu0 0
    %3261 = vmatpush2.bf16.msra.mxu0 0
    %3262 = vmatprep.mubr.bf16.mxu0 0
    %3263 = vmatmul.mubr.bf16.gmra.mxu0 %v2190
    %v3264 = vpop.f32.mrf.mxu0
    %v3265 = vadd.f32 %v2769, %v3264
    %v3266 = vpop.f32.mrf.mxu0
    %v3267 = vadd.f32 %v2771, %v3266
    %v3268 = vpop.f32.mrf.mxu0
    %v3269 = vadd.f32 %v2773, %v3268
    %v3270 = vpop.f32.mrf.mxu0
    %v3271 = vadd.f32 %v2775, %v3270
    %3272 = vmatprep.mubr.bf16.mxu0 0
    %3273 = vmatmul.mubr.bf16.gmra.mxu0 %v2191
    %v3274 = vpop.f32.mrf.mxu0
    %v3275 = vadd.f32 %v2779, %v3274
    %v3276 = vpop.f32.mrf.mxu0
    %v3277 = vadd.f32 %v2781, %v3276
    %v3278 = vpop.f32.mrf.mxu0
    %v3279 = vadd.f32 %v2783, %v3278
    %v3280 = vpop.f32.mrf.mxu0
    %v3281 = vadd.f32 %v2785, %v3280
    %3282 = vdwg.mxu0
    %3283 = vmatprep.subr.bf16.mxu0 %v3119
    %3284 = vmatpush1.bf16.msra.mxu0 %v3118
    %3285 = vmatprep.subr.bf16.mxu0 %v3112
    %3286 = vmatpush1.bf16.msra.mxu0 %v3111
    %3287 = vmatprep.subr.bf16.mxu0 %v3105
    %3288 = vmatpush1.bf16.msra.mxu0 %v3104
    %3289 = vmatprep.subr.bf16.mxu0 %v3098
    %3290 = vmatpush1.bf16.msra.mxu0 %v3097
    %3291 = vmatprep.subr.bf16.mxu0 %v3091
    %3292 = vmatpush1.bf16.msra.mxu0 %v3090
    %3293 = vmatprep.subr.bf16.mxu0 %v3084
    %3294 = vmatpush1.bf16.msra.mxu0 %v3083
    %3295 = vmatprep.subr.bf16.mxu0 %v3077
    %3296 = vmatpush1.bf16.msra.mxu0 %v3076
    %3297 = vmatprep.subr.bf16.mxu0 %v3070
    %3298 = vmatpush1.bf16.msra.mxu0 %v3069
    %3299 = vmatprep.subr.bf16.mxu0 0
    %3300 = vmatpush2.bf16.msra.mxu0 0
    %3301 = vmatprep.subr.bf16.mxu0 0
    %3302 = vmatpush2.bf16.msra.mxu0 0
    %3303 = vmatprep.subr.bf16.mxu0 0
    %3304 = vmatpush2.bf16.msra.mxu0 0
    %3305 = vmatprep.subr.bf16.mxu0 0
    %3306 = vmatpush2.bf16.msra.mxu0 0
    %3307 = vmatprep.subr.bf16.mxu0 0
    %3308 = vmatpush2.bf16.msra.mxu0 0
    %3309 = vmatprep.subr.bf16.mxu0 0
    %3310 = vmatpush2.bf16.msra.mxu0 0
    %3311 = vmatprep.subr.bf16.mxu0 0
    %3312 = vmatpush2.bf16.msra.mxu0 0
    %3313 = vmatprep.subr.bf16.mxu0 0
    %3314 = vmatpush2.bf16.msra.mxu0 0
    %3315 = vmatprep.mubr.bf16.mxu0 0
    %3316 = vmatmul.mubr.bf16.gmra.mxu0 %v2190
    %v3317 = vpop.f32.mrf.mxu0
    %v3318 = vadd.f32 %v2822, %v3317
    %v3319 = vpop.f32.mrf.mxu0
    %v3320 = vadd.f32 %v2824, %v3319
    %v3321 = vpop.f32.mrf.mxu0
    %v3322 = vadd.f32 %v2826, %v3321
    %v3323 = vpop.f32.mrf.mxu0
    %v3324 = vadd.f32 %v2828, %v3323
    %3325 = vmatprep.mubr.bf16.mxu0 0
    %3326 = vmatmul.mubr.bf16.gmra.mxu0 %v2191
    %v3327 = vpop.f32.mrf.mxu0
    %v3328 = vadd.f32 %v2832, %v3327
    %v3329 = vpop.f32.mrf.mxu0
    %v3330 = vadd.f32 %v2834, %v3329
    %v3331 = vpop.f32.mrf.mxu0
    %v3332 = vadd.f32 %v2836, %v3331
    %v3333 = vpop.f32.mrf.mxu0
    %v3334 = vadd.f32 %v2838, %v3333
    %3335 = vdwg.mxu0
    %3336 = vmatprep.subr.bf16.mxu0 0
    %3337 = vmatpush1.bf16.msra.mxu0 %v3120
    %3338 = vmatprep.subr.bf16.mxu0 0
    %3339 = vmatpush1.bf16.msra.mxu0 %v3113
    %3340 = vmatprep.subr.bf16.mxu0 0
    %3341 = vmatpush1.bf16.msra.mxu0 %v3106
    %3342 = vmatprep.subr.bf16.mxu0 0
    %3343 = vmatpush1.bf16.msra.mxu0 %v3099
    %3344 = vmatprep.subr.bf16.mxu0 0
    %3345 = vmatpush1.bf16.msra.mxu0 %v3092
    %3346 = vmatprep.subr.bf16.mxu0 0
    %3347 = vmatpush1.bf16.msra.mxu0 %v3085
    %3348 = vmatprep.subr.bf16.mxu0 0
    %3349 = vmatpush1.bf16.msra.mxu0 %v3078
    %3350 = vmatprep.subr.bf16.mxu0 0
    %3351 = vmatpush1.bf16.msra.mxu0 %v3071
    %3352 = vmatprep.subr.bf16.mxu0 0
    %3353 = vmatpush2.bf16.msra.mxu0 0
    %3354 = vmatprep.subr.bf16.mxu0 0
    %3355 = vmatpush2.bf16.msra.mxu0 0
    %3356 = vmatprep.subr.bf16.mxu0 0
    %3357 = vmatpush2.bf16.msra.mxu0 0
    %3358 = vmatprep.subr.bf16.mxu0 0
    %3359 = vmatpush2.bf16.msra.mxu0 0
    %3360 = vmatprep.subr.bf16.mxu0 0
    %3361 = vmatpush2.bf16.msra.mxu0 0
    %3362 = vmatprep.subr.bf16.mxu0 0
    %3363 = vmatpush2.bf16.msra.mxu0 0
    %3364 = vmatprep.subr.bf16.mxu0 0
    %3365 = vmatpush2.bf16.msra.mxu0 0
    %3366 = vmatprep.subr.bf16.mxu0 0
    %3367 = vmatpush2.bf16.msra.mxu0 0
    %3368 = vmatprep.mubr.bf16.mxu0 0
    %3369 = vmatmul.mubr.bf16.gmra.mxu0 %v2190
    %v3370 = vpop.f32.mrf.mxu0
    %v3371 = vadd.f32 %v2875, %v3370
    %v3372 = vpop.f32.mrf.mxu0
    %v3373 = vpop.f32.mrf.mxu0
    %v3374 = vadd.f32 %v2878, %v3373
    %v3375 = vpop.f32.mrf.mxu0
    %3376 = vmatprep.mubr.bf16.mxu0 0
    %3377 = vmatmul.mubr.bf16.gmra.mxu0 %v2191
    %v3378 = vpop.f32.mrf.mxu0
    %v3379 = vadd.f32 %v2883, %v3378
    %v3380 = vpop.f32.mrf.mxu0
    %v3381 = vpop.f32.mrf.mxu0
    %v3382 = vadd.f32 %v2886, %v3381
    %v3383 = vpop.f32.mrf.mxu0
    %3384 = vdwg.mxu0
    %v3385 = vld [vmem:[%s13] sm:$0xf]
    %v3386 = vld [vmem:[%s13 + $0x4] sm:$0xf]
    %v3387 = vld [vmem:[%s13 + $0x8] sm:$0xf]
    %v3388 = vld [vmem:[%s13 + $0xc] sm:$0xf]
    %v3389 = vpack.c.bf16 %v2188, %v2186
    %v3390 = vpack.c.bf16 %v2189, %v2187
    %v3395 = vunpack.c.l.b16 %v3385
    %v3396 = vunpack.c.l.b16 %v3386
    %v3397 = vunpack.c.l.b16 %v3387
    %v3398 = vunpack.c.l.b16 %v3388
    %v3399 = vpack.c.b16 %v3396, %v3395
    %v3400 = vpack.c.b16 %v3398, %v3397
    %v3402 = vsel %vm2271, %v3399, 0
    %v3405 = vsel %vm2271, %v3400, 0
    %3407 = vmatprep.subr.bf16.mxu0 0
    %3408 = vmatpush1.bf16.msra.mxu0 0
    %3409 = vmatprep.subr.bf16.mxu0 0
    %3410 = vmatpush1.bf16.msra.mxu0 0
    %3411 = vmatprep.subr.bf16.mxu0 0
    %3412 = vmatpush1.bf16.msra.mxu0 0
    %3413 = vmatprep.subr.bf16.mxu0 0
    %3414 = vmatpush1.bf16.msra.mxu0 0
    %3415 = vmatprep.subr.bf16.mxu0 0
    %3416 = vmatpush1.bf16.msra.mxu0 0
    %3417 = vmatprep.subr.bf16.mxu0 0
    %3418 = vmatpush1.bf16.msra.mxu0 0
    %3419 = vmatprep.subr.bf16.mxu0 0
    %3420 = vmatpush1.bf16.msra.mxu0 0
    %3421 = vmatprep.subr.bf16.mxu0 %v3390
    %3422 = vmatpush1.bf16.msra.mxu0 %v3389
    %3423 = vmatprep.subr.bf16.mxu0 0
    %3424 = vmatpush2.bf16.msra.mxu0 0
    %3425 = vmatprep.subr.bf16.mxu0 0
    %3426 = vmatpush2.bf16.msra.mxu0 0
    %3427 = vmatprep.subr.bf16.mxu0 0
    %3428 = vmatpush2.bf16.msra.mxu0 0
    %3429 = vmatprep.subr.bf16.mxu0 0
    %3430 = vmatpush2.bf16.msra.mxu0 0
    %3431 = vmatprep.subr.bf16.mxu0 0
    %3432 = vmatpush2.bf16.msra.mxu0 0
    %3433 = vmatprep.subr.bf16.mxu0 0
    %3434 = vmatpush2.bf16.msra.mxu0 0
    %3435 = vmatprep.subr.bf16.mxu0 0
    %3436 = vmatpush2.bf16.msra.mxu0 0
    %3437 = vmatprep.subr.bf16.mxu0 0
    %3438 = vmatpush2.bf16.msra.mxu0 0
    %3439 = vmatprep.mubr.bf16.mxu0 0
    %3440 = vmatmul.mubr.bf16.gmra.mxu0 %v3402
    %v3441 = vpop.f32.mrf.mxu0
    %v3442 = vadd.f32 0.0, %v3441
    %v3443 = vpop.f32.mrf.mxu0
    %v3444 = vadd.f32 0.0, %v3443
    %v3445 = vpop.f32.mrf.mxu0
    %v3446 = vadd.f32 0.0, %v3445
    %v3447 = vpop.f32.mrf.mxu0
    %v3448 = vadd.f32 0.0, %v3447
    %3449 = vmatprep.mubr.bf16.mxu0 0
    %3450 = vmatmul.mubr.bf16.gmra.mxu0 %v3405
    %v3451 = vpop.f32.mrf.mxu0
    %v3452 = vadd.f32 0.0, %v3451
    %v3453 = vpop.f32.mrf.mxu0
    %v3454 = vadd.f32 0.0, %v3453
    %v3455 = vpop.f32.mrf.mxu0
    %v3456 = vadd.f32 0.0, %v3455
    %v3457 = vpop.f32.mrf.mxu0
    %v3458 = vadd.f32 0.0, %v3457
    %3459 = vdwg.mxu0
    %v3460 = vpack.c.bf16 %v3446, %v3442
    %v3461 = vpack.c.bf16 %v3448, %v3444
    %v3462 = vpack.c.bf16 %v3456, %v3452
    %v3463 = vpack.c.bf16 %v3458, %v3454
    %v3464 = vld [vmem:[#allocation16] sm:$0xff]
    %v3465 = vld [vmem:[#allocation16 + $0x8] sm:$0xff]
    %v3466 = vld [vmem:[#allocation16 + $0x10] sm:$0xff]
    %v3467 = vld [vmem:[#allocation16 + $0x18] sm:$0xf]
    %v3468 = vld [vmem:[#allocation16 + $0x1c] sm:$0xff]
    %v3469 = vld [vmem:[#allocation16 + $0x24] sm:$0xff]
    %v3470 = vld [vmem:[#allocation16 + $0x2c] sm:$0xff]
    %v3471 = vld [vmem:[#allocation16 + $0x34] sm:$0xf]
    %v3472 = vld [vmem:[#allocation16 + $0x38] sm:$0xff]
    %v3473 = vld [vmem:[#allocation16 + $0x40] sm:$0xff]
    %v3474 = vld [vmem:[#allocation16 + $0x48] sm:$0xff]
    %v3475 = vld [vmem:[#allocation16 + $0x50] sm:$0xf]
    %v3476 = vld [vmem:[#allocation16 + $0x54] sm:$0xff]
    %v3477 = vld [vmem:[#allocation16 + $0x5c] sm:$0xff]
    %v3478 = vld [vmem:[#allocation16 + $0x64] sm:$0xff]
    %v3479 = vld [vmem:[#allocation16 + $0x6c] sm:$0xf]
    %v3480 = vld [vmem:[#allocation16 + $0x70] sm:$0xff]
    %v3481 = vld [vmem:[#allocation16 + $0x78] sm:$0xff]
    %v3482 = vld [vmem:[#allocation16 + $0x80] sm:$0xff]
    %v3483 = vld [vmem:[#allocation16 + $0x88] sm:$0xf]
    %v3484 = vld [vmem:[#allocation16 + $0x8c] sm:$0xff]
    %v3485 = vld [vmem:[#allocation16 + $0x94] sm:$0xff]
    %v3486 = vld [vmem:[#allocation16 + $0x9c] sm:$0xff]
    %v3487 = vld [vmem:[#allocation16 + $0xa4] sm:$0xf]
    %v3488 = vld [vmem:[#allocation16 + $0xa8] sm:$0xff]
    %v3489 = vld [vmem:[#allocation16 + $0xb0] sm:$0xff]
    %v3490 = vld [vmem:[#allocation16 + $0xb8] sm:$0xff]
    %v3491 = vld [vmem:[#allocation16 + $0xc0] sm:$0xf]
    %v3492 = vld [vmem:[#allocation16 + $0xc4] sm:$0xff]
    %v3493 = vld [vmem:[#allocation16 + $0xcc] sm:$0xff]
    %v3494 = vld [vmem:[#allocation16 + $0xd4] sm:$0xff]
    %v3495 = vld [vmem:[#allocation16 + $0xdc] sm:$0xf]
    %v3496 = vld [vmem:[#allocation16 + $0xe0] sm:$0xff]
    %v3497 = vld [vmem:[#allocation16 + $0xe8] sm:$0xff]
    %v3498 = vld [vmem:[#allocation16 + $0xf0] sm:$0xff]
    %v3499 = vld [vmem:[#allocation16 + $0xf8] sm:$0xf]
    %v3500 = vld [vmem:[#allocation16 + $0xfc] sm:$0xff]
    %v3501 = vld [vmem:[#allocation16 + $0x104] sm:$0xff]
    %v3502 = vld [vmem:[#allocation16 + $0x10c] sm:$0xff]
    %v3503 = vld [vmem:[#allocation16 + $0x114] sm:$0xf]
    %v3504 = vld [vmem:[#allocation16 + $0x118] sm:$0xff]
    %v3505 = vld [vmem:[#allocation16 + $0x120] sm:$0xff]
    %v3506 = vld [vmem:[#allocation16 + $0x128] sm:$0xff]
    %v3507 = vld [vmem:[#allocation16 + $0x130] sm:$0xf]
    %v3508 = vld [vmem:[#allocation16 + $0x134] sm:$0xff]
    %v3509 = vld [vmem:[#allocation16 + $0x13c] sm:$0xff]
    %v3510 = vld [vmem:[#allocation16 + $0x144] sm:$0xff]
    %v3511 = vld [vmem:[#allocation16 + $0x14c] sm:$0xf]
    %v3512 = vld [vmem:[#allocation16 + $0x150] sm:$0xff]
    %v3513 = vld [vmem:[#allocation16 + $0x158] sm:$0xff]
    %v3514 = vld [vmem:[#allocation16 + $0x160] sm:$0xff]
    %v3515 = vld [vmem:[#allocation16 + $0x168] sm:$0xf]
    %v3516 = vld [vmem:[#allocation16 + $0x16c] sm:$0xff]
    %v3517 = vld [vmem:[#allocation16 + $0x174] sm:$0xff]
    %v3518 = vld [vmem:[#allocation16 + $0x17c] sm:$0xff]
    %v3519 = vld [vmem:[#allocation16 + $0x184] sm:$0xf]
    %v3520 = vld [vmem:[#allocation16 + $0x188] sm:$0xff]
    %v3521 = vld [vmem:[#allocation16 + $0x190] sm:$0xff]
    %v3522 = vld [vmem:[#allocation16 + $0x198] sm:$0xff]
    %v3523 = vld [vmem:[#allocation16 + $0x1a0] sm:$0xf]
    %v3524 = vld [vmem:[#allocation16 + $0x1a4] sm:$0xff]
    %v3525 = vld [vmem:[#allocation16 + $0x1ac] sm:$0xff]
    %v3526 = vld [vmem:[#allocation16 + $0x1b4] sm:$0xff]
    %v3527 = vld [vmem:[#allocation16 + $0x1bc] sm:$0xf]
    %v3528 = vld [vmem:[#allocation16 + $0x1c0] sm:$0xff]
    %v3529 = vld [vmem:[#allocation16 + $0x1c8] sm:$0xff]
    %v3530 = vld [vmem:[#allocation16 + $0x1d0] sm:$0xff]
    %v3531 = vld [vmem:[#allocation16 + $0x1d8] sm:$0xf]
    %v3532 = vld [vmem:[#allocation16 + $0x1dc] sm:$0xff]
    %v3533 = vld [vmem:[#allocation16 + $0x1e4] sm:$0xff]
    %v3534 = vld [vmem:[#allocation16 + $0x1ec] sm:$0xff]
    %v3535 = vld [vmem:[#allocation16 + $0x1f4] sm:$0xf]
    %v3536 = vld [vmem:[#allocation16 + $0x1f8] sm:$0xff]
    %v3537 = vld [vmem:[#allocation16 + $0x200] sm:$0xff]
    %v3538 = vld [vmem:[#allocation16 + $0x208] sm:$0xff]
    %v3539 = vld [vmem:[#allocation16 + $0x210] sm:$0xf]
    %v3540 = vld [vmem:[#allocation16 + $0x214] sm:$0xff]
    %v3541 = vld [vmem:[#allocation16 + $0x21c] sm:$0xff]
    %v3542 = vld [vmem:[#allocation16 + $0x224] sm:$0xff]
    %v3543 = vld [vmem:[#allocation16 + $0x22c] sm:$0xf]
    %v3544 = vld [vmem:[#allocation16 + $0x230] sm:$0xff]
    %v3545 = vld [vmem:[#allocation16 + $0x238] sm:$0xff]
    %v3546 = vld [vmem:[#allocation16 + $0x240] sm:$0xff]
    %v3547 = vld [vmem:[#allocation16 + $0x248] sm:$0xf]
    %v3548 = vld [vmem:[#allocation16 + $0x24c] sm:$0xff]
    %v3549 = vld [vmem:[#allocation16 + $0x254] sm:$0xff]
    %v3550 = vld [vmem:[#allocation16 + $0x25c] sm:$0xff]
    %v3551 = vld [vmem:[#allocation16 + $0x264] sm:$0xf]
    %v3552 = vld [vmem:[#allocation16 + $0x268] sm:$0xff]
    %v3553 = vld [vmem:[#allocation16 + $0x270] sm:$0xff]
    %v3554 = vld [vmem:[#allocation16 + $0x278] sm:$0xff]
    %v3555 = vld [vmem:[#allocation16 + $0x280] sm:$0xf]
    %v3556 = vld [vmem:[#allocation16 + $0x284] sm:$0xff]
    %v3557 = vld [vmem:[#allocation16 + $0x28c] sm:$0xff]
    %v3558 = vld [vmem:[#allocation16 + $0x294] sm:$0xff]
    %v3559 = vld [vmem:[#allocation16 + $0x29c] sm:$0xf]
    %v3560 = vld [vmem:[#allocation16 + $0x2a0] sm:$0xff]
    %v3561 = vld [vmem:[#allocation16 + $0x2a8] sm:$0xff]
    %v3562 = vld [vmem:[#allocation16 + $0x2b0] sm:$0xff]
    %v3563 = vld [vmem:[#allocation16 + $0x2b8] sm:$0xf]
    %v3564 = vld [vmem:[#allocation16 + $0x2bc] sm:$0xff]
    %v3565 = vld [vmem:[#allocation16 + $0x2c4] sm:$0xff]
    %v3566 = vld [vmem:[#allocation16 + $0x2cc] sm:$0xff]
    %v3567 = vld [vmem:[#allocation16 + $0x2d4] sm:$0xf]
    %v3568 = vld [vmem:[#allocation16 + $0x2d8] sm:$0xff]
    %v3569 = vld [vmem:[#allocation16 + $0x2e0] sm:$0xff]
    %v3570 = vld [vmem:[#allocation16 + $0x2e8] sm:$0xff]
    %v3571 = vld [vmem:[#allocation16 + $0x2f0] sm:$0xf]
    %v3572 = vld [vmem:[#allocation16 + $0x2f4] sm:$0xff]
    %v3573 = vld [vmem:[#allocation16 + $0x2fc] sm:$0xff]
    %v3574 = vld [vmem:[#allocation16 + $0x304] sm:$0xff]
    %v3575 = vld [vmem:[#allocation16 + $0x30c] sm:$0xf]
    %v3576 = vld [vmem:[#allocation16 + $0x310] sm:$0xff]
    %v3577 = vld [vmem:[#allocation16 + $0x318] sm:$0xff]
    %v3578 = vld [vmem:[#allocation16 + $0x320] sm:$0xff]
    %v3579 = vld [vmem:[#allocation16 + $0x328] sm:$0xf]
    %v3580 = vld [vmem:[#allocation16 + $0x32c] sm:$0xff]
    %v3581 = vld [vmem:[#allocation16 + $0x334] sm:$0xff]
    %v3582 = vld [vmem:[#allocation16 + $0x33c] sm:$0xff]
    %v3583 = vld [vmem:[#allocation16 + $0x344] sm:$0xf]
    %v3584 = vld [vmem:[#allocation16 + $0x348] sm:$0xff]
    %v3585 = vld [vmem:[#allocation16 + $0x350] sm:$0xff]
    %v3586 = vld [vmem:[#allocation16 + $0x358] sm:$0xff]
    %v3587 = vld [vmem:[#allocation16 + $0x360] sm:$0xf]
    %v3588 = vld [vmem:[#allocation16 + $0x364] sm:$0xff]
    %v3589 = vld [vmem:[#allocation16 + $0x36c] sm:$0xff]
    %v3590 = vld [vmem:[#allocation16 + $0x374] sm:$0xff]
    %v3591 = vld [vmem:[#allocation16 + $0x37c] sm:$0xf]
    %v3720 = vunpack.c.l.b16 %v3464
    %v3721 = vunpack.c.h.b16 %v3464
    %v3722 = vunpack.c.l.b16 %v3465
    %v3723 = vunpack.c.h.b16 %v3465
    %v3724 = vunpack.c.l.b16 %v3466
    %v3725 = vunpack.c.h.b16 %v3466
    %v3726 = vunpack.c.l.b16 %v3467
    %v3727 = vunpack.c.l.b16 %v3468
    %v3728 = vunpack.c.h.b16 %v3468
    %v3729 = vunpack.c.l.b16 %v3469
    %v3730 = vunpack.c.h.b16 %v3469
    %v3731 = vunpack.c.l.b16 %v3470
    %v3732 = vunpack.c.h.b16 %v3470
    %v3733 = vunpack.c.l.b16 %v3471
    %v3734 = vunpack.c.l.b16 %v3472
    %v3735 = vunpack.c.h.b16 %v3472
    %v3736 = vunpack.c.l.b16 %v3473
    %v3737 = vunpack.c.h.b16 %v3473
    %v3738 = vunpack.c.l.b16 %v3474
    %v3739 = vunpack.c.h.b16 %v3474
    %v3740 = vunpack.c.l.b16 %v3475
    %v3741 = vunpack.c.l.b16 %v3476
    %v3742 = vunpack.c.h.b16 %v3476
    %v3743 = vunpack.c.l.b16 %v3477
    %v3744 = vunpack.c.h.b16 %v3477
    %v3745 = vunpack.c.l.b16 %v3478
    %v3746 = vunpack.c.h.b16 %v3478
    %v3747 = vunpack.c.l.b16 %v3479
    %v3748 = vunpack.c.l.b16 %v3480
    %v3749 = vunpack.c.h.b16 %v3480
    %v3750 = vunpack.c.l.b16 %v3481
    %v3751 = vunpack.c.h.b16 %v3481
    %v3752 = vunpack.c.l.b16 %v3482
    %v3753 = vunpack.c.h.b16 %v3482
    %v3754 = vunpack.c.l.b16 %v3483
    %v3755 = vunpack.c.l.b16 %v3484
    %v3756 = vunpack.c.h.b16 %v3484
    %v3757 = vunpack.c.l.b16 %v3485
    %v3758 = vunpack.c.h.b16 %v3485
    %v3759 = vunpack.c.l.b16 %v3486
    %v3760 = vunpack.c.h.b16 %v3486
    %v3761 = vunpack.c.l.b16 %v3487
    %v3762 = vunpack.c.l.b16 %v3488
    %v3763 = vunpack.c.h.b16 %v3488
    %v3764 = vunpack.c.l.b16 %v3489
    %v3765 = vunpack.c.h.b16 %v3489
    %v3766 = vunpack.c.l.b16 %v3490
    %v3767 = vunpack.c.h.b16 %v3490
    %v3768 = vunpack.c.l.b16 %v3491
    %v3769 = vunpack.c.l.b16 %v3492
    %v3770 = vunpack.c.h.b16 %v3492
    %v3771 = vunpack.c.l.b16 %v3493
    %v3772 = vunpack.c.h.b16 %v3493
    %v3773 = vunpack.c.l.b16 %v3494
    %v3774 = vunpack.c.h.b16 %v3494
    %v3775 = vunpack.c.l.b16 %v3495
    %v3776 = vunpack.c.l.b16 %v3496
    %v3777 = vunpack.c.h.b16 %v3496
    %v3778 = vunpack.c.l.b16 %v3497
    %v3779 = vunpack.c.h.b16 %v3497
    %v3780 = vunpack.c.l.b16 %v3498
    %v3781 = vunpack.c.h.b16 %v3498
    %v3782 = vunpack.c.l.b16 %v3499
    %v3783 = vunpack.c.l.b16 %v3500
    %v3784 = vunpack.c.h.b16 %v3500
    %v3785 = vunpack.c.l.b16 %v3501
    %v3786 = vunpack.c.h.b16 %v3501
    %v3787 = vunpack.c.l.b16 %v3502
    %v3788 = vunpack.c.h.b16 %v3502
    %v3789 = vunpack.c.l.b16 %v3503
    %v3790 = vunpack.c.l.b16 %v3504
    %v3791 = vunpack.c.h.b16 %v3504
    %v3792 = vunpack.c.l.b16 %v3505
    %v3793 = vunpack.c.h.b16 %v3505
    %v3794 = vunpack.c.l.b16 %v3506
    %v3795 = vunpack.c.h.b16 %v3506
    %v3796 = vunpack.c.l.b16 %v3507
    %v3797 = vunpack.c.l.b16 %v3508
    %v3798 = vunpack.c.h.b16 %v3508
    %v3799 = vunpack.c.l.b16 %v3509
    %v3800 = vunpack.c.h.b16 %v3509
    %v3801 = vunpack.c.l.b16 %v3510
    %v3802 = vunpack.c.h.b16 %v3510
    %v3803 = vunpack.c.l.b16 %v3511
    %v3804 = vunpack.c.l.b16 %v3512
    %v3805 = vunpack.c.h.b16 %v3512
    %v3806 = vunpack.c.l.b16 %v3513
    %v3807 = vunpack.c.h.b16 %v3513
    %v3808 = vunpack.c.l.b16 %v3514
    %v3809 = vunpack.c.h.b16 %v3514
    %v3810 = vunpack.c.l.b16 %v3515
    %v3811 = vunpack.c.l.b16 %v3516
    %v3812 = vunpack.c.h.b16 %v3516
    %v3813 = vunpack.c.l.b16 %v3517
    %v3814 = vunpack.c.h.b16 %v3517
    %v3815 = vunpack.c.l.b16 %v3518
    %v3816 = vunpack.c.h.b16 %v3518
    %v3817 = vunpack.c.l.b16 %v3519
    %v3818 = vunpack.c.l.b16 %v3520
    %v3819 = vunpack.c.h.b16 %v3520
    %v3820 = vunpack.c.l.b16 %v3521
    %v3821 = vunpack.c.h.b16 %v3521
    %v3822 = vunpack.c.l.b16 %v3522
    %v3823 = vunpack.c.h.b16 %v3522
    %v3824 = vunpack.c.l.b16 %v3523
    %v3825 = vunpack.c.l.b16 %v3524
    %v3826 = vunpack.c.h.b16 %v3524
    %v3827 = vunpack.c.l.b16 %v3525
    %v3828 = vunpack.c.h.b16 %v3525
    %v3829 = vunpack.c.l.b16 %v3526
    %v3830 = vunpack.c.h.b16 %v3526
    %v3831 = vunpack.c.l.b16 %v3527
    %v3832 = vunpack.c.l.b16 %v3528
    %v3833 = vunpack.c.h.b16 %v3528
    %v3834 = vunpack.c.l.b16 %v3529
    %v3835 = vunpack.c.h.b16 %v3529
    %v3836 = vunpack.c.l.b16 %v3530
    %v3837 = vunpack.c.h.b16 %v3530
    %v3838 = vunpack.c.l.b16 %v3531
    %v3839 = vunpack.c.l.b16 %v3532
    %v3840 = vunpack.c.h.b16 %v3532
    %v3841 = vunpack.c.l.b16 %v3533
    %v3842 = vunpack.c.h.b16 %v3533
    %v3843 = vunpack.c.l.b16 %v3534
    %v3844 = vunpack.c.h.b16 %v3534
    %v3845 = vunpack.c.l.b16 %v3535
    %v3846 = vunpack.c.l.b16 %v3536
    %v3847 = vunpack.c.h.b16 %v3536
    %v3848 = vunpack.c.l.b16 %v3537
    %v3849 = vunpack.c.h.b16 %v3537
    %v3850 = vunpack.c.l.b16 %v3538
    %v3851 = vunpack.c.h.b16 %v3538
    %v3852 = vunpack.c.l.b16 %v3539
    %v3853 = vunpack.c.l.b16 %v3540
    %v3854 = vunpack.c.h.b16 %v3540
    %v3855 = vunpack.c.l.b16 %v3541
    %v3856 = vunpack.c.h.b16 %v3541
    %v3857 = vunpack.c.l.b16 %v3542
    %v3858 = vunpack.c.h.b16 %v3542
    %v3859 = vunpack.c.l.b16 %v3543
    %v3860 = vunpack.c.l.b16 %v3544
    %v3861 = vunpack.c.h.b16 %v3544
    %v3862 = vunpack.c.l.b16 %v3545
    %v3863 = vunpack.c.h.b16 %v3545
    %v3864 = vunpack.c.l.b16 %v3546
    %v3865 = vunpack.c.h.b16 %v3546
    %v3866 = vunpack.c.l.b16 %v3547
    %v3867 = vunpack.c.l.b16 %v3548
    %v3868 = vunpack.c.h.b16 %v3548
    %v3869 = vunpack.c.l.b16 %v3549
    %v3870 = vunpack.c.h.b16 %v3549
    %v3871 = vunpack.c.l.b16 %v3550
    %v3872 = vunpack.c.h.b16 %v3550
    %v3873 = vunpack.c.l.b16 %v3551
    %v3874 = vunpack.c.l.b16 %v3552
    %v3875 = vunpack.c.h.b16 %v3552
    %v3876 = vunpack.c.l.b16 %v3553
    %v3877 = vunpack.c.h.b16 %v3553
    %v3878 = vunpack.c.l.b16 %v3554
    %v3879 = vunpack.c.h.b16 %v3554
    %v3880 = vunpack.c.l.b16 %v3555
    %v3881 = vunpack.c.l.b16 %v3556
    %v3882 = vunpack.c.h.b16 %v3556
    %v3883 = vunpack.c.l.b16 %v3557
    %v3884 = vunpack.c.h.b16 %v3557
    %v3885 = vunpack.c.l.b16 %v3558
    %v3886 = vunpack.c.h.b16 %v3558
    %v3887 = vunpack.c.l.b16 %v3559
    %v3888 = vunpack.c.l.b16 %v3560
    %v3889 = vunpack.c.h.b16 %v3560
    %v3890 = vunpack.c.l.b16 %v3561
    %v3891 = vunpack.c.h.b16 %v3561
    %v3892 = vunpack.c.l.b16 %v3562
    %v3893 = vunpack.c.h.b16 %v3562
    %v3894 = vunpack.c.l.b16 %v3563
    %v3895 = vunpack.c.l.b16 %v3564
    %v3896 = vunpack.c.h.b16 %v3564
    %v3897 = vunpack.c.l.b16 %v3565
    %v3898 = vunpack.c.h.b16 %v3565
    %v3899 = vunpack.c.l.b16 %v3566
    %v3900 = vunpack.c.h.b16 %v3566
    %v3901 = vunpack.c.l.b16 %v3567
    %v3902 = vunpack.c.l.b16 %v3568
    %v3903 = vunpack.c.h.b16 %v3568
    %v3904 = vunpack.c.l.b16 %v3569
    %v3905 = vunpack.c.h.b16 %v3569
    %v3906 = vunpack.c.l.b16 %v3570
    %v3907 = vunpack.c.h.b16 %v3570
    %v3908 = vunpack.c.l.b16 %v3571
    %v3909 = vunpack.c.l.b16 %v3572
    %v3910 = vunpack.c.h.b16 %v3572
    %v3911 = vunpack.c.l.b16 %v3573
    %v3912 = vunpack.c.h.b16 %v3573
    %v3913 = vunpack.c.l.b16 %v3574
    %v3914 = vunpack.c.h.b16 %v3574
    %v3915 = vunpack.c.l.b16 %v3575
    %v3916 = vunpack.c.l.b16 %v3576
    %v3917 = vunpack.c.h.b16 %v3576
    %v3918 = vunpack.c.l.b16 %v3577
    %v3919 = vunpack.c.h.b16 %v3577
    %v3920 = vunpack.c.l.b16 %v3578
    %v3921 = vunpack.c.h.b16 %v3578
    %v3922 = vunpack.c.l.b16 %v3579
    %v3923 = vunpack.c.l.b16 %v3580
    %v3924 = vunpack.c.h.b16 %v3580
    %v3925 = vunpack.c.l.b16 %v3581
    %v3926 = vunpack.c.h.b16 %v3581
    %v3927 = vunpack.c.l.b16 %v3582
    %v3928 = vunpack.c.h.b16 %v3582
    %v3929 = vunpack.c.l.b16 %v3583
    %v3930 = vunpack.c.l.b16 %v3584
    %v3931 = vunpack.c.h.b16 %v3584
    %v3932 = vunpack.c.l.b16 %v3585
    %v3933 = vunpack.c.h.b16 %v3585
    %v3934 = vunpack.c.l.b16 %v3586
    %v3935 = vunpack.c.h.b16 %v3586
    %v3936 = vunpack.c.l.b16 %v3587
    %v3937 = vunpack.c.l.b16 %v3588
    %v3938 = vunpack.c.h.b16 %v3588
    %v3939 = vunpack.c.l.b16 %v3589
    %v3940 = vunpack.c.h.b16 %v3589
    %v3941 = vunpack.c.l.b16 %v3590
    %v3942 = vunpack.c.h.b16 %v3590
    %v3943 = vunpack.c.l.b16 %v3591
    %v3944 = vpack.c.b16 %v3727, %v3720
    %v3945 = vpack.c.b16 %v3728, %v3721
    %v3946 = vpack.c.b16 %v3729, %v3722
    %v3947 = vpack.c.b16 %v3730, %v3723
    %v3948 = vpack.c.b16 %v3731, %v3724
    %v3949 = vpack.c.b16 %v3732, %v3725
    %v3950 = vpack.c.b16 %v3733, %v3726
    %v3951 = vpack.c.b16 %v3741, %v3734
    %v3952 = vpack.c.b16 %v3742, %v3735
    %v3953 = vpack.c.b16 %v3743, %v3736
    %v3954 = vpack.c.b16 %v3744, %v3737
    %v3955 = vpack.c.b16 %v3745, %v3738
    %v3956 = vpack.c.b16 %v3746, %v3739
    %v3957 = vpack.c.b16 %v3747, %v3740
    %v3958 = vpack.c.b16 %v3755, %v3748
    %v3959 = vpack.c.b16 %v3756, %v3749
    %v3960 = vpack.c.b16 %v3757, %v3750
    %v3961 = vpack.c.b16 %v3758, %v3751
    %v3962 = vpack.c.b16 %v3759, %v3752
    %v3963 = vpack.c.b16 %v3760, %v3753
    %v3964 = vpack.c.b16 %v3761, %v3754
    %v3965 = vpack.c.b16 %v3769, %v3762
    %v3966 = vpack.c.b16 %v3770, %v3763
    %v3967 = vpack.c.b16 %v3771, %v3764
    %v3968 = vpack.c.b16 %v3772, %v3765
    %v3969 = vpack.c.b16 %v3773, %v3766
    %v3970 = vpack.c.b16 %v3774, %v3767
    %v3971 = vpack.c.b16 %v3775, %v3768
    %v3972 = vpack.c.b16 %v3783, %v3776
    %v3973 = vpack.c.b16 %v3784, %v3777
    %v3974 = vpack.c.b16 %v3785, %v3778
    %v3975 = vpack.c.b16 %v3786, %v3779
    %v3976 = vpack.c.b16 %v3787, %v3780
    %v3977 = vpack.c.b16 %v3788, %v3781
    %v3978 = vpack.c.b16 %v3789, %v3782
    %v3979 = vpack.c.b16 %v3797, %v3790
    %v3980 = vpack.c.b16 %v3798, %v3791
    %v3981 = vpack.c.b16 %v3799, %v3792
    %v3982 = vpack.c.b16 %v3800, %v3793
    %v3983 = vpack.c.b16 %v3801, %v3794
    %v3984 = vpack.c.b16 %v3802, %v3795
    %v3985 = vpack.c.b16 %v3803, %v3796
    %v3986 = vpack.c.b16 %v3811, %v3804
    %v3987 = vpack.c.b16 %v3812, %v3805
    %v3988 = vpack.c.b16 %v3813, %v3806
    %v3989 = vpack.c.b16 %v3814, %v3807
    %v3990 = vpack.c.b16 %v3815, %v3808
    %v3991 = vpack.c.b16 %v3816, %v3809
    %v3992 = vpack.c.b16 %v3817, %v3810
    %v3993 = vpack.c.b16 %v3825, %v3818
    %v3994 = vpack.c.b16 %v3826, %v3819
    %v3995 = vpack.c.b16 %v3827, %v3820
    %v3996 = vpack.c.b16 %v3828, %v3821
    %v3997 = vpack.c.b16 %v3829, %v3822
    %v3998 = vpack.c.b16 %v3830, %v3823
    %v3999 = vpack.c.b16 %v3831, %v3824
    %v4000 = vpack.c.b16 %v3839, %v3832
    %v4001 = vpack.c.b16 %v3840, %v3833
    %v4002 = vpack.c.b16 %v3841, %v3834
    %v4003 = vpack.c.b16 %v3842, %v3835
    %v4004 = vpack.c.b16 %v3843, %v3836
    %v4005 = vpack.c.b16 %v3844, %v3837
    %v4006 = vpack.c.b16 %v3845, %v3838
    %v4007 = vpack.c.b16 %v3853, %v3846
    %v4008 = vpack.c.b16 %v3854, %v3847
    %v4009 = vpack.c.b16 %v3855, %v3848
    %v4010 = vpack.c.b16 %v3856, %v3849
    %v4011 = vpack.c.b16 %v3857, %v3850
    %v4012 = vpack.c.b16 %v3858, %v3851
    %v4013 = vpack.c.b16 %v3859, %v3852
    %v4014 = vpack.c.b16 %v3867, %v3860
    %v4015 = vpack.c.b16 %v3868, %v3861
    %v4016 = vpack.c.b16 %v3869, %v3862
    %v4017 = vpack.c.b16 %v3870, %v3863
    %v4018 = vpack.c.b16 %v3871, %v3864
    %v4019 = vpack.c.b16 %v3872, %v3865
    %v4020 = vpack.c.b16 %v3873, %v3866
    %v4021 = vpack.c.b16 %v3881, %v3874
    %v4022 = vpack.c.b16 %v3882, %v3875
    %v4023 = vpack.c.b16 %v3883, %v3876
    %v4024 = vpack.c.b16 %v3884, %v3877
    %v4025 = vpack.c.b16 %v3885, %v3878
    %v4026 = vpack.c.b16 %v3886, %v3879
    %v4027 = vpack.c.b16 %v3887, %v3880
    %v4028 = vpack.c.b16 %v3895, %v3888
    %v4029 = vpack.c.b16 %v3896, %v3889
    %v4030 = vpack.c.b16 %v3897, %v3890
    %v4031 = vpack.c.b16 %v3898, %v3891
    %v4032 = vpack.c.b16 %v3899, %v3892
    %v4033 = vpack.c.b16 %v3900, %v3893
    %v4034 = vpack.c.b16 %v3901, %v3894
    %v4035 = vpack.c.b16 %v3909, %v3902
    %v4036 = vpack.c.b16 %v3910, %v3903
    %v4037 = vpack.c.b16 %v3911, %v3904
    %v4038 = vpack.c.b16 %v3912, %v3905
    %v4039 = vpack.c.b16 %v3913, %v3906
    %v4040 = vpack.c.b16 %v3914, %v3907
    %v4041 = vpack.c.b16 %v3915, %v3908
    %v4042 = vpack.c.b16 %v3923, %v3916
    %v4043 = vpack.c.b16 %v3924, %v3917
    %v4044 = vpack.c.b16 %v3925, %v3918
    %v4045 = vpack.c.b16 %v3926, %v3919
    %v4046 = vpack.c.b16 %v3927, %v3920
    %v4047 = vpack.c.b16 %v3928, %v3921
    %v4048 = vpack.c.b16 %v3929, %v3922
    %v4049 = vpack.c.b16 %v3937, %v3930
    %v4050 = vpack.c.b16 %v3938, %v3931
    %v4051 = vpack.c.b16 %v3939, %v3932
    %v4052 = vpack.c.b16 %v3940, %v3933
    %v4053 = vpack.c.b16 %v3941, %v3934
    %v4054 = vpack.c.b16 %v3942, %v3935
    %v4055 = vpack.c.b16 %v3943, %v3936
    %4168 = vmatprep.subr.bf16.mxu0 %v3994
    %4169 = vmatpush1.bf16.msra.mxu0 %v3993
    %4170 = vmatprep.subr.bf16.mxu0 %v3987
    %4171 = vmatpush1.bf16.msra.mxu0 %v3986
    %4172 = vmatprep.subr.bf16.mxu0 %v3980
    %4173 = vmatpush1.bf16.msra.mxu0 %v3979
    %4174 = vmatprep.subr.bf16.mxu0 %v3973
    %4175 = vmatpush1.bf16.msra.mxu0 %v3972
    %4176 = vmatprep.subr.bf16.mxu0 %v3966
    %4177 = vmatpush1.bf16.msra.mxu0 %v3965
    %4178 = vmatprep.subr.bf16.mxu0 %v3959
    %4179 = vmatpush1.bf16.msra.mxu0 %v3958
    %4180 = vmatprep.subr.bf16.mxu0 %v3952
    %4181 = vmatpush1.bf16.msra.mxu0 %v3951
    %4182 = vmatprep.subr.bf16.mxu0 %v3945
    %4183 = vmatpush1.bf16.msra.mxu0 %v3944
    %4184 = vmatprep.subr.bf16.mxu0 %v4050
    %4185 = vmatpush2.bf16.msra.mxu0 %v4049
    %4186 = vmatprep.subr.bf16.mxu0 %v4043
    %4187 = vmatpush2.bf16.msra.mxu0 %v4042
    %4188 = vmatprep.subr.bf16.mxu0 %v4036
    %4189 = vmatpush2.bf16.msra.mxu0 %v4035
    %4190 = vmatprep.subr.bf16.mxu0 %v4029
    %4191 = vmatpush2.bf16.msra.mxu0 %v4028
    %4192 = vmatprep.subr.bf16.mxu0 %v4022
    %4193 = vmatpush2.bf16.msra.mxu0 %v4021
    %4194 = vmatprep.subr.bf16.mxu0 %v4015
    %4195 = vmatpush2.bf16.msra.mxu0 %v4014
    %4196 = vmatprep.subr.bf16.mxu0 %v4008
    %4197 = vmatpush2.bf16.msra.mxu0 %v4007
    %4198 = vmatprep.subr.bf16.mxu0 %v4001
    %4199 = vmatpush2.bf16.msra.mxu0 %v4000
    %4200 = vmatprep.mubr.bf16.mxu0 %v3461
    %4201 = vmatmul.mubr.bf16.gmra.mxu0 %v3460
    %v4202 = vpop.f32.mrf.mxu0
    %v4203 = vadd.f32 0.0, %v4202
    %v4204 = vpop.f32.mrf.mxu0
    %v4205 = vadd.f32 0.0, %v4204
    %v4206 = vpop.f32.mrf.mxu0
    %v4207 = vadd.f32 0.0, %v4206
    %v4208 = vpop.f32.mrf.mxu0
    %v4209 = vadd.f32 0.0, %v4208
    %4210 = vmatprep.mubr.bf16.mxu0 %v3463
    %4211 = vmatmul.mubr.bf16.gmra.mxu0 %v3462
    %v4212 = vpop.f32.mrf.mxu0
    %v4213 = vadd.f32 0.0, %v4212
    %v4214 = vpop.f32.mrf.mxu0
    %v4215 = vadd.f32 0.0, %v4214
    %v4216 = vpop.f32.mrf.mxu0
    %v4217 = vadd.f32 0.0, %v4216
    %v4218 = vpop.f32.mrf.mxu0
    %v4219 = vadd.f32 0.0, %v4218
    %4220 = vdwg.mxu0
    %4221 = vmatprep.subr.bf16.mxu0 %v3996
    %4222 = vmatpush1.bf16.msra.mxu0 %v3995
    %4223 = vmatprep.subr.bf16.mxu0 %v3989
    %4224 = vmatpush1.bf16.msra.mxu0 %v3988
    %4225 = vmatprep.subr.bf16.mxu0 %v3982
    %4226 = vmatpush1.bf16.msra.mxu0 %v3981
    %4227 = vmatprep.subr.bf16.mxu0 %v3975
    %4228 = vmatpush1.bf16.msra.mxu0 %v3974
    %4229 = vmatprep.subr.bf16.mxu0 %v3968
    %4230 = vmatpush1.bf16.msra.mxu0 %v3967
    %4231 = vmatprep.subr.bf16.mxu0 %v3961
    %4232 = vmatpush1.bf16.msra.mxu0 %v3960
    %4233 = vmatprep.subr.bf16.mxu0 %v3954
    %4234 = vmatpush1.bf16.msra.mxu0 %v3953
    %4235 = vmatprep.subr.bf16.mxu0 %v3947
    %4236 = vmatpush1.bf16.msra.mxu0 %v3946
    %4237 = vmatprep.subr.bf16.mxu0 %v4052
    %4238 = vmatpush2.bf16.msra.mxu0 %v4051
    %4239 = vmatprep.subr.bf16.mxu0 %v4045
    %4240 = vmatpush2.bf16.msra.mxu0 %v4044
    %4241 = vmatprep.subr.bf16.mxu0 %v4038
    %4242 = vmatpush2.bf16.msra.mxu0 %v4037
    %4243 = vmatprep.subr.bf16.mxu0 %v4031
    %4244 = vmatpush2.bf16.msra.mxu0 %v4030
    %4245 = vmatprep.subr.bf16.mxu0 %v4024
    %4246 = vmatpush2.bf16.msra.mxu0 %v4023
    %4247 = vmatprep.subr.bf16.mxu0 %v4017
    %4248 = vmatpush2.bf16.msra.mxu0 %v4016
    %4249 = vmatprep.subr.bf16.mxu0 %v4010
    %4250 = vmatpush2.bf16.msra.mxu0 %v4009
    %4251 = vmatprep.subr.bf16.mxu0 %v4003
    %4252 = vmatpush2.bf16.msra.mxu0 %v4002
    %4253 = vmatprep.mubr.bf16.mxu0 %v3461
    %4254 = vmatmul.mubr.bf16.gmra.mxu0 %v3460
    %v4255 = vpop.f32.mrf.mxu0
    %v4256 = vadd.f32 0.0, %v4255
    %v4257 = vpop.f32.mrf.mxu0
    %v4258 = vadd.f32 0.0, %v4257
    %v4259 = vpop.f32.mrf.mxu0
    %v4260 = vadd.f32 0.0, %v4259
    %v4261 = vpop.f32.mrf.mxu0
    %v4262 = vadd.f32 0.0, %v4261
    %4263 = vmatprep.mubr.bf16.mxu0 %v3463
    %4264 = vmatmul.mubr.bf16.gmra.mxu0 %v3462
    %v4265 = vpop.f32.mrf.mxu0
    %v4266 = vadd.f32 0.0, %v4265
    %v4267 = vpop.f32.mrf.mxu0
    %v4268 = vadd.f32 0.0, %v4267
    %v4269 = vpop.f32.mrf.mxu0
    %v4270 = vadd.f32 0.0, %v4269
    %v4271 = vpop.f32.mrf.mxu0
    %v4272 = vadd.f32 0.0, %v4271
    %4273 = vdwg.mxu0
    %4274 = vmatprep.subr.bf16.mxu0 %v3998
    %4275 = vmatpush1.bf16.msra.mxu0 %v3997
    %4276 = vmatprep.subr.bf16.mxu0 %v3991
    %4277 = vmatpush1.bf16.msra.mxu0 %v3990
    %4278 = vmatprep.subr.bf16.mxu0 %v3984
    %4279 = vmatpush1.bf16.msra.mxu0 %v3983
    %4280 = vmatprep.subr.bf16.mxu0 %v3977
    %4281 = vmatpush1.bf16.msra.mxu0 %v3976
    %4282 = vmatprep.subr.bf16.mxu0 %v3970
    %4283 = vmatpush1.bf16.msra.mxu0 %v3969
    %4284 = vmatprep.subr.bf16.mxu0 %v3963
    %4285 = vmatpush1.bf16.msra.mxu0 %v3962
    %4286 = vmatprep.subr.bf16.mxu0 %v3956
    %4287 = vmatpush1.bf16.msra.mxu0 %v3955
    %4288 = vmatprep.subr.bf16.mxu0 %v3949
    %4289 = vmatpush1.bf16.msra.mxu0 %v3948
    %4290 = vmatprep.subr.bf16.mxu0 %v4054
    %4291 = vmatpush2.bf16.msra.mxu0 %v4053
    %4292 = vmatprep.subr.bf16.mxu0 %v4047
    %4293 = vmatpush2.bf16.msra.mxu0 %v4046
    %4294 = vmatprep.subr.bf16.mxu0 %v4040
    %4295 = vmatpush2.bf16.msra.mxu0 %v4039
    %4296 = vmatprep.subr.bf16.mxu0 %v4033
    %4297 = vmatpush2.bf16.msra.mxu0 %v4032
    %4298 = vmatprep.subr.bf16.mxu0 %v4026
    %4299 = vmatpush2.bf16.msra.mxu0 %v4025
    %4300 = vmatprep.subr.bf16.mxu0 %v4019
    %4301 = vmatpush2.bf16.msra.mxu0 %v4018
    %4302 = vmatprep.subr.bf16.mxu0 %v4012
    %4303 = vmatpush2.bf16.msra.mxu0 %v4011
    %4304 = vmatprep.subr.bf16.mxu0 %v4005
    %4305 = vmatpush2.bf16.msra.mxu0 %v4004
    %4306 = vmatprep.mubr.bf16.mxu0 %v3461
    %4307 = vmatmul.mubr.bf16.gmra.mxu0 %v3460
    %v4308 = vpop.f32.mrf.mxu0
    %v4309 = vadd.f32 0.0, %v4308
    %v4310 = vpop.f32.mrf.mxu0
    %v4311 = vadd.f32 0.0, %v4310
    %v4312 = vpop.f32.mrf.mxu0
    %v4313 = vadd.f32 0.0, %v4312
    %v4314 = vpop.f32.mrf.mxu0
    %v4315 = vadd.f32 0.0, %v4314
    %4316 = vmatprep.mubr.bf16.mxu0 %v3463
    %4317 = vmatmul.mubr.bf16.gmra.mxu0 %v3462
    %v4318 = vpop.f32.mrf.mxu0
    %v4319 = vadd.f32 0.0, %v4318
    %v4320 = vpop.f32.mrf.mxu0
    %v4321 = vadd.f32 0.0, %v4320
    %v4322 = vpop.f32.mrf.mxu0
    %v4323 = vadd.f32 0.0, %v4322
    %v4324 = vpop.f32.mrf.mxu0
    %v4325 = vadd.f32 0.0, %v4324
    %4326 = vdwg.mxu0
    %4327 = vmatprep.subr.bf16.mxu0 0
    %4328 = vmatpush1.bf16.msra.mxu0 %v3999
    %4329 = vmatprep.subr.bf16.mxu0 0
    %4330 = vmatpush1.bf16.msra.mxu0 %v3992
    %4331 = vmatprep.subr.bf16.mxu0 0
    %4332 = vmatpush1.bf16.msra.mxu0 %v3985
    %4333 = vmatprep.subr.bf16.mxu0 0
    %4334 = vmatpush1.bf16.msra.mxu0 %v3978
    %4335 = vmatprep.subr.bf16.mxu0 0
    %4336 = vmatpush1.bf16.msra.mxu0 %v3971
    %4337 = vmatprep.subr.bf16.mxu0 0
    %4338 = vmatpush1.bf16.msra.mxu0 %v3964
    %4339 = vmatprep.subr.bf16.mxu0 0
    %4340 = vmatpush1.bf16.msra.mxu0 %v3957
    %4341 = vmatprep.subr.bf16.mxu0 0
    %4342 = vmatpush1.bf16.msra.mxu0 %v3950
    %4343 = vmatprep.subr.bf16.mxu0 0
    %4344 = vmatpush2.bf16.msra.mxu0 %v4055
    %4345 = vmatprep.subr.bf16.mxu0 0
    %4346 = vmatpush2.bf16.msra.mxu0 %v4048
    %4347 = vmatprep.subr.bf16.mxu0 0
    %4348 = vmatpush2.bf16.msra.mxu0 %v4041
    %4349 = vmatprep.subr.bf16.mxu0 0
    %4350 = vmatpush2.bf16.msra.mxu0 %v4034
    %4351 = vmatprep.subr.bf16.mxu0 0
    %4352 = vmatpush2.bf16.msra.mxu0 %v4027
    %4353 = vmatprep.subr.bf16.mxu0 0
    %4354 = vmatpush2.bf16.msra.mxu0 %v4020
    %4355 = vmatprep.subr.bf16.mxu0 0
    %4356 = vmatpush2.bf16.msra.mxu0 %v4013
    %4357 = vmatprep.subr.bf16.mxu0 0
    %4358 = vmatpush2.bf16.msra.mxu0 %v4006
    %4359 = vmatprep.mubr.bf16.mxu0 %v3461
    %4360 = vmatmul.mubr.bf16.gmra.mxu0 %v3460
    %v4361 = vpop.f32.mrf.mxu0
    %v4362 = vadd.f32 0.0, %v4361
    %v4363 = vpop.f32.mrf.mxu0
    %v4364 = vpop.f32.mrf.mxu0
    %v4365 = vadd.f32 0.0, %v4364
    %v4366 = vpop.f32.mrf.mxu0
    %4367 = vmatprep.mubr.bf16.mxu0 %v3463
    %4368 = vmatmul.mubr.bf16.gmra.mxu0 %v3462
    %v4369 = vpop.f32.mrf.mxu0
    %v4370 = vadd.f32 0.0, %v4369
    %v4371 = vpop.f32.mrf.mxu0
    %v4372 = vpop.f32.mrf.mxu0
    %v4373 = vadd.f32 0.0, %v4372
    %v4374 = vpop.f32.mrf.mxu0
    %4375 = vdwg.mxu0
    %v4376 = vadd.f32 %v3212, %v4203
    %v4377 = vadd.f32 %v3214, %v4205
    %v4378 = vadd.f32 %v3265, %v4256
    %v4379 = vadd.f32 %v3267, %v4258
    %v4380 = vadd.f32 %v3318, %v4309
    %v4381 = vadd.f32 %v3320, %v4311
    %v4382 = vadd.f32 %v3371, %v4362
    %v4383 = vadd.f32 %v3216, %v4207
    %v4384 = vadd.f32 %v3218, %v4209
    %v4385 = vadd.f32 %v3269, %v4260
    %v4386 = vadd.f32 %v3271, %v4262
    %v4387 = vadd.f32 %v3322, %v4313
    %v4388 = vadd.f32 %v3324, %v4315
    %v4389 = vadd.f32 %v3374, %v4365
    %v4390 = vadd.f32 %v3222, %v4213
    %v4391 = vadd.f32 %v3224, %v4215
    %v4392 = vadd.f32 %v3275, %v4266
    %v4393 = vadd.f32 %v3277, %v4268
    %v4394 = vadd.f32 %v3328, %v4319
    %v4395 = vadd.f32 %v3330, %v4321
    %v4396 = vadd.f32 %v3379, %v4370
    %v4397 = vadd.f32 %v3226, %v4217
    %v4398 = vadd.f32 %v3228, %v4219
    %v4399 = vadd.f32 %v3279, %v4270
    %v4400 = vadd.f32 %v3281, %v4272
    %v4401 = vadd.f32 %v3332, %v4323
    %v4402 = vadd.f32 %v3334, %v4325
    %v4403 = vadd.f32 %v3382, %v4373
    %4404 = vst [vmem:[#allocation19] sm:$0xff] %v4376
    %4405 = vst [vmem:[#allocation19 + $0x8] sm:$0xff] %v4377
    %4406 = vst [vmem:[#allocation19 + $0x10] sm:$0xff] %v4378
    %4407 = vst [vmem:[#allocation19 + $0x18] sm:$0xff] %v4379
    %4408 = vst [vmem:[#allocation19 + $0x20] sm:$0xff] %v4380
    %4409 = vst [vmem:[#allocation19 + $0x28] sm:$0xff] %v4381
    %4410 = vst [vmem:[#allocation19 + $0x30] sm:$0xff] %v4382
    %4411 = vst [vmem:[#allocation19 + $0x38] sm:$0xff] %v4383
    %4412 = vst [vmem:[#allocation19 + $0x40] sm:$0xff] %v4384
    %4413 = vst [vmem:[#allocation19 + $0x48] sm:$0xff] %v4385
    %4414 = vst [vmem:[#allocation19 + $0x50] sm:$0xff] %v4386
    %4415 = vst [vmem:[#allocation19 + $0x58] sm:$0xff] %v4387
    %4416 = vst [vmem:[#allocation19 + $0x60] sm:$0xff] %v4388
    %4417 = vst [vmem:[#allocation19 + $0x68] sm:$0xff] %v4389
    %4418 = vst [vmem:[#allocation19 + $0x70] sm:$0xff] %v4390
    %4419 = vst [vmem:[#allocation19 + $0x78] sm:$0xff] %v4391
    %4420 = vst [vmem:[#allocation19 + $0x80] sm:$0xff] %v4392
    %4421 = vst [vmem:[#allocation19 + $0x88] sm:$0xff] %v4393
    %4422 = vst [vmem:[#allocation19 + $0x90] sm:$0xff] %v4394
    %4423 = vst [vmem:[#allocation19 + $0x98] sm:$0xff] %v4395
    %4424 = vst [vmem:[#allocation19 + $0xa0] sm:$0xff] %v4396
    %4425 = vst [vmem:[#allocation19 + $0xa8] sm:$0xff] %v4397
    %4426 = vst [vmem:[#allocation19 + $0xb0] sm:$0xff] %v4398
    %4427 = vst [vmem:[#allocation19 + $0xb8] sm:$0xff] %v4399
    %4428 = vst [vmem:[#allocation19 + $0xc0] sm:$0xff] %v4400
    %4429 = vst [vmem:[#allocation19 + $0xc8] sm:$0xff] %v4401
    %4430 = vst [vmem:[#allocation19 + $0xd0] sm:$0xff] %v4402
    %4431 = vst [vmem:[#allocation19 + $0xd8] sm:$0xff] %v4403
    // Predicated region
    $region98: #{tpu_custom_call.1} parent=1 // pred_check
      _
    $region99: #{tpu_custom_call.1} parent=1 // pred_check_branch
      %4433 = sbr.rel (0) target = $region101
    $region100: #{tpu_custom_call.1} parent=1 // pred_region
      %s4435 = ssub.s32 3584, 3584
      %4436 = vsyncadd [#allocation7], %s4435
      %s4437 = sshll.u32 [#allocation19], 4
      %s4438 = int_to_ptr.vmem [resolvable:$true] %s4437
      %4443 = dma.vmem_to_hbm [thread:$0]  %s4438, 3584, %s16, [#allocation7], 896, 896, 56
    $region101: #{tpu_custom_call.1} parent=1 // pred_fallthru
      _
    // Predicated region
    $region102: #{tpu_custom_call.1} parent=1 // pred_check
      _
    $region103: #{tpu_custom_call.1} parent=1 // pred_check_branch
      %4445 = sbr.rel (0) target = $region105
    $region104: #{tpu_custom_call.1} parent=1 // pred_region
      %4446 = dma.done [#allocation7], 3584
    $region105: #{tpu_custom_call.1} parent=1 // pred_fallthru
      _
    %4447 = vsyncpa [#allocation6], 1
    %4448 = vsyncpa [#allocation9], 1
    %4449 = vsyncpa [#allocation12], 1
    %4450 = vsyncpa [#allocation15], 1
    %4451 = vsyncpa [#allocation18], 1
    %4452 = vsyncpa [#allocation7], 1

</llo_original>
